<compile_context>
chip_gen: v7x
topology: tpu7x:2x2x1
jax: 0.10.0
libtpu: 0.0.40
codegen_flags: <defaults>
</compile_context>

<pallas_src>
import jax
import jax.numpy as jnp
import numpy as np
from jax.experimental import pallas as pl
from jax.experimental.pallas import tpu as pltpu


# ---------------------------------------------------------------------------
# Kernel 1: fused [ConvTranspose2d(k=2,s=2) -> 1x1 align_x] + [1x1 align_skip]
#           + add, all 4 sub-pixel taps in one lane-dense matmul.
# Grid = (N,); per grid point:
#   out[n, i, j, t*Cout + c] = align_x(up(x))[n, 2i+dh, 2j+dw, c]
#                            + align_skip(skip)[n, 2i+dh, 2j+dw, c],  t=2*dh+dw
# ---------------------------------------------------------------------------
def up_align_add_kernel(x_ref, s_ref, wfx_ref, wsd_ref, b_ref, o_ref):
    # x_ref:   (1, H, W, Cin)      low-res input (bf16)
    # s_ref:   (1, H, W, 4*Cs)     skip, sub-pixel regrouped (bf16)
    # wfx_ref: (Cin, 4*Cout)       wup[t] @ wax, 4 taps concatenated on lanes
    # wsd_ref: (4*Cs, 4*Cout)      block-diag(align_skip weight) x4
    # b_ref:   (1, 4*Cout)         fused bias (f32)
    # o_ref:   (1, H, W, 4*Cout)   sub-pixel-packed, lane-dense output (bf16)
    _, H, W, Cin = x_ref.shape
    Cs4 = s_ref.shape[-1]
    C4 = o_ref.shape[-1]

    x = x_ref[0].reshape(H * W, Cin)
    s = s_ref[0].reshape(H * W, Cs4)
    acc = jnp.dot(x, wfx_ref[...], preferred_element_type=jnp.float32)
    acc = acc + jnp.dot(s, wsd_ref[...], preferred_element_type=jnp.float32)
    acc = acc + b_ref[...]
    o_ref[0] = acc.reshape(H, W, C4).astype(o_ref.dtype)


def up_align_add_call(x, skip_r, wfx, wsd, b):
    N, H, W, Cin = x.shape
    Cs4 = skip_r.shape[-1]
    C4 = wfx.shape[-1]
    return pl.pallas_call(
        up_align_add_kernel,
        out_shape=jax.ShapeDtypeStruct((N, H, W, C4), jnp.bfloat16),
        grid_spec=pltpu.PrefetchScalarGridSpec(
            num_scalar_prefetch=0,
            grid=(N,),
            in_specs=[
                pl.BlockSpec((1, H, W, Cin), lambda n: (n, 0, 0, 0)),
                pl.BlockSpec((1, H, W, Cs4), lambda n: (n, 0, 0, 0)),
                pl.BlockSpec((Cin, C4), lambda n: (0, 0)),
                pl.BlockSpec((Cs4, C4), lambda n: (0, 0)),
                pl.BlockSpec((1, C4), lambda n: (0, 0)),
            ],
            out_specs=pl.BlockSpec((1, H, W, C4), lambda n: (n, 0, 0, 0)),
        ),
        compiler_params=pltpu.CompilerParams(
            dimension_semantics=("parallel",),
            vmem_limit_bytes=48 * 1024 * 1024),
    )(x, skip_r, wfx, wsd, b)


# ---------------------------------------------------------------------------
# Kernel 2: TwoConv, BOTH stages fused:
#   2x [ Conv2d(3x3, pad=1, bias dropped) -> InstanceNorm -> LeakyReLU(0.1) ]
# Input is NOT pre-padded; padding is done in-kernel; the inter-stage
# activation never leaves VMEM.
# ---------------------------------------------------------------------------
def two_conv_kernel(y_ref, w0_ref, w1_ref, o_ref):
    # y_ref:  (1, Ho, Wo, C)  full-res sum (bf16)
    # w*_ref: (3, 3*C, C)     3x3 weights with the kw taps packed into rows
    # o_ref:  (1, Ho, Wo, C)  f32 result
    _, Ho, Wo, C = o_ref.shape

    def stage(yv, w_ref):
        yv = yv.astype(w_ref.dtype)                       # bf16 MXU inputs
        # In-kernel zero pad to (Ho+2, Wo+2, C) — no HBM pad pass.
        zrow = jnp.zeros((1, Wo, C), yv.dtype)
        zcol = jnp.zeros((Ho + 2, 1, C), yv.dtype)
        xp = jnp.concatenate([zrow, yv, zrow], axis=0)    # (Ho+2, Wo,   C)
        xp = jnp.concatenate([zcol, xp, zcol], axis=1)    # (Ho+2, Wo+2, C)
        # Pack the 3 kw taps onto the lane dim ONCE (3 relayouts, not 9):
        #   xkw[h, j, kw*C + c] = xp[h, j + kw, c]
        xkw = jnp.concatenate(
            [xp[:, 0:Wo, :], xp[:, 1:Wo + 1, :], xp[:, 2:Wo + 2, :]],
            axis=-1)                                      # (Ho+2, Wo, 3C)
        acc = jnp.zeros((Ho * Wo, C), jnp.float32)
        for kh in range(3):                               # 3 matmuls, K = 3*C
            patch = xkw[kh:kh + Ho].reshape(Ho * Wo, 3 * C)
            acc = acc + jnp.dot(patch, w_ref[kh],
                                preferred_element_type=jnp.float32)
        # (conv bias omitted: exact no-op under non-affine InstanceNorm)
        # InstanceNorm2d over spatial, single-pass stats, f32 math.
        mean = jnp.mean(acc, axis=0, keepdims=True)
        var = jnp.maximum(
            jnp.mean(acc * acc, axis=0, keepdims=True) - mean * mean, 0.0)
        z = (acc - mean) * jax.lax.rsqrt(var + 1e-5)
        return jnp.where(z >= 0, z, 0.1 * z)              # LeakyReLU(0.1)

    z1 = stage(y_ref[0], w0_ref)                          # (Ho*Wo, C) f32
    z2 = stage(z1.reshape(Ho, Wo, C), w1_ref)
    o_ref[0] = z2.reshape(Ho, Wo, C).astype(o_ref.dtype)


def two_conv_call(y, w0p, w1p):
    N, Ho, Wo, C = y.shape
    return pl.pallas_call(
        two_conv_kernel,
        out_shape=jax.ShapeDtypeStruct((N, Ho, Wo, C), jnp.float32),
        grid_spec=pltpu.PrefetchScalarGridSpec(
            num_scalar_prefetch=0,
            grid=(N,),
            in_specs=[
                pl.BlockSpec((1, Ho, Wo, C), lambda n: (n, 0, 0, 0)),
                pl.BlockSpec((3, 3 * C, C), lambda n: (0, 0, 0)),
                pl.BlockSpec((3, 3 * C, C), lambda n: (0, 0, 0)),
            ],
            out_specs=pl.BlockSpec((1, Ho, Wo, C), lambda n: (n, 0, 0, 0)),
        ),
        compiler_params=pltpu.CompilerParams(
            dimension_semantics=("parallel",),
            vmem_limit_bytes=48 * 1024 * 1024),
    )(y, w0p, w1p)


# ---------------------------------------------------------------------------
# Full UpSum forward (Pallas path).  x_nchw: (N,Cin,H,W), skip_nchw: (N,Cs,2H,2W)
# Returns NCHW: (N, Cout, 2H, 2W)
# ---------------------------------------------------------------------------
def upsum_pallas(params, x_nchw, skip_nchw):
    cdt = jnp.bfloat16
    x = jnp.transpose(x_nchw, (0, 2, 3, 1))        # -> NHWC
    skip = jnp.transpose(skip_nchw, (0, 2, 3, 1))  # -> NHWC
    N, H, W, Cin = x.shape
    Cs = skip.shape[-1]
    Cout = params["wax"].shape[-1]

    # --- wrapper-side weight fusion --------------------------------------
    wup, wax = params["wup"], params["wax"]        # (4,Cin,Cout), (Cout,Cout)
    # deconv tap t fused with align_x: (Cin, 4*Cout), lane block t = 2*dh+dw
    wfx = jnp.concatenate([wup[t] @ wax for t in range(4)], axis=-1)
    # align_skip replicated block-diagonally so one matmul covers all 4 taps
    was = params["was"]                            # (Cs, Cout)
    wsd = jnp.zeros((4 * Cs, 4 * Cout), jnp.float32)
    for t in range(4):
        wsd = wsd.at[t * Cs:(t + 1) * Cs, t * Cout:(t + 1) * Cout].set(was)
    bias_tap = params["bup"] @ wax + params["bax"] + params["bas"]   # (Cout,)
    bfused = jnp.tile(bias_tap, 4).reshape(1, 4 * Cout)              # f32

    # glue: regroup skip so lane block t holds skip[n, 2i+dh, 2j+dw, :]
    skip_r = (skip.reshape(N, H, 2, W, 2, Cs)
                  .transpose(0, 1, 3, 2, 4, 5)
                  .reshape(N, H, W, 4 * Cs))

    y4 = up_align_add_call(x.astype(cdt), skip_r.astype(cdt),
                           wfx.astype(cdt), wsd.astype(cdt), bfused)

    # glue: un-interleave sub-pixel lane blocks -> full-resolution NHWC (bf16)
    y = (y4.reshape(N, H, W, 2, 2, Cout)
           .transpose(0, 1, 3, 2, 4, 5)
           .reshape(N, 2 * H, 2 * W, Cout))

    # pack the kw taps of the 3x3 weights: (3,3,C,C) HWIO -> (3, 3*C, C)
    w0p = params["wc0"].reshape(3, 3 * Cout, Cout).astype(cdt)
    w1p = params["wc1"].reshape(3, 3 * Cout, Cout).astype(cdt)

    out = two_conv_call(y, w0p, w1p)               # (N, 2H, 2W, Cout) f32
    return jnp.transpose(out, (0, 3, 1, 2))        # -> NCHW


# ---------------------------------------------------------------------------
# Pure-JAX f32 reference (same math, independent lowering via lax.conv/einsum)
# ---------------------------------------------------------------------------
def upsum_reference(params, x_nchw, skip_nchw):
    x = jnp.transpose(x_nchw, (0, 2, 3, 1)).astype(jnp.float32)
    skip = jnp.transpose(skip_nchw, (0, 2, 3, 1)).astype(jnp.float32)
    N, H, W, Cin = x.shape
    wup4 = params["wup"].reshape(2, 2, Cin, -1)    # (dh, dw, ci, co)
    Cout = wup4.shape[-1]
    # ConvTranspose2d(k=2,s=2): out[n,2i+dh,2j+dw,o] = sum_c x[n,i,j,c]*w[dh,dw,c,o]
    up = jnp.einsum("nijc,hwco->nihjwo", x, wup4).reshape(N, 2 * H, 2 * W, Cout)
    up = up + params["bup"].reshape(1, 1, 1, -1)
    y = jnp.einsum("nhwc,co->nhwo", up, params["wax"]) + params["bax"].reshape(1, 1, 1, -1)
    s = jnp.einsum("nhwc,co->nhwo", skip, params["was"]) + params["bas"].reshape(1, 1, 1, -1)
    y = y + s
    for i in (0, 1):
        y = jax.lax.conv_general_dilated(
            y, params[f"wc{i}"], (1, 1), "SAME",
            dimension_numbers=("NHWC", "HWIO", "NHWC")) + params[f"bc{i}"].reshape(1, 1, 1, -1)
        mean = jnp.mean(y, axis=(1, 2), keepdims=True)
        var = jnp.mean((y - mean) ** 2, axis=(1, 2), keepdims=True)
        y = (y - mean) * jax.lax.rsqrt(var + 1e-5)
        y = jnp.where(y >= 0, y, 0.1 * y)
    return jnp.transpose(y, (0, 3, 1, 2))


if __name__ == "__main__":
    key = jax.random.PRNGKey(0)
    N, Cin, Cs, Cout = 2, 16, 8, 16
    H = W = 8  # low-res input; output spatial = 16x16

    ks = jax.random.split(key, 12)

    def uinit(k, shape, fan_in):
        bound = 1.0 / np.sqrt(fan_in)
        return jax.random.uniform(k, shape, jnp.float32, -bound, bound)

    params = {
        # ConvTranspose2d(Cin, Cout, k=2, s=2), stored as [t=2*dh+dw, ci, co]
        "wup": uinit(ks[0], (4, Cin, Cout), Cin * 4),
        "bup": uinit(ks[1], (Cout,), Cin * 4),
        # align_x: Conv2d(Cout, Cout, 1)
        "wax": uinit(ks[2], (Cout, Cout), Cout),
        "bax": uinit(ks[3], (Cout,), Cout),
        # align_skip: Conv2d(Cs, Cout, 1)
        "was": uinit(ks[4], (Cs, Cout), Cs),
        "bas": uinit(ks[5], (Cout,), Cs),
        # TwoConv: two Conv2d(Cout, Cout, 3, pad=1), HWIO layout
        "wc0": uinit(ks[6], (3, 3, Cout, Cout), Cout * 9),
        "bc0": uinit(ks[7], (Cout,), Cout * 9),
        "wc1": uinit(ks[8], (3, 3, Cout, Cout), Cout * 9),
        "bc1": uinit(ks[9], (Cout,), Cout * 9),
    }

    x = jax.random.normal(ks[10], (N, Cin, H, W), jnp.float32)
    skip = jax.random.normal(ks[11], (N, Cs, 2 * H, 2 * W), jnp.float32)

    out = jax.block_until_ready(jax.jit(upsum_pallas)(params, x, skip))
    ref = jax.block_until_ready(upsum_reference(params, x, skip))

    assert out.shape == (N, Cout, 2 * H, 2 * W)
    # bf16 storage / MXU inputs (f32 accumulation) -> loosened tolerance.
    np.testing.assert_allclose(np.asarray(out), np.asarray(ref), rtol=3e-2, atol=3e-2)
    print("KERNEL_OK")
</pallas_src>

<mosaic_0001>
module attributes {stable_mosaic.version = 11 : i64} {
  func.func @up_align_add_kernel(%arg0: i32, %arg1: memref<1x8x8x16xbf16, #tpu.memory_space<vmem>>, %arg2: memref<1x8x8x32xbf16, #tpu.memory_space<vmem>>, %arg3: memref<16x64xbf16, #tpu.memory_space<vmem>>, %arg4: memref<32x64xbf16, #tpu.memory_space<vmem>>, %arg5: memref<1x64xf32, #tpu.memory_space<vmem>>, %arg6: memref<1x8x8x64xbf16, #tpu.memory_space<vmem>>) attributes {dimension_semantics = [#tpu.dimension_semantics<parallel>], iteration_bounds = array<i64: 2>, scalar_prefetch = 0 : i64, scratch_operands = 0 : i64, tpu.core_type = #tpu.core_type<tc>, window_params = [{transform_indices = @transform_0, window_bounds = array<i64: 1, 8, 8, 16>}, {transform_indices = @transform_1, window_bounds = array<i64: 1, 8, 8, 32>}, {pipeline_mode = #tpu.pipeline_mode<synchronous>, transform_indices = @transform_2, window_bounds = array<i64: 16, 64>}, {pipeline_mode = #tpu.pipeline_mode<synchronous>, transform_indices = @transform_3, window_bounds = array<i64: 32, 64>}, {pipeline_mode = #tpu.pipeline_mode<synchronous>, transform_indices = @transform_4, window_bounds = array<i64: 1, 64>}, {transform_indices = @transform_5, window_bounds = array<i64: 1, 8, 8, 64>}]} {
    %c0 = arith.constant 0 : index
    %c0_0 = arith.constant 0 : index
    %c0_1 = arith.constant 0 : index
    %c0_2 = arith.constant 0 : index
    %0 = vector.load %arg1[%c0, %c0_0, %c0_1, %c0_2] : memref<1x8x8x16xbf16, #tpu.memory_space<vmem>>, vector<1x8x8x16xbf16>
    %1 = vector.shape_cast %0 : vector<1x8x8x16xbf16> to vector<8x8x16xbf16>
    %2 = vector.shape_cast %1 : vector<8x8x16xbf16> to vector<64x16xbf16>
    %c0_3 = arith.constant 0 : index
    %c0_4 = arith.constant 0 : index
    %c0_5 = arith.constant 0 : index
    %c0_6 = arith.constant 0 : index
    %3 = vector.load %arg2[%c0_3, %c0_4, %c0_5, %c0_6] : memref<1x8x8x32xbf16, #tpu.memory_space<vmem>>, vector<1x8x8x32xbf16>
    %4 = vector.shape_cast %3 : vector<1x8x8x32xbf16> to vector<8x8x32xbf16>
    %5 = vector.shape_cast %4 : vector<8x8x32xbf16> to vector<64x32xbf16>
    %c0_7 = arith.constant 0 : index
    %c0_8 = arith.constant 0 : index
    %6 = vector.load %arg3[%c0_7, %c0_8] : memref<16x64xbf16, #tpu.memory_space<vmem>>, vector<16x64xbf16>
    %cst = arith.constant dense<0.000000e+00> : vector<64x64xf32>
    %7 = tpu.matmul %2, %6, %cst {dimension_numbers = #tpu.dot_dimension_numbers<[1], [0], [0], [1], [0, 0, 1, 1], [], []>} : vector<64x16xbf16>, vector<16x64xbf16>, vector<64x64xf32> -> vector<64x64xf32>
    %c0_9 = arith.constant 0 : index
    %c0_10 = arith.constant 0 : index
    %8 = vector.load %arg4[%c0_9, %c0_10] : memref<32x64xbf16, #tpu.memory_space<vmem>>, vector<32x64xbf16>
    %cst_11 = arith.constant dense<0.000000e+00> : vector<64x64xf32>
    %9 = tpu.matmul %5, %8, %cst_11 {dimension_numbers = #tpu.dot_dimension_numbers<[1], [0], [0], [1], [0, 0, 1, 1], [], []>} : vector<64x32xbf16>, vector<32x64xbf16>, vector<64x64xf32> -> vector<64x64xf32>
    %10 = arith.addf %7, %9 : vector<64x64xf32>
    %c0_12 = arith.constant 0 : index
    %c0_13 = arith.constant 0 : index
    %11 = vector.load %arg5[%c0_12, %c0_13] : memref<1x64xf32, #tpu.memory_space<vmem>>, vector<1x64xf32>
    %12 = vector.broadcast %11 : vector<1x64xf32> to vector<64x64xf32>
    %13 = arith.addf %10, %12 : vector<64x64xf32>
    %14 = vector.shape_cast %13 : vector<64x64xf32> to vector<8x8x64xf32>
    %15 = arith.truncf %14 : vector<8x8x64xf32> to vector<8x8x64xbf16>
    %c0_14 = arith.constant 0 : index
    %c0_15 = arith.constant 0 : index
    %c0_16 = arith.constant 0 : index
    %c0_17 = arith.constant 0 : index
    %16 = vector.load %arg6[%c0_14, %c0_15, %c0_16, %c0_17] : memref<1x8x8x64xbf16, #tpu.memory_space<vmem>>, vector<1x8x8x64xbf16>
    %17 = vector.shape_cast %16 : vector<1x8x8x64xbf16> to vector<8x8x64xbf16>
    %18 = vector.shape_cast %15 : vector<8x8x64xbf16> to vector<1x8x8x64xbf16>
    tpu.vector_store %arg6[%c0_14, %c0_15, %c0_16, %c0_17], %18 {strides = array<i32>} : memref<1x8x8x64xbf16, #tpu.memory_space<vmem>>, vector<1x8x8x64xbf16>,
    return
  }
  func.func @transform_0(%arg0: i32) -> (i32, i32, i32, i32) {
    %c0_i32 = arith.constant 0 : i32
    %c0_i32_0 = arith.constant 0 : i32
    %c0_i32_1 = arith.constant 0 : i32
    %c0_i32_2 = arith.constant 0 : i32
    return %arg0, %c0_i32, %c0_i32_0, %c0_i32_1 : i32, i32, i32, i32
  }
  func.func @transform_1(%arg0: i32) -> (i32, i32, i32, i32) {
    %c0_i32 = arith.constant 0 : i32
    %c0_i32_0 = arith.constant 0 : i32
    %c0_i32_1 = arith.constant 0 : i32
    %c0_i32_2 = arith.constant 0 : i32
    return %arg0, %c0_i32, %c0_i32_0, %c0_i32_1 : i32, i32, i32, i32
  }
  func.func @transform_2(%arg0: i32) -> (i32, i32) {
    %c0_i32 = arith.constant 0 : i32
    %c0_i32_0 = arith.constant 0 : i32
    %c0_i32_1 = arith.constant 0 : i32
    return %c0_i32, %c0_i32_0 : i32, i32
  }
  func.func @transform_3(%arg0: i32) -> (i32, i32) {
    %c0_i32 = arith.constant 0 : i32
    %c0_i32_0 = arith.constant 0 : i32
    %c0_i32_1 = arith.constant 0 : i32
    return %c0_i32, %c0_i32_0 : i32, i32
  }
  func.func @transform_4(%arg0: i32) -> (i32, i32) {
    %c0_i32 = arith.constant 0 : i32
    %c0_i32_0 = arith.constant 0 : i32
    %c0_i32_1 = arith.constant 0 : i32
    return %c0_i32, %c0_i32_0 : i32, i32
  }
  func.func @transform_5(%arg0: i32) -> (i32, i32, i32, i32) {
    %c0_i32 = arith.constant 0 : i32
    %c0_i32_0 = arith.constant 0 : i32
    %c0_i32_1 = arith.constant 0 : i32
    %c0_i32_2 = arith.constant 0 : i32
    return %arg0, %c0_i32, %c0_i32_0, %c0_i32_1 : i32, i32, i32, i32
  }
}

module attributes {stable_mosaic.version = 11 : i64} {
  func.func @two_conv_kernel(%arg0: i32, %arg1: memref<1x16x16x16xbf16, #tpu.memory_space<vmem>>, %arg2: memref<3x48x16xbf16, #tpu.memory_space<vmem>>, %arg3: memref<3x48x16xbf16, #tpu.memory_space<vmem>>, %arg4: memref<1x16x16x16xf32, #tpu.memory_space<vmem>>) attributes {dimension_semantics = [#tpu.dimension_semantics<parallel>], iteration_bounds = array<i64: 2>, scalar_prefetch = 0 : i64, scratch_operands = 0 : i64, tpu.core_type = #tpu.core_type<tc>, window_params = [{transform_indices = @transform_0, window_bounds = array<i64: 1, 16, 16, 16>}, {pipeline_mode = #tpu.pipeline_mode<synchronous>, transform_indices = @transform_1, window_bounds = array<i64: 3, 48, 16>}, {pipeline_mode = #tpu.pipeline_mode<synchronous>, transform_indices = @transform_2, window_bounds = array<i64: 3, 48, 16>}, {transform_indices = @transform_3, window_bounds = array<i64: 1, 16, 16, 16>}]} {
    %c0 = arith.constant 0 : index
    %c0_0 = arith.constant 0 : index
    %c0_1 = arith.constant 0 : index
    %c0_2 = arith.constant 0 : index
    %0 = vector.load %arg1[%c0, %c0_0, %c0_1, %c0_2] : memref<1x16x16x16xbf16, #tpu.memory_space<vmem>>, vector<1x16x16x16xbf16>
    %1 = vector.shape_cast %0 : vector<1x16x16x16xbf16> to vector<16x16x16xbf16>
    %cst = arith.constant 0.000000e+00 : bf16
    %2 = vector.broadcast %cst : bf16 to vector<1x16x16xbf16>
    %cst_3 = arith.constant 0.000000e+00 : bf16
    %3 = vector.broadcast %cst_3 : bf16 to vector<18x1x16xbf16>
    %4 = tpu.concatenate %2, %1, %2 in 0 : vector<1x16x16xbf16>, vector<16x16x16xbf16>, vector<1x16x16xbf16> -> vector<18x16x16xbf16>
    %5 = tpu.concatenate %3, %4, %3 in 1 : vector<18x1x16xbf16>, vector<18x16x16xbf16>, vector<18x1x16xbf16> -> vector<18x18x16xbf16>
    %6 = vector.extract_strided_slice %5 {offsets = [0, 0, 0], sizes = [18, 16, 16], strides = [1, 1, 1]} : vector<18x18x16xbf16> to vector<18x16x16xbf16>
    %7 = vector.extract_strided_slice %5 {offsets = [0, 1, 0], sizes = [18, 16, 16], strides = [1, 1, 1]} : vector<18x18x16xbf16> to vector<18x16x16xbf16>
    %8 = vector.extract_strided_slice %5 {offsets = [0, 2, 0], sizes = [18, 16, 16], strides = [1, 1, 1]} : vector<18x18x16xbf16> to vector<18x16x16xbf16>
    %9 = tpu.concatenate %6, %7, %8 in 2 : vector<18x16x16xbf16>, vector<18x16x16xbf16>, vector<18x16x16xbf16> -> vector<18x16x48xbf16>
    %cst_4 = arith.constant 0.000000e+00 : f32
    %10 = vector.broadcast %cst_4 : f32 to vector<256x16xf32>
    %11 = vector.extract_strided_slice %9 {offsets = [0, 0, 0], sizes = [16, 16, 48], strides = [1, 1, 1]} : vector<18x16x48xbf16> to vector<16x16x48xbf16>
    %12 = vector.shape_cast %11 : vector<16x16x48xbf16> to vector<256x48xbf16>
    %c0_5 = arith.constant 0 : index
    %c0_6 = arith.constant 0 : index
    %c0_7 = arith.constant 0 : index
    %13 = vector.load %arg2[%c0_5, %c0_6, %c0_7] : memref<3x48x16xbf16, #tpu.memory_space<vmem>>, vector<1x48x16xbf16>
    %14 = vector.shape_cast %13 : vector<1x48x16xbf16> to vector<48x16xbf16>
    %cst_8 = arith.constant dense<0.000000e+00> : vector<256x16xf32>
    %15 = tpu.matmul %12, %14, %cst_8 {dimension_numbers = #tpu.dot_dimension_numbers<[1], [0], [0], [1], [0, 0, 1, 1], [], []>} : vector<256x48xbf16>, vector<48x16xbf16>, vector<256x16xf32> -> vector<256x16xf32>
    %16 = arith.addf %10, %15 : vector<256x16xf32>
    %17 = vector.extract_strided_slice %9 {offsets = [1, 0, 0], sizes = [16, 16, 48], strides = [1, 1, 1]} : vector<18x16x48xbf16> to vector<16x16x48xbf16>
    %18 = vector.shape_cast %17 : vector<16x16x48xbf16> to vector<256x48xbf16>
    %c1 = arith.constant 1 : index
    %c0_9 = arith.constant 0 : index
    %c0_10 = arith.constant 0 : index
    %19 = vector.load %arg2[%c1, %c0_9, %c0_10] : memref<3x48x16xbf16, #tpu.memory_space<vmem>>, vector<1x48x16xbf16>
    %20 = vector.shape_cast %19 : vector<1x48x16xbf16> to vector<48x16xbf16>
    %cst_11 = arith.constant dense<0.000000e+00> : vector<256x16xf32>
    %21 = tpu.matmul %18, %20, %cst_11 {dimension_numbers = #tpu.dot_dimension_numbers<[1], [0], [0], [1], [0, 0, 1, 1], [], []>} : vector<256x48xbf16>, vector<48x16xbf16>, vector<256x16xf32> -> vector<256x16xf32>
    %22 = arith.addf %16, %21 : vector<256x16xf32>
    %23 = vector.extract_strided_slice %9 {offsets = [2, 0, 0], sizes = [16, 16, 48], strides = [1, 1, 1]} : vector<18x16x48xbf16> to vector<16x16x48xbf16>
    %24 = vector.shape_cast %23 : vector<16x16x48xbf16> to vector<256x48xbf16>
    %c2 = arith.constant 2 : index
    %c0_12 = arith.constant 0 : index
    %c0_13 = arith.constant 0 : index
    %25 = vector.load %arg2[%c2, %c0_12, %c0_13] : memref<3x48x16xbf16, #tpu.memory_space<vmem>>, vector<1x48x16xbf16>
    %26 = vector.shape_cast %25 : vector<1x48x16xbf16> to vector<48x16xbf16>
    %cst_14 = arith.constant dense<0.000000e+00> : vector<256x16xf32>
    %27 = tpu.matmul %24, %26, %cst_14 {dimension_numbers = #tpu.dot_dimension_numbers<[1], [0], [0], [1], [0, 0, 1, 1], [], []>} : vector<256x48xbf16>, vector<48x16xbf16>, vector<256x16xf32> -> vector<256x16xf32>
    %28 = arith.addf %22, %27 : vector<256x16xf32>
    %cst_15 = arith.constant dense<0.000000e+00> : vector<16xf32>
    %29 = vector.multi_reduction <add>, %28, %cst_15 [0] : vector<256x16xf32> to vector<16xf32>
    %30 = vector.shape_cast %29 : vector<16xf32> to vector<1x16xf32>
    %cst_16 = arith.constant 2.560000e+02 : f32
    %31 = vector.broadcast %cst_16 : f32 to vector<1x16xf32>
    %32 = arith.divf %30, %31 : vector<1x16xf32>
    %33 = arith.mulf %28, %28 : vector<256x16xf32>
    %cst_17 = arith.constant dense<0.000000e+00> : vector<16xf32>
    %34 = vector.multi_reduction <add>, %33, %cst_17 [0] : vector<256x16xf32> to vector<16xf32>
    %35 = vector.shape_cast %34 : vector<16xf32> to vector<1x16xf32>
    %cst_18 = arith.constant 2.560000e+02 : f32
    %36 = vector.broadcast %cst_18 : f32 to vector<1x16xf32>
    %37 = arith.divf %35, %36 : vector<1x16xf32>
    %38 = arith.mulf %32, %32 : vector<1x16xf32>
    %39 = arith.subf %37, %38 : vector<1x16xf32>
    %cst_19 = arith.constant 0.000000e+00 : f32
    %40 = vector.broadcast %cst_19 : f32 to vector<1x16xf32>
    %41 = arith.maximumf %39, %40 : vector<1x16xf32>
    %42 = vector.broadcast %32 : vector<1x16xf32> to vector<256x16xf32>
    %43 = arith.subf %28, %42 : vector<256x16xf32>
    %cst_20 = arith.constant 9.99999974E-6 : f32
    %44 = vector.broadcast %cst_20 : f32 to vector<1x16xf32>
    %45 = arith.addf %41, %44 : vector<1x16xf32>
    %46 = math.rsqrt %45 : vector<1x16xf32>
    %47 = vector.broadcast %46 : vector<1x16xf32> to vector<256x16xf32>
    %48 = arith.mulf %43, %47 : vector<256x16xf32>
    %cst_21 = arith.constant 0.000000e+00 : f32
    %49 = vector.broadcast %cst_21 : f32 to vector<256x16xf32>
    %50 = arith.cmpf oge, %48, %49 : vector<256x16xf32>
    %cst_22 = arith.constant 1.000000e-01 : f32
    %51 = vector.broadcast %cst_22 : f32 to vector<256x16xf32>
    %52 = arith.mulf %51, %48 : vector<256x16xf32>
    %53 = arith.select %50, %48, %52 : vector<256x16xi1>, vector<256x16xf32>
    %54 = vector.shape_cast %53 : vector<256x16xf32> to vector<16x16x16xf32>
    %55 = arith.truncf %54 : vector<16x16x16xf32> to vector<16x16x16xbf16>
    %cst_23 = arith.constant 0.000000e+00 : bf16
    %56 = vector.broadcast %cst_23 : bf16 to vector<1x16x16xbf16>
    %cst_24 = arith.constant 0.000000e+00 : bf16
    %57 = vector.broadcast %cst_24 : bf16 to vector<18x1x16xbf16>
    %58 = tpu.concatenate %56, %55, %56 in 0 : vector<1x16x16xbf16>, vector<16x16x16xbf16>, vector<1x16x16xbf16> -> vector<18x16x16xbf16>
    %59 = tpu.concatenate %57, %58, %57 in 1 : vector<18x1x16xbf16>, vector<18x16x16xbf16>, vector<18x1x16xbf16> -> vector<18x18x16xbf16>
    %60 = vector.extract_strided_slice %59 {offsets = [0, 0, 0], sizes = [18, 16, 16], strides = [1, 1, 1]} : vector<18x18x16xbf16> to vector<18x16x16xbf16>
    %61 = vector.extract_strided_slice %59 {offsets = [0, 1, 0], sizes = [18, 16, 16], strides = [1, 1, 1]} : vector<18x18x16xbf16> to vector<18x16x16xbf16>
    %62 = vector.extract_strided_slice %59 {offsets = [0, 2, 0], sizes = [18, 16, 16], strides = [1, 1, 1]} : vector<18x18x16xbf16> to vector<18x16x16xbf16>
    %63 = tpu.concatenate %60, %61, %62 in 2 : vector<18x16x16xbf16>, vector<18x16x16xbf16>, vector<18x16x16xbf16> -> vector<18x16x48xbf16>
    %cst_25 = arith.constant 0.000000e+00 : f32
    %64 = vector.broadcast %cst_25 : f32 to vector<256x16xf32>
    %65 = vector.extract_strided_slice %63 {offsets = [0, 0, 0], sizes = [16, 16, 48], strides = [1, 1, 1]} : vector<18x16x48xbf16> to vector<16x16x48xbf16>
    %66 = vector.shape_cast %65 : vector<16x16x48xbf16> to vector<256x48xbf16>
    %c0_26 = arith.constant 0 : index
    %c0_27 = arith.constant 0 : index
    %c0_28 = arith.constant 0 : index
    %67 = vector.load %arg3[%c0_26, %c0_27, %c0_28] : memref<3x48x16xbf16, #tpu.memory_space<vmem>>, vector<1x48x16xbf16>
    %68 = vector.shape_cast %67 : vector<1x48x16xbf16> to vector<48x16xbf16>
    %cst_29 = arith.constant dense<0.000000e+00> : vector<256x16xf32>
    %69 = tpu.matmul %66, %68, %cst_29 {dimension_numbers = #tpu.dot_dimension_numbers<[1], [0], [0], [1], [0, 0, 1, 1], [], []>} : vector<256x48xbf16>, vector<48x16xbf16>, vector<256x16xf32> -> vector<256x16xf32>
    %70 = arith.addf %64, %69 : vector<256x16xf32>
    %71 = vector.extract_strided_slice %63 {offsets = [1, 0, 0], sizes = [16, 16, 48], strides = [1, 1, 1]} : vector<18x16x48xbf16> to vector<16x16x48xbf16>
    %72 = vector.shape_cast %71 : vector<16x16x48xbf16> to vector<256x48xbf16>
    %c1_30 = arith.constant 1 : index
    %c0_31 = arith.constant 0 : index
    %c0_32 = arith.constant 0 : index
    %73 = vector.load %arg3[%c1_30, %c0_31, %c0_32] : memref<3x48x16xbf16, #tpu.memory_space<vmem>>, vector<1x48x16xbf16>
    %74 = vector.shape_cast %73 : vector<1x48x16xbf16> to vector<48x16xbf16>
    %cst_33 = arith.constant dense<0.000000e+00> : vector<256x16xf32>
    %75 = tpu.matmul %72, %74, %cst_33 {dimension_numbers = #tpu.dot_dimension_numbers<[1], [0], [0], [1], [0, 0, 1, 1], [], []>} : vector<256x48xbf16>, vector<48x16xbf16>, vector<256x16xf32> -> vector<256x16xf32>
    %76 = arith.addf %70, %75 : vector<256x16xf32>
    %77 = vector.extract_strided_slice %63 {offsets = [2, 0, 0], sizes = [16, 16, 48], strides = [1, 1, 1]} : vector<18x16x48xbf16> to vector<16x16x48xbf16>
    %78 = vector.shape_cast %77 : vector<16x16x48xbf16> to vector<256x48xbf16>
    %c2_34 = arith.constant 2 : index
    %c0_35 = arith.constant 0 : index
    %c0_36 = arith.constant 0 : index
    %79 = vector.load %arg3[%c2_34, %c0_35, %c0_36] : memref<3x48x16xbf16, #tpu.memory_space<vmem>>, vector<1x48x16xbf16>
    %80 = vector.shape_cast %79 : vector<1x48x16xbf16> to vector<48x16xbf16>
    %cst_37 = arith.constant dense<0.000000e+00> : vector<256x16xf32>
    %81 = tpu.matmul %78, %80, %cst_37 {dimension_numbers = #tpu.dot_dimension_numbers<[1], [0], [0], [1], [0, 0, 1, 1], [], []>} : vector<256x48xbf16>, vector<48x16xbf16>, vector<256x16xf32> -> vector<256x16xf32>
    %82 = arith.addf %76, %81 : vector<256x16xf32>
    %cst_38 = arith.constant dense<0.000000e+00> : vector<16xf32>
    %83 = vector.multi_reduction <add>, %82, %cst_38 [0] : vector<256x16xf32> to vector<16xf32>
    %84 = vector.shape_cast %83 : vector<16xf32> to vector<1x16xf32>
    %cst_39 = arith.constant 2.560000e+02 : f32
    %85 = vector.broadcast %cst_39 : f32 to vector<1x16xf32>
    %86 = arith.divf %84, %85 : vector<1x16xf32>
    %87 = arith.mulf %82, %82 : vector<256x16xf32>
    %cst_40 = arith.constant dense<0.000000e+00> : vector<16xf32>
    %88 = vector.multi_reduction <add>, %87, %cst_40 [0] : vector<256x16xf32> to vector<16xf32>
    %89 = vector.shape_cast %88 : vector<16xf32> to vector<1x16xf32>
    %cst_41 = arith.constant 2.560000e+02 : f32
    %90 = vector.broadcast %cst_41 : f32 to vector<1x16xf32>
    %91 = arith.divf %89, %90 : vector<1x16xf32>
    %92 = arith.mulf %86, %86 : vector<1x16xf32>
    %93 = arith.subf %91, %92 : vector<1x16xf32>
    %cst_42 = arith.constant 0.000000e+00 : f32
    %94 = vector.broadcast %cst_42 : f32 to vector<1x16xf32>
    %95 = arith.maximumf %93, %94 : vector<1x16xf32>
    %96 = vector.broadcast %86 : vector<1x16xf32> to vector<256x16xf32>
    %97 = arith.subf %82, %96 : vector<256x16xf32>
    %cst_43 = arith.constant 9.99999974E-6 : f32
    %98 = vector.broadcast %cst_43 : f32 to vector<1x16xf32>
    %99 = arith.addf %95, %98 : vector<1x16xf32>
    %100 = math.rsqrt %99 : vector<1x16xf32>
    %101 = vector.broadcast %100 : vector<1x16xf32> to vector<256x16xf32>
    %102 = arith.mulf %97, %101 : vector<256x16xf32>
    %cst_44 = arith.constant 0.000000e+00 : f32
    %103 = vector.broadcast %cst_44 : f32 to vector<256x16xf32>
    %104 = arith.cmpf oge, %102, %103 : vector<256x16xf32>
    %cst_45 = arith.constant 1.000000e-01 : f32
    %105 = vector.broadcast %cst_45 : f32 to vector<256x16xf32>
    %106 = arith.mulf %105, %102 : vector<256x16xf32>
    %107 = arith.select %104, %102, %106 : vector<256x16xi1>, vector<256x16xf32>
    %108 = vector.shape_cast %107 : vector<256x16xf32> to vector<16x16x16xf32>
    %c0_46 = arith.constant 0 : index
    %c0_47 = arith.constant 0 : index
    %c0_48 = arith.constant 0 : index
    %c0_49 = arith.constant 0 : index
    %109 = vector.load %arg4[%c0_46, %c0_47, %c0_48, %c0_49] : memref<1x16x16x16xf32, #tpu.memory_space<vmem>>, vector<1x16x16x16xf32>
    %110 = vector.shape_cast %109 : vector<1x16x16x16xf32> to vector<16x16x16xf32>
    %111 = vector.shape_cast %108 : vector<16x16x16xf32> to vector<1x16x16x16xf32>
    tpu.vector_store %arg4[%c0_46, %c0_47, %c0_48, %c0_49], %111 {strides = array<i32>} : memref<1x16x16x16xf32, #tpu.memory_space<vmem>>, vector<1x16x16x16xf32>,
    return
  }
  func.func @transform_0(%arg0: i32) -> (i32, i32, i32, i32) {
    %c0_i32 = arith.constant 0 : i32
    %c0_i32_0 = arith.constant 0 : i32
    %c0_i32_1 = arith.constant 0 : i32
    %c0_i32_2 = arith.constant 0 : i32
    return %arg0, %c0_i32, %c0_i32_0, %c0_i32_1 : i32, i32, i32, i32
  }
  func.func @transform_1(%arg0: i32) -> (i32, i32, i32) {
    %c0_i32 = arith.constant 0 : i32
    %c0_i32_0 = arith.constant 0 : i32
    %c0_i32_1 = arith.constant 0 : i32
    %c0_i32_2 = arith.constant 0 : i32
    return %c0_i32, %c0_i32_0, %c0_i32_1 : i32, i32, i32
  }
  func.func @transform_2(%arg0: i32) -> (i32, i32, i32) {
    %c0_i32 = arith.constant 0 : i32
    %c0_i32_0 = arith.constant 0 : i32
    %c0_i32_1 = arith.constant 0 : i32
    %c0_i32_2 = arith.constant 0 : i32
    return %c0_i32, %c0_i32_0, %c0_i32_1 : i32, i32, i32
  }
  func.func @transform_3(%arg0: i32) -> (i32, i32, i32, i32) {
    %c0_i32 = arith.constant 0 : i32
    %c0_i32_0 = arith.constant 0 : i32
    %c0_i32_1 = arith.constant 0 : i32
    %c0_i32_2 = arith.constant 0 : i32
    return %arg0, %c0_i32, %c0_i32_0, %c0_i32_1 : i32, i32, i32, i32
  }
}

</mosaic_0001>

<llo_original>
// kernel: tile.8
$region0: #{tile.8}
  #allocation0 [shape = 's32[1]{0}', space=sflag, size = 0x4, scoped, tag = 'scoped memory for tile.8']
  %s0 = inlined_call_operand.vmem [shape: f32[16], index: 0, kind: input, shape index: {}]
  %s1 = inlined_call_operand.vmem [shape: f32[4,16], index: 1, kind: output, shape index: {}]
  // Predicated region
  $region2: #{tile.8} parent=0 // pred_check
    _
  $region3: #{tile.8} parent=0 // pred_check_branch
    %3 = sbr.rel (0) target = $region5
  $region4: #{tile.8} parent=0 // pred_region
    _
  $region5: #{tile.8} parent=0 // pred_fallthru
    _
  %v4 = vld [vmem:[%s0] ss:$0 sm:$0xff]
  %5 = vst [vmem:[%s1] sm:$0xf] %v4

// kernel: tile.9
$region0: #{tile.9}
  %s0 = inlined_call_operand.vmem [shape: f32[4,16], index: 0, kind: input, shape index: {}]
  %s1 = inlined_call_operand.vmem [shape: f32[1,64], index: 1, kind: output, shape index: {}]
  $region1: #{tile.9} parent=0
    #allocation0 [shape = 'u8[4096]{0}', space=vmem, size = 0x1000, scoped, tag = 'scoped mem for output reshape']
    #allocation1 [shape = 'u8[4096]{0}', space=vmem, size = 0x1000, scoped, tag = 'scoped mem for input reshape']
    %s3 = sshllo.u32 0, 4
    %v4 = vld [vmem:[%s0] sm:%s3]
    %5 = vst [vmem:[#allocation1] sm:%s3] %v4
    %v6 = vld [vmem:[#allocation1] sm:$0x1]
    %vm7 = vcmask 130048
    %8 = vst.msk [vmem:[#allocation0] sm:$0x1] %vm7, %v6
    %s9 = scalar_lea.vmem [#allocation1], 3
    %v10 = vld [vmem:[%s9] sm:$0x1]
    %11 = vrot.lane.b32.xlu0 %v10, 48
    %v12 = vpop.permute.xlu0 %11
    %vm13 = vcmask 523648
    %14 = vst.msk [vmem:[#allocation0] sm:$0x1] %vm13, %v12
    %s15 = scalar_lea.vmem [#allocation1], 2
    %v16 = vld [vmem:[%s15] sm:$0x1]
    %17 = vrot.lane.b32.xlu0 %v16, 32
    %v18 = vpop.permute.xlu0 %17
    %vm19 = vcmask 392448
    %20 = vst.msk [vmem:[#allocation0] sm:$0x1] %vm19, %v18
    %s21 = scalar_lea.vmem [#allocation1], 1
    %v22 = vld [vmem:[%s21] sm:$0x1]
    %23 = vrot.lane.b32.xlu0 %v22, 16
    %v24 = vpop.permute.xlu0 %23
    %vm25 = vcmask 261248
    %26 = vst.msk [vmem:[#allocation0] sm:$0x1] %vm25, %v24
    %s28 = sshllo.u32 0, 1
    %v30 = vld [vmem:[#allocation0] sm:%s28]
    %s31 = sshllo.u32 0, 1
    %32 = vst [vmem:[%s1] sm:%s31] %v30

// kernel: upsum_pallas.2
$region0: #{upsum_pallas.2}
  #allocation0 [shape = 'u32[]', space=smem, size = 0x4, offset = 0x4, fixed_abs, tag = 'smem constant byte address 0x4 - core index']
  #allocation1 [shape = 'u32[144,128]{1,0:T(1,128)}', space=vmem, size = 0x12000, scoped, tag = 'internal scratch']
  %s0 = inlined_call_operand.vmem [shape: bf16[2,8,8,16], index: 0, kind: input, shape index: {}]
  %s1 = inlined_call_operand.vmem [shape: bf16[2,8,8,32], index: 1, kind: input, shape index: {}]
  %s2 = inlined_call_operand.vmem [shape: bf16[16,64], index: 2, kind: input, shape index: {}]
  %s3 = inlined_call_operand.vmem [shape: bf16[32,64], index: 3, kind: input, shape index: {}]
  %s4 = inlined_call_operand.vmem [shape: f32[1,64], index: 4, kind: input, shape index: {}]
  %s5 = inlined_call_operand.vmem [shape: bf16[2,8,8,64], index: 5, kind: output, shape index: {}]
  %s6 = sld [smem:[#allocation0]]
  $region53: #{upsum_pallas.2} parent=0
    _
  %s8 = ssub.s32 1, %s6
  %s9 = scalar_select 0, %s8, %s6
  loop: start=0, step=1, limit=4
  $region2: #{upsum_pallas.2} parent=0 // loop_pre_header
    _
  $region3: #{upsum_pallas.2} parent=0 // loop_header
    %s11 = sphi 0, %s15
    %p12 = scmp.ge.s32.totalorder %s11, 4
    %s21 = sphi 0, %s23
    %s24 = sphi 0, %s21
    %s25 = sphi 0, %s24
    %s41 = sphi 0, %s25
    %s47 = sphi 0, %s49
    %s50 = sphi 0, %s47
    %s51 = sphi 0, %s50
    %s67 = sphi 0, %s51
    %s71 = sphi 0, %s71
    %s73 = sphi 0, %s71
    %s74 = sphi 0, %s73
    %s88 = sphi 0, %s74
    %s92 = sphi 0, %s92
    %s94 = sphi 0, %s92
    %s95 = sphi 0, %s94
    %s109 = sphi 0, %s95
    %s113 = sphi 0, %s113
    %s115 = sphi 0, %s113
    %s116 = sphi 0, %s115
    %s130 = sphi 0, %s116
    %s136 = sphi 0, %s138
    %s139 = sphi 0, %s136
    %s140 = sphi 0, %s139
    %s156 = sphi 0, %s140
  $region4: #{upsum_pallas.2} parent=0 // loop_header_branch
    %14 = sbr.rel (%p12) target = $region8
  $region5: #{upsum_pallas.2} parent=0 // loop_body
    %s16 = ssub.s32 %s11, 1
    %s17 = ssub.s32 %s11, 2
    %s18 = sadd.s32 %s11, 1
    %s19 = ssub.s32 %s11, %s18
    %p20 = scmp.eq.s32.totalorder %s19, 0
    %s22 = sadd.s32 %s21, 1
    %s23 = scalar_select %p20, %s21, %s22
    %p26 = pneg %p20
    %p27 = scmp.eq.s32.totalorder %s11, 1
    %p28 = por %p26, %p27
    %p29 = scmp.ne.s32.totalorder %s21, %s24
    %p30 = scmp.eq.s32.totalorder %s11, 0
    %p31 = por %p29, %p30
    %p32 = scmp.ne.s32.totalorder %s21, %s24
    %p33 = scmp.eq.s32.totalorder %s16, 1
    %p34 = por %p32, %p33
    %p35 = scmp.ne.s32.totalorder %s24, %s25
    %p36 = scmp.eq.s32.totalorder %s16, 0
    %p37 = por %p35, %p36
    %p38 = scmp.ne.s32.totalorder %s24, %s25
    %p39 = scmp.eq.s32.totalorder %s17, 1
    %p40 = por %p38, %p39
    %p42 = scmp.ne.s32.totalorder %s25, %s41
    %p43 = scmp.eq.s32.totalorder %s17, 0
    %p44 = por %p42, %p43
    %s45 = ssub.s32 %s11, %s18
    %p46 = scmp.eq.s32.totalorder %s45, 0
    %s48 = sadd.s32 %s47, 1
    %s49 = scalar_select %p46, %s47, %s48
    %p52 = pneg %p46
    %p53 = scmp.eq.s32.totalorder %s11, 1
    %p54 = por %p52, %p53
    %p55 = scmp.ne.s32.totalorder %s47, %s50
    %p56 = scmp.eq.s32.totalorder %s11, 0
    %p57 = por %p55, %p56
    %p58 = scmp.ne.s32.totalorder %s47, %s50
    %p59 = scmp.eq.s32.totalorder %s16, 1
    %p60 = por %p58, %p59
    %p61 = scmp.ne.s32.totalorder %s50, %s51
    %p62 = scmp.eq.s32.totalorder %s16, 0
    %p63 = por %p61, %p62
    %p64 = scmp.ne.s32.totalorder %s50, %s51
    %p65 = scmp.eq.s32.totalorder %s17, 1
    %p66 = por %p64, %p65
    %p68 = scmp.ne.s32.totalorder %s51, %s67
    %p69 = scmp.eq.s32.totalorder %s17, 0
    %p70 = por %p68, %p69
    %s72 = sadd.s32 %s71, 1
    %p75 = scmp.eq.s32.totalorder %s11, 1
    %p76 = scmp.ne.s32.totalorder %s71, %s73
    %p77 = scmp.eq.s32.totalorder %s11, 0
    %p78 = por %p76, %p77
    %p79 = scmp.ne.s32.totalorder %s71, %s73
    %p80 = scmp.eq.s32.totalorder %s16, 1
    %p81 = por %p79, %p80
    %p82 = scmp.ne.s32.totalorder %s73, %s74
    %p83 = scmp.eq.s32.totalorder %s16, 0
    %p84 = por %p82, %p83
    %p85 = scmp.ne.s32.totalorder %s73, %s74
    %p86 = scmp.eq.s32.totalorder %s17, 1
    %p87 = por %p85, %p86
    %p89 = scmp.ne.s32.totalorder %s74, %s88
    %p90 = scmp.eq.s32.totalorder %s17, 0
    %p91 = por %p89, %p90
    %s93 = sadd.s32 %s92, 1
    %p96 = scmp.eq.s32.totalorder %s11, 1
    %p97 = scmp.ne.s32.totalorder %s92, %s94
    %p98 = scmp.eq.s32.totalorder %s11, 0
    %p99 = por %p97, %p98
    %p100 = scmp.ne.s32.totalorder %s92, %s94
    %p101 = scmp.eq.s32.totalorder %s16, 1
    %p102 = por %p100, %p101
    %p103 = scmp.ne.s32.totalorder %s94, %s95
    %p104 = scmp.eq.s32.totalorder %s16, 0
    %p105 = por %p103, %p104
    %p106 = scmp.ne.s32.totalorder %s94, %s95
    %p107 = scmp.eq.s32.totalorder %s17, 1
    %p108 = por %p106, %p107
    %p110 = scmp.ne.s32.totalorder %s95, %s109
    %p111 = scmp.eq.s32.totalorder %s17, 0
    %p112 = por %p110, %p111
    %s114 = sadd.s32 %s113, 1
    %p117 = scmp.eq.s32.totalorder %s11, 1
    %p118 = scmp.ne.s32.totalorder %s113, %s115
    %p119 = scmp.eq.s32.totalorder %s11, 0
    %p120 = por %p118, %p119
    %p121 = scmp.ne.s32.totalorder %s113, %s115
    %p122 = scmp.eq.s32.totalorder %s16, 1
    %p123 = por %p121, %p122
    %p124 = scmp.ne.s32.totalorder %s115, %s116
    %p125 = scmp.eq.s32.totalorder %s16, 0
    %p126 = por %p124, %p125
    %p127 = scmp.ne.s32.totalorder %s115, %s116
    %p128 = scmp.eq.s32.totalorder %s17, 1
    %p129 = por %p127, %p128
    %p131 = scmp.ne.s32.totalorder %s116, %s130
    %p132 = scmp.eq.s32.totalorder %s17, 0
    %p133 = por %p131, %p132
    %s134 = ssub.s32 %s11, %s18
    %p135 = scmp.eq.s32.totalorder %s134, 0
    %s137 = sadd.s32 %s136, 1
    %s138 = scalar_select %p135, %s136, %s137
    %p141 = pneg %p135
    %p142 = scmp.eq.s32.totalorder %s11, 1
    %p143 = por %p141, %p142
    %p144 = scmp.ne.s32.totalorder %s136, %s139
    %p145 = scmp.eq.s32.totalorder %s11, 0
    %p146 = por %p144, %p145
    %p147 = scmp.ne.s32.totalorder %s136, %s139
    %p148 = scmp.eq.s32.totalorder %s16, 1
    %p149 = por %p147, %p148
    %p150 = scmp.ne.s32.totalorder %s139, %s140
    %p151 = scmp.eq.s32.totalorder %s16, 0
    %p152 = por %p150, %p151
    %p153 = scmp.ne.s32.totalorder %s139, %s140
    %p154 = scmp.eq.s32.totalorder %s17, 1
    %p155 = por %p153, %p154
    %p157 = scmp.ne.s32.totalorder %s140, %s156
    %p158 = scmp.eq.s32.totalorder %s17, 0
    %p159 = por %p157, %p158
    %p160 = scmp.le.s32.totalorder 1, %s11
    %p161 = scmp.lt.s32.totalorder %s11, 3
    %p162 = pnand %p160, %p161
    %p163 = pneg %p162
    // Predicated region
    $region9: #{upsum_pallas.2} parent=5 // pred_check
      _
    $region10: #{upsum_pallas.2} parent=5 // pred_check_branch
      %165 = sbr.rel (%p162) target = $region12
    $region11: #{upsum_pallas.2} parent=5 // pred_region
      %s166 = ssub.s32 %s11, 1
      // Predicated region
      $region13: #{upsum_pallas.2} parent=11 // pred_check
        %p167 = pneg %p84
      $region14: #{upsum_pallas.2} parent=11 // pred_check_branch
        %169 = sbr.rel (%p167) target = $region16
      $region15: #{upsum_pallas.2} parent=11 // pred_region
        _
      $region16: #{upsum_pallas.2} parent=11 // pred_fallthru
        _
      // Predicated region
      $region17: #{upsum_pallas.2} parent=11 // pred_check
        %p170 = pneg %p105
      $region18: #{upsum_pallas.2} parent=11 // pred_check_branch
        %172 = sbr.rel (%p170) target = $region20
      $region19: #{upsum_pallas.2} parent=11 // pred_region
        _
      $region20: #{upsum_pallas.2} parent=11 // pred_fallthru
        _
      // Predicated region
      $region21: #{upsum_pallas.2} parent=11 // pred_check
        %p173 = pneg %p126
      $region22: #{upsum_pallas.2} parent=11 // pred_check_branch
        %175 = sbr.rel (%p173) target = $region24
      $region23: #{upsum_pallas.2} parent=11 // pred_region
        _
      $region24: #{upsum_pallas.2} parent=11 // pred_fallthru
        _
    $region12: #{upsum_pallas.2} parent=5 // pred_fallthru
      _
    %p176 = scmp.lt.s32.totalorder %s11, 2
    // Predicated region
    $region25: #{upsum_pallas.2} parent=5 // pred_check
      %p177 = pneg %p176
    $region26: #{upsum_pallas.2} parent=5 // pred_check_branch
      %179 = sbr.rel (%p177) target = $region28
    $region27: #{upsum_pallas.2} parent=5 // pred_region
      // Predicated region
      $region29: #{upsum_pallas.2} parent=27 // pred_check
        %p180 = pneg %p31
      $region30: #{upsum_pallas.2} parent=27 // pred_check_branch
        %182 = sbr.rel (%p180) target = $region32
      $region31: #{upsum_pallas.2} parent=27 // pred_region
        %p183 = scmp.lt.s32.totalorder %s11, 1
        %s184 = scalar_select %p183, %s11, 1
        %s185 = smul.addr %s184, 8
        %s186 = smul.addr %s185, 4
        %s187 = scalar_lea.vmem %s0, %s186
      $region32: #{upsum_pallas.2} parent=27 // pred_fallthru
        _
      // Predicated region
      $region33: #{upsum_pallas.2} parent=27 // pred_check
        %p188 = pneg %p57
      $region34: #{upsum_pallas.2} parent=27 // pred_check_branch
        %190 = sbr.rel (%p188) target = $region36
      $region35: #{upsum_pallas.2} parent=27 // pred_region
        %p191 = scmp.lt.s32.totalorder %s11, 1
        %s192 = scalar_select %p191, %s11, 1
        %s193 = smul.addr %s192, 8
        %s194 = smul.addr %s193, 4
        %s195 = scalar_lea.vmem %s1, %s194
      $region36: #{upsum_pallas.2} parent=27 // pred_fallthru
        _
    $region28: #{upsum_pallas.2} parent=5 // pred_fallthru
      _
    %p196 = scmp.le.s32.totalorder 1, %s11
    %p197 = scmp.lt.s32.totalorder %s11, 3
    %p198 = pnand %p196, %p197
    %p199 = pneg %p198
    // Predicated region
    $region37: #{upsum_pallas.2} parent=5 // pred_check
      _
    $region38: #{upsum_pallas.2} parent=5 // pred_check_branch
      %201 = sbr.rel (%p198) target = $region40
    $region39: #{upsum_pallas.2} parent=5 // pred_region
      %s202 = ssub.s32 %s11, 1
      %p203 = scmp.lt.s32.totalorder %s16, 1
      %s204 = scalar_select %p203, %s16, 1
      %s205 = smul.addr %s204, 8
      %s206 = smul.addr %s205, 4
      %s207 = scalar_lea.vmem %s0, %s206
      %p208 = pneg %p37
      %p209 = pneg %p34
      %p210 = scmp.lt.s32.totalorder %s16, 1
      %s211 = scalar_select %p210, %s16, 1
      %s212 = smul.addr %s211, 8
      %s213 = smul.addr %s212, 4
      %s214 = scalar_lea.vmem %s1, %s213
      %p215 = pneg %p63
      %p216 = pneg %p60
      %p217 = pneg %p84
      %p218 = pneg %p81
      %p219 = pneg %p105
      %p220 = pneg %p102
      %p221 = pneg %p126
      %p222 = pneg %p123
      %p223 = pneg %p152
      %p224 = pneg %p149
      %p225 = scmp.lt.s32.totalorder %s16, 1
      %s226 = scalar_select %p225, %s16, 1
      %s227 = smul.addr %s226, 8
      %s228 = smul.addr %s227, 4
      %s229 = scalar_lea.vmem %s5, %s228
      %p230 = scmp.lt.s32.totalorder %s16, 1
      %s231 = scalar_select %p230, %s16, 1
      %s232 = smul.addr %s231, 8
      %s233 = smul.addr %s232, 4
      %s234 = scalar_lea.vmem %s0, %s233
      %p235 = scmp.lt.s32.totalorder %s16, 1
      %s236 = scalar_select %p235, %s16, 1
      %s237 = smul.addr %s236, 8
      %s238 = smul.addr %s237, 4
      %s239 = scalar_lea.vmem %s1, %s238
      %p240 = scmp.lt.s32.totalorder %s16, 1
      %s241 = scalar_select %p240, %s16, 1
      %s242 = smul.addr %s241, 8
      %s243 = smul.addr %s242, 4
      %s244 = scalar_lea.vmem %s5, %s243
      %v246 = vld [vmem:[%s234] sm:$0xf]
      %v247 = vld [vmem:[%s234 + $0x4] sm:$0xf]
      %v248 = vld [vmem:[%s234 + $0x8] sm:$0xf]
      %v249 = vld [vmem:[%s234 + $0xc] sm:$0xf]
      %v250 = vld [vmem:[%s234 + $0x10] sm:$0xf]
      %v251 = vld [vmem:[%s234 + $0x14] sm:$0xf]
      %v252 = vld [vmem:[%s234 + $0x18] sm:$0xf]
      %v253 = vld [vmem:[%s234 + $0x1c] sm:$0xf]
      %v254 = vld [vmem:[%s239] sm:$0xf]
      %v255 = vld [vmem:[%s239 + $0x4] sm:$0xf]
      %v256 = vld [vmem:[%s239 + $0x8] sm:$0xf]
      %v257 = vld [vmem:[%s239 + $0xc] sm:$0xf]
      %v258 = vld [vmem:[%s239 + $0x10] sm:$0xf]
      %v259 = vld [vmem:[%s239 + $0x14] sm:$0xf]
      %v260 = vld [vmem:[%s239 + $0x18] sm:$0xf]
      %v261 = vld [vmem:[%s239 + $0x1c] sm:$0xf]
      %v262 = vld [vmem:[%s2] sm:$0xf]
      %v263 = vld [vmem:[%s2 + $0x4] sm:$0xf]
      %v264 = vld [vmem:[%s3] sm:$0xf]
      %v265 = vld [vmem:[%s3 + $0x4] sm:$0xf]
      %v266 = vld [vmem:[%s3 + $0x8] sm:$0xf]
      %v267 = vld [vmem:[%s3 + $0xc] sm:$0xf]
      %v276 = vunpack.c.l.b16 %v254
      %v277 = vunpack.c.l.b16 %v255
      %v278 = vunpack.c.l.b16 %v256
      %v279 = vunpack.c.l.b16 %v257
      %v280 = vunpack.c.l.b16 %v258
      %v281 = vunpack.c.l.b16 %v259
      %v282 = vunpack.c.l.b16 %v260
      %v283 = vunpack.c.l.b16 %v261
      %v284 = vpack.c.b16 %v277, %v276
      %v285 = vpack.c.b16 %v279, %v278
      %v286 = vpack.c.b16 %v281, %v280
      %v287 = vpack.c.b16 %v283, %v282
      %v292 = vunpack.c.l.b16 %v264
      %v293 = vunpack.c.l.b16 %v265
      %v294 = vunpack.c.l.b16 %v266
      %v295 = vunpack.c.l.b16 %v267
      %v296 = vpack.c.b16 %v293, %v292
      %v297 = vpack.c.b16 %v295, %v294
      %vm300 = vcmask 261120
      %v302 = vsel %vm300, %v284, 0
      %v305 = vsel %vm300, %v285, 0
      %v308 = vsel %vm300, %v286, 0
      %v311 = vsel %vm300, %v287, 0
      %313 = vmatprep.subr.bf16.mxu0 0
      %314 = vmatpush1.bf16.msra.mxu0 %v296
      %315 = vmatprep.subr.bf16.mxu0 0
      %316 = vmatpush1.bf16.msra.mxu0 %v297
      %317 = vmatprep.subr.bf16.mxu0 0
      %318 = vmatpush1.bf16.msra.mxu0 0
      %319 = vmatprep.subr.bf16.mxu0 0
      %320 = vmatpush1.bf16.msra.mxu0 0
      %321 = vmatprep.subr.bf16.mxu0 0
      %322 = vmatpush1.bf16.msra.mxu0 0
      %323 = vmatprep.subr.bf16.mxu0 0
      %324 = vmatpush1.bf16.msra.mxu0 0
      %325 = vmatprep.subr.bf16.mxu0 0
      %326 = vmatpush1.bf16.msra.mxu0 0
      %327 = vmatprep.subr.bf16.mxu0 0
      %328 = vmatpush1.bf16.msra.mxu0 0
      %329 = vmatprep.subr.bf16.mxu0 0
      %330 = vmatpush1.bf16.msra.mxu0 0
      %331 = vmatprep.subr.bf16.mxu0 0
      %332 = vmatpush1.bf16.msra.mxu0 0
      %333 = vmatprep.subr.bf16.mxu0 0
      %334 = vmatpush1.bf16.msra.mxu0 0
      %335 = vmatprep.subr.bf16.mxu0 0
      %336 = vmatpush1.bf16.msra.mxu0 0
      %337 = vmatprep.subr.bf16.mxu0 0
      %338 = vmatpush1.bf16.msra.mxu0 0
      %339 = vmatprep.subr.bf16.mxu0 0
      %340 = vmatpush1.bf16.msra.mxu0 0
      %341 = vmatprep.subr.bf16.mxu0 0
      %342 = vmatpush1.bf16.msra.mxu0 0
      %343 = vmatprep.subr.bf16.mxu0 0
      %344 = vmatpush1.bf16.msra.mxu0 0
      %345 = vmatprep.mubr.bf16.mxu0 0
      %346 = vmatmul.mubr.bf16.gmra.mrb[0].mxu0 %v302
      %v347 = vpop.f32.mrb[0].mxu0
      %v348 = vadd.f32 0.0, %v347
      %v349 = vpop.f32.mrb[0].mxu0
      %v350 = vpop.f32.mrb[0].mxu0
      %v351 = vadd.f32 0.0, %v350
      %v352 = vpop.f32.mrb[0].mxu0
      %353 = vmatprep.mubr.bf16.mxu0 0
      %354 = vmatmul.mubr.bf16.gmra.mrb[0].mxu0 %v305
      %v355 = vpop.f32.mrb[0].mxu0
      %v356 = vadd.f32 0.0, %v355
      %v357 = vpop.f32.mrb[0].mxu0
      %v358 = vpop.f32.mrb[0].mxu0
      %v359 = vadd.f32 0.0, %v358
      %v360 = vpop.f32.mrb[0].mxu0
      %361 = vmatprep.mubr.bf16.mxu0 0
      %362 = vmatmul.mubr.bf16.gmra.mrb[0].mxu0 %v308
      %v363 = vpop.f32.mrb[0].mxu0
      %v364 = vadd.f32 0.0, %v363
      %v365 = vpop.f32.mrb[0].mxu0
      %v366 = vpop.f32.mrb[0].mxu0
      %v367 = vadd.f32 0.0, %v366
      %v368 = vpop.f32.mrb[0].mxu0
      %369 = vmatprep.mubr.bf16.mxu0 0
      %370 = vmatmul.mubr.bf16.gmra.mrb[0].mxu0 %v311
      %v371 = vpop.f32.mrb[0].mxu0
      %v372 = vadd.f32 0.0, %v371
      %v373 = vpop.f32.mrb[0].mxu0
      %v374 = vpop.f32.mrb[0].mxu0
      %v375 = vadd.f32 0.0, %v374
      %v376 = vpop.f32.mrb[0].mxu0
      %377 = vdwg.mxu0
      %v386 = vunpack.c.l.b16 %v246
      %v387 = vunpack.c.l.b16 %v247
      %v388 = vunpack.c.l.b16 %v248
      %v389 = vunpack.c.l.b16 %v249
      %v390 = vunpack.c.l.b16 %v250
      %v391 = vunpack.c.l.b16 %v251
      %v392 = vunpack.c.l.b16 %v252
      %v393 = vunpack.c.l.b16 %v253
      %v394 = vpack.c.b16 %v387, %v386
      %v395 = vpack.c.b16 %v389, %v388
      %v396 = vpack.c.b16 %v391, %v390
      %v397 = vpack.c.b16 %v393, %v392
      %v400 = vunpack.c.l.b16 %v262
      %v401 = vunpack.c.l.b16 %v263
      %v402 = vpack.c.b16 %v401, %v400
      %vm404 = vcmask 130048
      %v406 = vsel %vm404, %v394, 0
      %v409 = vsel %vm404, %v395, 0
      %v412 = vsel %vm404, %v396, 0
      %v415 = vsel %vm404, %v397, 0
      %417 = vmatprep.subr.bf16.mxu0 0
      %418 = vmatpush1.bf16.msra.mxu0 %v402
      %419 = vmatprep.subr.bf16.mxu0 0
      %420 = vmatpush1.bf16.msra.mxu0 0
      %421 = vmatprep.subr.bf16.mxu0 0
      %422 = vmatpush1.bf16.msra.mxu0 0
      %423 = vmatprep.subr.bf16.mxu0 0
      %424 = vmatpush1.bf16.msra.mxu0 0
      %425 = vmatprep.subr.bf16.mxu0 0
      %426 = vmatpush1.bf16.msra.mxu0 0
      %427 = vmatprep.subr.bf16.mxu0 0
      %428 = vmatpush1.bf16.msra.mxu0 0
      %429 = vmatprep.subr.bf16.mxu0 0
      %430 = vmatpush1.bf16.msra.mxu0 0
      %431 = vmatprep.subr.bf16.mxu0 0
      %432 = vmatpush1.bf16.msra.mxu0 0
      %433 = vmatprep.subr.bf16.mxu0 0
      %434 = vmatpush1.bf16.msra.mxu0 0
      %435 = vmatprep.subr.bf16.mxu0 0
      %436 = vmatpush1.bf16.msra.mxu0 0
      %437 = vmatprep.subr.bf16.mxu0 0
      %438 = vmatpush1.bf16.msra.mxu0 0
      %439 = vmatprep.subr.bf16.mxu0 0
      %440 = vmatpush1.bf16.msra.mxu0 0
      %441 = vmatprep.subr.bf16.mxu0 0
      %442 = vmatpush1.bf16.msra.mxu0 0
      %443 = vmatprep.subr.bf16.mxu0 0
      %444 = vmatpush1.bf16.msra.mxu0 0
      %445 = vmatprep.subr.bf16.mxu0 0
      %446 = vmatpush1.bf16.msra.mxu0 0
      %447 = vmatprep.subr.bf16.mxu0 0
      %448 = vmatpush1.bf16.msra.mxu0 0
      %449 = vmatprep.mubr.bf16.mxu0 0
      %450 = vmatmul.mubr.bf16.gmra.mrb[0].mxu0 %v406
      %v451 = vpop.f32.mrb[0].mxu0
      %v452 = vadd.f32 %v348, %v451
      %v453 = vpop.f32.mrb[0].mxu0
      %v454 = vpop.f32.mrb[0].mxu0
      %v455 = vadd.f32 %v351, %v454
      %v456 = vpop.f32.mrb[0].mxu0
      %457 = vmatprep.mubr.bf16.mxu0 0
      %458 = vmatmul.mubr.bf16.gmra.mrb[0].mxu0 %v409
      %v459 = vpop.f32.mrb[0].mxu0
      %v460 = vadd.f32 %v356, %v459
      %v461 = vpop.f32.mrb[0].mxu0
      %v462 = vpop.f32.mrb[0].mxu0
      %v463 = vadd.f32 %v359, %v462
      %v464 = vpop.f32.mrb[0].mxu0
      %465 = vmatprep.mubr.bf16.mxu0 0
      %466 = vmatmul.mubr.bf16.gmra.mrb[0].mxu0 %v412
      %v467 = vpop.f32.mrb[0].mxu0
      %v468 = vadd.f32 %v364, %v467
      %v469 = vpop.f32.mrb[0].mxu0
      %v470 = vpop.f32.mrb[0].mxu0
      %v471 = vadd.f32 %v367, %v470
      %v472 = vpop.f32.mrb[0].mxu0
      %473 = vmatprep.mubr.bf16.mxu0 0
      %474 = vmatmul.mubr.bf16.gmra.mrb[0].mxu0 %v415
      %v475 = vpop.f32.mrb[0].mxu0
      %v476 = vadd.f32 %v372, %v475
      %v477 = vpop.f32.mrb[0].mxu0
      %v478 = vpop.f32.mrb[0].mxu0
      %v479 = vadd.f32 %v375, %v478
      %v480 = vpop.f32.mrb[0].mxu0
      %481 = vdwg.mxu0
      %v482 = vld [vmem:[%s4] sm:$0x1]
      %v484 = vlaneseq
      %v485 = vshrl.u32 %v484, 7
      %v486 = vsub.s32 0, %v485
      %v487 = vrot.slane %v482, %v486
      %v489 = vadd.f32 %v452, %v487
      %v490 = vadd.f32 %v455, %v487
      %v491 = vadd.f32 %v460, %v487
      %v492 = vadd.f32 %v463, %v487
      %v493 = vadd.f32 %v468, %v487
      %v494 = vadd.f32 %v471, %v487
      %v495 = vadd.f32 %v476, %v487
      %v496 = vadd.f32 %v479, %v487
      %v497 = vpack.c.bf16 %v489, %v489
      %v498 = vpack.c.bf16 %v490, %v490
      %v499 = vpack.c.bf16 %v491, %v491
      %v500 = vpack.c.bf16 %v492, %v492
      %v501 = vpack.c.bf16 %v493, %v493
      %v502 = vpack.c.bf16 %v494, %v494
      %v503 = vpack.c.bf16 %v495, %v495
      %v504 = vpack.c.bf16 %v496, %v496
      %vm505 = vcmask 519168
      %506 = vst.msk [vmem:[%s244] sm:$0xf] %vm505, %v497
      %507 = vst.msk [vmem:[%s244 + $0x4] sm:$0xf] %vm505, %v498
      %508 = vst.msk [vmem:[%s244 + $0x8] sm:$0xf] %vm505, %v499
      %509 = vst.msk [vmem:[%s244 + $0xc] sm:$0xf] %vm505, %v500
      %510 = vst.msk [vmem:[%s244 + $0x10] sm:$0xf] %vm505, %v501
      %511 = vst.msk [vmem:[%s244 + $0x14] sm:$0xf] %vm505, %v502
      %512 = vst.msk [vmem:[%s244 + $0x18] sm:$0xf] %vm505, %v503
      %513 = vst.msk [vmem:[%s244 + $0x1c] sm:$0xf] %vm505, %v504
      %p514 = scmp.lt.s32.totalorder %s16, 1
      %s515 = scalar_select %p514, %s16, 1
      %s516 = smul.addr %s515, 8
      %s517 = smul.addr %s516, 4
      %s518 = scalar_lea.vmem %s5, %s517
      // Predicated region
      $region41: #{upsum_pallas.2} parent=39 // pred_check
        %p519 = pneg %p149
      $region42: #{upsum_pallas.2} parent=39 // pred_check_branch
        %521 = sbr.rel (%p519) target = $region44
      $region43: #{upsum_pallas.2} parent=39 // pred_region
        _
      $region44: #{upsum_pallas.2} parent=39 // pred_fallthru
        _
    $region40: #{upsum_pallas.2} parent=5 // pred_fallthru
      _
    %p522 = scmp.le.s32.totalorder 2, %s11
    // Predicated region
    $region45: #{upsum_pallas.2} parent=5 // pred_check
      %p523 = pneg %p522
    $region46: #{upsum_pallas.2} parent=5 // pred_check_branch
      %525 = sbr.rel (%p523) target = $region48
    $region47: #{upsum_pallas.2} parent=5 // pred_region
      %s526 = ssub.s32 %s11, 2
      // Predicated region
      $region49: #{upsum_pallas.2} parent=47 // pred_check
        %p527 = pneg %p155
      $region50: #{upsum_pallas.2} parent=47 // pred_check_branch
        %529 = sbr.rel (%p527) target = $region52
      $region51: #{upsum_pallas.2} parent=47 // pred_region
        %p530 = scmp.lt.s32.totalorder %s17, 1
        %s531 = scalar_select %p530, %s17, 1
        %s532 = smul.addr %s531, 8
        %s533 = smul.addr %s532, 4
        %s534 = scalar_lea.vmem %s5, %s533
      $region52: #{upsum_pallas.2} parent=47 // pred_fallthru
        _
    $region48: #{upsum_pallas.2} parent=5 // pred_fallthru
      _
  $region6: #{upsum_pallas.2} parent=0 // loop_footer
    %s15 = sadd.s32 1, %s11
  $region7: #{upsum_pallas.2} parent=0 // loop_footer_branch
    %10 = sbr.rel target = $region3
  $region8: #{upsum_pallas.2} parent=0 // loop_exit
    _

// kernel: upsum_pallas.3
$region0: #{upsum_pallas.3}
  #allocation0 [shape = 'u32[]', space=smem, size = 0x4, offset = 0x4, fixed_abs, tag = 'smem constant byte address 0x4 - core index']
  #allocation1 [shape = 'u32[144,128]{1,0:T(1,128)}', space=vmem, size = 0x12000, scoped, tag = 'internal scratch']
  %s0 = inlined_call_operand.vmem [shape: bf16[2,16,16,16], index: 0, kind: input, shape index: {}]
  %s1 = inlined_call_operand.vmem [shape: bf16[3,48,16], index: 1, kind: input, shape index: {}]
  %s2 = inlined_call_operand.vmem [shape: bf16[3,48,16], index: 2, kind: input, shape index: {}]
  %s3 = inlined_call_operand.vmem [shape: f32[2,16,16,16], index: 3, kind: output, shape index: {}]
  %s4 = sld [smem:[#allocation0]]
  $region45: #{upsum_pallas.3} parent=0
    _
  %s6 = ssub.s32 1, %s4
  %s7 = scalar_select 0, %s6, %s4
  loop: start=0, step=1, limit=4
  $region2: #{upsum_pallas.3} parent=0 // loop_pre_header
    _
  $region3: #{upsum_pallas.3} parent=0 // loop_header
    %s9 = sphi 0, %s13
    %p10 = scmp.ge.s32.totalorder %s9, 4
    %s19 = sphi 0, %s21
    %s22 = sphi 0, %s19
    %s23 = sphi 0, %s22
    %s39 = sphi 0, %s23
    %s43 = sphi 0, %s43
    %s45 = sphi 0, %s43
    %s46 = sphi 0, %s45
    %s60 = sphi 0, %s46
    %s64 = sphi 0, %s64
    %s66 = sphi 0, %s64
    %s67 = sphi 0, %s66
    %s81 = sphi 0, %s67
    %s87 = sphi 0, %s89
    %s90 = sphi 0, %s87
    %s91 = sphi 0, %s90
    %s107 = sphi 0, %s91
  $region4: #{upsum_pallas.3} parent=0 // loop_header_branch
    %12 = sbr.rel (%p10) target = $region8
  $region5: #{upsum_pallas.3} parent=0 // loop_body
    %s14 = ssub.s32 %s9, 1
    %s15 = ssub.s32 %s9, 2
    %s16 = sadd.s32 %s9, 1
    %s17 = ssub.s32 %s9, %s16
    %p18 = scmp.eq.s32.totalorder %s17, 0
    %s20 = sadd.s32 %s19, 1
    %s21 = scalar_select %p18, %s19, %s20
    %p24 = pneg %p18
    %p25 = scmp.eq.s32.totalorder %s9, 1
    %p26 = por %p24, %p25
    %p27 = scmp.ne.s32.totalorder %s19, %s22
    %p28 = scmp.eq.s32.totalorder %s9, 0
    %p29 = por %p27, %p28
    %p30 = scmp.ne.s32.totalorder %s19, %s22
    %p31 = scmp.eq.s32.totalorder %s14, 1
    %p32 = por %p30, %p31
    %p33 = scmp.ne.s32.totalorder %s22, %s23
    %p34 = scmp.eq.s32.totalorder %s14, 0
    %p35 = por %p33, %p34
    %p36 = scmp.ne.s32.totalorder %s22, %s23
    %p37 = scmp.eq.s32.totalorder %s15, 1
    %p38 = por %p36, %p37
    %p40 = scmp.ne.s32.totalorder %s23, %s39
    %p41 = scmp.eq.s32.totalorder %s15, 0
    %p42 = por %p40, %p41
    %s44 = sadd.s32 %s43, 1
    %p47 = scmp.eq.s32.totalorder %s9, 1
    %p48 = scmp.ne.s32.totalorder %s43, %s45
    %p49 = scmp.eq.s32.totalorder %s9, 0
    %p50 = por %p48, %p49
    %p51 = scmp.ne.s32.totalorder %s43, %s45
    %p52 = scmp.eq.s32.totalorder %s14, 1
    %p53 = por %p51, %p52
    %p54 = scmp.ne.s32.totalorder %s45, %s46
    %p55 = scmp.eq.s32.totalorder %s14, 0
    %p56 = por %p54, %p55
    %p57 = scmp.ne.s32.totalorder %s45, %s46
    %p58 = scmp.eq.s32.totalorder %s15, 1
    %p59 = por %p57, %p58
    %p61 = scmp.ne.s32.totalorder %s46, %s60
    %p62 = scmp.eq.s32.totalorder %s15, 0
    %p63 = por %p61, %p62
    %s65 = sadd.s32 %s64, 1
    %p68 = scmp.eq.s32.totalorder %s9, 1
    %p69 = scmp.ne.s32.totalorder %s64, %s66
    %p70 = scmp.eq.s32.totalorder %s9, 0
    %p71 = por %p69, %p70
    %p72 = scmp.ne.s32.totalorder %s64, %s66
    %p73 = scmp.eq.s32.totalorder %s14, 1
    %p74 = por %p72, %p73
    %p75 = scmp.ne.s32.totalorder %s66, %s67
    %p76 = scmp.eq.s32.totalorder %s14, 0
    %p77 = por %p75, %p76
    %p78 = scmp.ne.s32.totalorder %s66, %s67
    %p79 = scmp.eq.s32.totalorder %s15, 1
    %p80 = por %p78, %p79
    %p82 = scmp.ne.s32.totalorder %s67, %s81
    %p83 = scmp.eq.s32.totalorder %s15, 0
    %p84 = por %p82, %p83
    %s85 = ssub.s32 %s9, %s16
    %p86 = scmp.eq.s32.totalorder %s85, 0
    %s88 = sadd.s32 %s87, 1
    %s89 = scalar_select %p86, %s87, %s88
    %p92 = pneg %p86
    %p93 = scmp.eq.s32.totalorder %s9, 1
    %p94 = por %p92, %p93
    %p95 = scmp.ne.s32.totalorder %s87, %s90
    %p96 = scmp.eq.s32.totalorder %s9, 0
    %p97 = por %p95, %p96
    %p98 = scmp.ne.s32.totalorder %s87, %s90
    %p99 = scmp.eq.s32.totalorder %s14, 1
    %p100 = por %p98, %p99
    %p101 = scmp.ne.s32.totalorder %s90, %s91
    %p102 = scmp.eq.s32.totalorder %s14, 0
    %p103 = por %p101, %p102
    %p104 = scmp.ne.s32.totalorder %s90, %s91
    %p105 = scmp.eq.s32.totalorder %s15, 1
    %p106 = por %p104, %p105
    %p108 = scmp.ne.s32.totalorder %s91, %s107
    %p109 = scmp.eq.s32.totalorder %s15, 0
    %p110 = por %p108, %p109
    %p111 = scmp.le.s32.totalorder 1, %s9
    %p112 = scmp.lt.s32.totalorder %s9, 3
    %p113 = pnand %p111, %p112
    %p114 = pneg %p113
    // Predicated region
    $region9: #{upsum_pallas.3} parent=5 // pred_check
      _
    $region10: #{upsum_pallas.3} parent=5 // pred_check_branch
      %116 = sbr.rel (%p113) target = $region12
    $region11: #{upsum_pallas.3} parent=5 // pred_region
      %s117 = ssub.s32 %s9, 1
      // Predicated region
      $region13: #{upsum_pallas.3} parent=11 // pred_check
        %p118 = pneg %p56
      $region14: #{upsum_pallas.3} parent=11 // pred_check_branch
        %120 = sbr.rel (%p118) target = $region16
      $region15: #{upsum_pallas.3} parent=11 // pred_region
        _
      $region16: #{upsum_pallas.3} parent=11 // pred_fallthru
        _
      // Predicated region
      $region17: #{upsum_pallas.3} parent=11 // pred_check
        %p121 = pneg %p77
      $region18: #{upsum_pallas.3} parent=11 // pred_check_branch
        %123 = sbr.rel (%p121) target = $region20
      $region19: #{upsum_pallas.3} parent=11 // pred_region
        _
      $region20: #{upsum_pallas.3} parent=11 // pred_fallthru
        _
    $region12: #{upsum_pallas.3} parent=5 // pred_fallthru
      _
    %p124 = scmp.lt.s32.totalorder %s9, 2
    // Predicated region
    $region21: #{upsum_pallas.3} parent=5 // pred_check
      %p125 = pneg %p124
    $region22: #{upsum_pallas.3} parent=5 // pred_check_branch
      %127 = sbr.rel (%p125) target = $region24
    $region23: #{upsum_pallas.3} parent=5 // pred_region
      // Predicated region
      $region25: #{upsum_pallas.3} parent=23 // pred_check
        %p128 = pneg %p29
      $region26: #{upsum_pallas.3} parent=23 // pred_check_branch
        %130 = sbr.rel (%p128) target = $region28
      $region27: #{upsum_pallas.3} parent=23 // pred_region
        %p131 = scmp.lt.s32.totalorder %s9, 1
        %s132 = scalar_select %p131, %s9, 1
        %s133 = smul.addr %s132, 32
        %s134 = smul.addr %s133, 4
        %s135 = scalar_lea.vmem %s0, %s134
      $region28: #{upsum_pallas.3} parent=23 // pred_fallthru
        _
    $region24: #{upsum_pallas.3} parent=5 // pred_fallthru
      _
    %p136 = scmp.le.s32.totalorder 1, %s9
    %p137 = scmp.lt.s32.totalorder %s9, 3
    %p138 = pnand %p136, %p137
    %p139 = pneg %p138
    // Predicated region
    $region29: #{upsum_pallas.3} parent=5 // pred_check
      _
    $region30: #{upsum_pallas.3} parent=5 // pred_check_branch
      %141 = sbr.rel (%p138) target = $region32
    $region31: #{upsum_pallas.3} parent=5 // pred_region
      %s142 = ssub.s32 %s9, 1
      %p143 = scmp.lt.s32.totalorder %s14, 1
      %s144 = scalar_select %p143, %s14, 1
      %s145 = smul.addr %s144, 32
      %s146 = smul.addr %s145, 4
      %s147 = scalar_lea.vmem %s0, %s146
      %p148 = pneg %p35
      %p149 = pneg %p32
      %p150 = pneg %p56
      %p151 = pneg %p53
      %p152 = pneg %p77
      %p153 = pneg %p74
      %p154 = pneg %p103
      %p155 = pneg %p100
      %p156 = scmp.lt.s32.totalorder %s14, 1
      %s157 = scalar_select %p156, %s14, 1
      %s158 = smul.addr %s157, 32
      %s159 = smul.addr %s158, 8
      %s160 = scalar_lea.vmem %s3, %s159
      %p161 = scmp.lt.s32.totalorder %s14, 1
      %s162 = scalar_select %p161, %s14, 1
      %s163 = smul.addr %s162, 32
      %s164 = smul.addr %s163, 4
      %s165 = scalar_lea.vmem %s0, %s164
      %p166 = scmp.lt.s32.totalorder %s14, 1
      %s167 = scalar_select %p166, %s14, 1
      %s168 = smul.addr %s167, 32
      %s169 = smul.addr %s168, 8
      %s170 = scalar_lea.vmem %s3, %s169
      %v172 = vld [vmem:[%s165] sm:$0xf]
      %v173 = vld [vmem:[%s165 + $0x4] sm:$0xf]
      %v174 = vld [vmem:[%s165 + $0x8] sm:$0xf]
      %v175 = vld [vmem:[%s165 + $0xc] sm:$0xf]
      %v176 = vld [vmem:[%s165 + $0x10] sm:$0xf]
      %v177 = vld [vmem:[%s165 + $0x14] sm:$0xf]
      %v178 = vld [vmem:[%s165 + $0x18] sm:$0xf]
      %v179 = vld [vmem:[%s165 + $0x1c] sm:$0xf]
      %v180 = vld [vmem:[%s165 + $0x20] sm:$0xf]
      %v181 = vld [vmem:[%s165 + $0x24] sm:$0xf]
      %v182 = vld [vmem:[%s165 + $0x28] sm:$0xf]
      %v183 = vld [vmem:[%s165 + $0x2c] sm:$0xf]
      %v184 = vld [vmem:[%s165 + $0x30] sm:$0xf]
      %v185 = vld [vmem:[%s165 + $0x34] sm:$0xf]
      %v186 = vld [vmem:[%s165 + $0x38] sm:$0xf]
      %v187 = vld [vmem:[%s165 + $0x3c] sm:$0xf]
      %v188 = vld [vmem:[%s165 + $0x40] sm:$0xf]
      %v189 = vld [vmem:[%s165 + $0x44] sm:$0xf]
      %v190 = vld [vmem:[%s165 + $0x48] sm:$0xf]
      %v191 = vld [vmem:[%s165 + $0x4c] sm:$0xf]
      %v192 = vld [vmem:[%s165 + $0x50] sm:$0xf]
      %v193 = vld [vmem:[%s165 + $0x54] sm:$0xf]
      %v194 = vld [vmem:[%s165 + $0x58] sm:$0xf]
      %v195 = vld [vmem:[%s165 + $0x5c] sm:$0xf]
      %v196 = vld [vmem:[%s165 + $0x60] sm:$0xf]
      %v197 = vld [vmem:[%s165 + $0x64] sm:$0xf]
      %v198 = vld [vmem:[%s165 + $0x68] sm:$0xf]
      %v199 = vld [vmem:[%s165 + $0x6c] sm:$0xf]
      %v200 = vld [vmem:[%s165 + $0x70] sm:$0xf]
      %v201 = vld [vmem:[%s165 + $0x74] sm:$0xf]
      %v202 = vld [vmem:[%s165 + $0x78] sm:$0xf]
      %v203 = vld [vmem:[%s165 + $0x7c] sm:$0xf]
      %v236 = vunpack.c.l.b16 %v172
      %v237 = vunpack.c.l.b16 %v173
      %v238 = vunpack.c.l.b16 %v174
      %v239 = vunpack.c.l.b16 %v175
      %v240 = vunpack.c.l.b16 %v176
      %v241 = vunpack.c.l.b16 %v177
      %v242 = vunpack.c.l.b16 %v178
      %v243 = vunpack.c.l.b16 %v179
      %v244 = vunpack.c.l.b16 %v180
      %v245 = vunpack.c.l.b16 %v181
      %v246 = vunpack.c.l.b16 %v182
      %v247 = vunpack.c.l.b16 %v183
      %v248 = vunpack.c.l.b16 %v184
      %v249 = vunpack.c.l.b16 %v185
      %v250 = vunpack.c.l.b16 %v186
      %v251 = vunpack.c.l.b16 %v187
      %v252 = vunpack.c.l.b16 %v188
      %v253 = vunpack.c.l.b16 %v189
      %v254 = vunpack.c.l.b16 %v190
      %v255 = vunpack.c.l.b16 %v191
      %v256 = vunpack.c.l.b16 %v192
      %v257 = vunpack.c.l.b16 %v193
      %v258 = vunpack.c.l.b16 %v194
      %v259 = vunpack.c.l.b16 %v195
      %v260 = vunpack.c.l.b16 %v196
      %v261 = vunpack.c.l.b16 %v197
      %v262 = vunpack.c.l.b16 %v198
      %v263 = vunpack.c.l.b16 %v199
      %v264 = vunpack.c.l.b16 %v200
      %v265 = vunpack.c.l.b16 %v201
      %v266 = vunpack.c.l.b16 %v202
      %v267 = vunpack.c.l.b16 %v203
      %v268 = vpack.c.b16 %v237, %v236
      %v269 = vpack.c.b16 %v239, %v238
      %v270 = vpack.c.b16 %v241, %v240
      %v271 = vpack.c.b16 %v243, %v242
      %v272 = vpack.c.b16 %v245, %v244
      %v273 = vpack.c.b16 %v247, %v246
      %v274 = vpack.c.b16 %v249, %v248
      %v275 = vpack.c.b16 %v251, %v250
      %v276 = vpack.c.b16 %v253, %v252
      %v277 = vpack.c.b16 %v255, %v254
      %v278 = vpack.c.b16 %v257, %v256
      %v279 = vpack.c.b16 %v259, %v258
      %v280 = vpack.c.b16 %v261, %v260
      %v281 = vpack.c.b16 %v263, %v262
      %v282 = vpack.c.b16 %v265, %v264
      %v283 = vpack.c.b16 %v267, %v266
      %v285 = vshrl.u32 0, 16
      %v287 = vrot.slane %v285, 7
      %v288 = vshll.u32 0, 16
      %v290 = vor.u32 %v287, %v288
      %v292 = vshrl.u32 %v268, 16
      %v294 = vrot.slane %v292, 7
      %v295 = vshll.u32 %v268, 16
      %v297 = vor.u32 %v294, %v295
      %v299 = vshrl.u32 %v269, 16
      %v301 = vrot.slane %v299, 7
      %v302 = vshll.u32 %v269, 16
      %v304 = vor.u32 %v301, %v302
      %v306 = vshrl.u32 %v270, 16
      %v308 = vrot.slane %v306, 7
      %v309 = vshll.u32 %v270, 16
      %v311 = vor.u32 %v308, %v309
      %v313 = vshrl.u32 %v271, 16
      %v315 = vrot.slane %v313, 7
      %v316 = vshll.u32 %v271, 16
      %v318 = vor.u32 %v315, %v316
      %v320 = vshrl.u32 %v272, 16
      %v322 = vrot.slane %v320, 7
      %v323 = vshll.u32 %v272, 16
      %v325 = vor.u32 %v322, %v323
      %v327 = vshrl.u32 %v273, 16
      %v329 = vrot.slane %v327, 7
      %v330 = vshll.u32 %v273, 16
      %v332 = vor.u32 %v329, %v330
      %v334 = vshrl.u32 %v274, 16
      %v336 = vrot.slane %v334, 7
      %v337 = vshll.u32 %v274, 16
      %v339 = vor.u32 %v336, %v337
      %v341 = vshrl.u32 %v275, 16
      %v343 = vrot.slane %v341, 7
      %v344 = vshll.u32 %v275, 16
      %v346 = vor.u32 %v343, %v344
      %v348 = vshrl.u32 %v276, 16
      %v350 = vrot.slane %v348, 7
      %v351 = vshll.u32 %v276, 16
      %v353 = vor.u32 %v350, %v351
      %v355 = vshrl.u32 %v277, 16
      %v357 = vrot.slane %v355, 7
      %v358 = vshll.u32 %v277, 16
      %v360 = vor.u32 %v357, %v358
      %v362 = vshrl.u32 %v278, 16
      %v364 = vrot.slane %v362, 7
      %v365 = vshll.u32 %v278, 16
      %v367 = vor.u32 %v364, %v365
      %v369 = vshrl.u32 %v279, 16
      %v371 = vrot.slane %v369, 7
      %v372 = vshll.u32 %v279, 16
      %v374 = vor.u32 %v371, %v372
      %v376 = vshrl.u32 %v280, 16
      %v378 = vrot.slane %v376, 7
      %v379 = vshll.u32 %v280, 16
      %v381 = vor.u32 %v378, %v379
      %v383 = vshrl.u32 %v281, 16
      %v385 = vrot.slane %v383, 7
      %v386 = vshll.u32 %v281, 16
      %v388 = vor.u32 %v385, %v386
      %v390 = vshrl.u32 %v282, 16
      %v392 = vrot.slane %v390, 7
      %v393 = vshll.u32 %v282, 16
      %v395 = vor.u32 %v392, %v393
      %v397 = vshrl.u32 %v283, 16
      %v399 = vrot.slane %v397, 7
      %v400 = vshll.u32 %v283, 16
      %v402 = vor.u32 %v399, %v400
      %vm437 = vcmask 1040384
      %vm438 = vsmask.f32 256
      %vm439 = vmand %vm437, %vm438
      %v440 = vsel %vm439, 0, %v290
      %v441 = vsel %vm439, 0, %v297
      %v442 = vsel %vm439, 0, %v304
      %v443 = vsel %vm439, 0, %v311
      %v444 = vsel %vm439, 0, %v318
      %v445 = vsel %vm439, 0, %v325
      %v446 = vsel %vm439, 0, %v332
      %v447 = vsel %vm439, 0, %v339
      %v448 = vsel %vm439, 0, %v346
      %v449 = vsel %vm439, 0, %v353
      %v450 = vsel %vm439, 0, %v360
      %v451 = vsel %vm439, 0, %v367
      %v452 = vsel %vm439, 0, %v374
      %v453 = vsel %vm439, 0, %v381
      %v454 = vsel %vm439, 0, %v388
      %v455 = vsel %vm439, 0, %v395
      %v456 = vsel %vm439, 0, %v402
      %v457 = vsel %vm439, %v287, 0
      %v458 = vsel %vm439, %v294, 0
      %v459 = vsel %vm439, %v301, 0
      %v460 = vsel %vm439, %v308, 0
      %v461 = vsel %vm439, %v315, 0
      %v462 = vsel %vm439, %v322, 0
      %v463 = vsel %vm439, %v329, 0
      %v464 = vsel %vm439, %v336, 0
      %v465 = vsel %vm439, %v343, 0
      %v466 = vsel %vm439, %v350, 0
      %v467 = vsel %vm439, %v357, 0
      %v468 = vsel %vm439, %v364, 0
      %v469 = vsel %vm439, %v371, 0
      %v470 = vsel %vm439, %v378, 0
      %v471 = vsel %vm439, %v385, 0
      %v472 = vsel %vm439, %v392, 0
      %v473 = vsel %vm439, %v399, 0
      %vm474 = vsmask.f32 7424
      %v476 = vshrl.u32 %v440, 16
      %v478 = vshll.u32 %v440, 16
      %v480 = vrot.slane %v478, 1
      %v481 = vor.u32 %v476, %v480
      %v483 = vshll.u32 %v457, 16
      %v485 = vrot.slane %v483, 1
      %v486 = vsel %vm474, %v481, %v485
      %v488 = vshrl.u32 %v441, 16
      %v490 = vshll.u32 %v441, 16
      %v492 = vrot.slane %v490, 1
      %v493 = vor.u32 %v488, %v492
      %v495 = vshll.u32 %v458, 16
      %v497 = vrot.slane %v495, 1
      %v498 = vsel %vm474, %v493, %v497
      %v500 = vshrl.u32 %v442, 16
      %v502 = vshll.u32 %v442, 16
      %v504 = vrot.slane %v502, 1
      %v505 = vor.u32 %v500, %v504
      %v507 = vshll.u32 %v459, 16
      %v509 = vrot.slane %v507, 1
      %v510 = vsel %vm474, %v505, %v509
      %v512 = vshrl.u32 %v443, 16
      %v514 = vshll.u32 %v443, 16
      %v516 = vrot.slane %v514, 1
      %v517 = vor.u32 %v512, %v516
      %v519 = vshll.u32 %v460, 16
      %v521 = vrot.slane %v519, 1
      %v522 = vsel %vm474, %v517, %v521
      %v524 = vshrl.u32 %v444, 16
      %v526 = vshll.u32 %v444, 16
      %v528 = vrot.slane %v526, 1
      %v529 = vor.u32 %v524, %v528
      %v531 = vshll.u32 %v461, 16
      %v533 = vrot.slane %v531, 1
      %v534 = vsel %vm474, %v529, %v533
      %v536 = vshrl.u32 %v445, 16
      %v538 = vshll.u32 %v445, 16
      %v540 = vrot.slane %v538, 1
      %v541 = vor.u32 %v536, %v540
      %v543 = vshll.u32 %v462, 16
      %v545 = vrot.slane %v543, 1
      %v546 = vsel %vm474, %v541, %v545
      %v548 = vshrl.u32 %v446, 16
      %v550 = vshll.u32 %v446, 16
      %v552 = vrot.slane %v550, 1
      %v553 = vor.u32 %v548, %v552
      %v555 = vshll.u32 %v463, 16
      %v557 = vrot.slane %v555, 1
      %v558 = vsel %vm474, %v553, %v557
      %v560 = vshrl.u32 %v447, 16
      %v562 = vshll.u32 %v447, 16
      %v564 = vrot.slane %v562, 1
      %v565 = vor.u32 %v560, %v564
      %v567 = vshll.u32 %v464, 16
      %v569 = vrot.slane %v567, 1
      %v570 = vsel %vm474, %v565, %v569
      %v572 = vshrl.u32 %v448, 16
      %v574 = vshll.u32 %v448, 16
      %v576 = vrot.slane %v574, 1
      %v577 = vor.u32 %v572, %v576
      %v579 = vshll.u32 %v465, 16
      %v581 = vrot.slane %v579, 1
      %v582 = vsel %vm474, %v577, %v581
      %v584 = vshrl.u32 %v449, 16
      %v586 = vshll.u32 %v449, 16
      %v588 = vrot.slane %v586, 1
      %v589 = vor.u32 %v584, %v588
      %v591 = vshll.u32 %v466, 16
      %v593 = vrot.slane %v591, 1
      %v594 = vsel %vm474, %v589, %v593
      %v596 = vshrl.u32 %v450, 16
      %v598 = vshll.u32 %v450, 16
      %v600 = vrot.slane %v598, 1
      %v601 = vor.u32 %v596, %v600
      %v603 = vshll.u32 %v467, 16
      %v605 = vrot.slane %v603, 1
      %v606 = vsel %vm474, %v601, %v605
      %v608 = vshrl.u32 %v451, 16
      %v610 = vshll.u32 %v451, 16
      %v612 = vrot.slane %v610, 1
      %v613 = vor.u32 %v608, %v612
      %v615 = vshll.u32 %v468, 16
      %v617 = vrot.slane %v615, 1
      %v618 = vsel %vm474, %v613, %v617
      %v620 = vshrl.u32 %v452, 16
      %v622 = vshll.u32 %v452, 16
      %v624 = vrot.slane %v622, 1
      %v625 = vor.u32 %v620, %v624
      %v627 = vshll.u32 %v469, 16
      %v629 = vrot.slane %v627, 1
      %v630 = vsel %vm474, %v625, %v629
      %v632 = vshrl.u32 %v453, 16
      %v634 = vshll.u32 %v453, 16
      %v636 = vrot.slane %v634, 1
      %v637 = vor.u32 %v632, %v636
      %v639 = vshll.u32 %v470, 16
      %v641 = vrot.slane %v639, 1
      %v642 = vsel %vm474, %v637, %v641
      %v644 = vshrl.u32 %v454, 16
      %v646 = vshll.u32 %v454, 16
      %v648 = vrot.slane %v646, 1
      %v649 = vor.u32 %v644, %v648
      %v651 = vshll.u32 %v471, 16
      %v653 = vrot.slane %v651, 1
      %v654 = vsel %vm474, %v649, %v653
      %v656 = vshrl.u32 %v455, 16
      %v658 = vshll.u32 %v455, 16
      %v660 = vrot.slane %v658, 1
      %v661 = vor.u32 %v656, %v660
      %v663 = vshll.u32 %v472, 16
      %v665 = vrot.slane %v663, 1
      %v666 = vsel %vm474, %v661, %v665
      %v668 = vshrl.u32 %v456, 16
      %v670 = vshll.u32 %v456, 16
      %v672 = vrot.slane %v670, 1
      %v673 = vor.u32 %v668, %v672
      %v675 = vshll.u32 %v473, 16
      %v677 = vrot.slane %v675, 1
      %v678 = vsel %vm474, %v673, %v677
      %679 = vrot.lane.b32.xlu0 %v486, 16
      %v680 = vpop.permute.xlu0 %679
      %681 = vrot.lane.b32.xlu0 %v498, 16
      %v682 = vpop.permute.xlu0 %681
      %683 = vrot.lane.b32.xlu0 %v510, 16
      %v684 = vpop.permute.xlu0 %683
      %685 = vrot.lane.b32.xlu0 %v522, 16
      %v686 = vpop.permute.xlu0 %685
      %687 = vrot.lane.b32.xlu0 %v534, 16
      %v688 = vpop.permute.xlu0 %687
      %689 = vrot.lane.b32.xlu0 %v546, 16
      %v690 = vpop.permute.xlu0 %689
      %691 = vrot.lane.b32.xlu0 %v558, 16
      %v692 = vpop.permute.xlu0 %691
      %693 = vrot.lane.b32.xlu0 %v570, 16
      %v694 = vpop.permute.xlu0 %693
      %695 = vrot.lane.b32.xlu0 %v582, 16
      %v696 = vpop.permute.xlu0 %695
      %697 = vrot.lane.b32.xlu0 %v594, 16
      %v698 = vpop.permute.xlu0 %697
      %699 = vrot.lane.b32.xlu0 %v606, 16
      %v700 = vpop.permute.xlu0 %699
      %701 = vrot.lane.b32.xlu0 %v618, 16
      %v702 = vpop.permute.xlu0 %701
      %703 = vrot.lane.b32.xlu0 %v630, 16
      %v704 = vpop.permute.xlu0 %703
      %705 = vrot.lane.b32.xlu0 %v642, 16
      %v706 = vpop.permute.xlu0 %705
      %707 = vrot.lane.b32.xlu0 %v654, 16
      %v708 = vpop.permute.xlu0 %707
      %709 = vrot.lane.b32.xlu0 %v666, 16
      %v710 = vpop.permute.xlu0 %709
      %711 = vrot.lane.b32.xlu0 %v678, 16
      %v712 = vpop.permute.xlu0 %711
      %vm747 = vcmask 1046528
      %v748 = vrot.slane %v440, 1
      %v749 = vrot.slane %v457, 1
      %v750 = vsel %vm747, %v748, %v749
      %v751 = vrot.slane %v441, 1
      %v752 = vrot.slane %v458, 1
      %v753 = vsel %vm747, %v751, %v752
      %v754 = vrot.slane %v442, 1
      %v755 = vrot.slane %v459, 1
      %v756 = vsel %vm747, %v754, %v755
      %v757 = vrot.slane %v443, 1
      %v758 = vrot.slane %v460, 1
      %v759 = vsel %vm747, %v757, %v758
      %v760 = vrot.slane %v444, 1
      %v761 = vrot.slane %v461, 1
      %v762 = vsel %vm747, %v760, %v761
      %v763 = vrot.slane %v445, 1
      %v764 = vrot.slane %v462, 1
      %v765 = vsel %vm747, %v763, %v764
      %v766 = vrot.slane %v446, 1
      %v767 = vrot.slane %v463, 1
      %v768 = vsel %vm747, %v766, %v767
      %v769 = vrot.slane %v447, 1
      %v770 = vrot.slane %v464, 1
      %v771 = vsel %vm747, %v769, %v770
      %v772 = vrot.slane %v448, 1
      %v773 = vrot.slane %v465, 1
      %v774 = vsel %vm747, %v772, %v773
      %v775 = vrot.slane %v449, 1
      %v776 = vrot.slane %v466, 1
      %v777 = vsel %vm747, %v775, %v776
      %v778 = vrot.slane %v450, 1
      %v779 = vrot.slane %v467, 1
      %v780 = vsel %vm747, %v778, %v779
      %v781 = vrot.slane %v451, 1
      %v782 = vrot.slane %v468, 1
      %v783 = vsel %vm747, %v781, %v782
      %v784 = vrot.slane %v452, 1
      %v785 = vrot.slane %v469, 1
      %v786 = vsel %vm747, %v784, %v785
      %v787 = vrot.slane %v453, 1
      %v788 = vrot.slane %v470, 1
      %v789 = vsel %vm747, %v787, %v788
      %v790 = vrot.slane %v454, 1
      %v791 = vrot.slane %v471, 1
      %v792 = vsel %vm747, %v790, %v791
      %v793 = vrot.slane %v455, 1
      %v794 = vrot.slane %v472, 1
      %v795 = vsel %vm747, %v793, %v794
      %v796 = vrot.slane %v456, 1
      %v797 = vrot.slane %v473, 1
      %v798 = vsel %vm747, %v796, %v797
      %799 = vrot.lane.b32.xlu0 %v750, 32
      %v800 = vpop.permute.xlu0 %799
      %801 = vrot.lane.b32.xlu0 %v753, 32
      %v802 = vpop.permute.xlu0 %801
      %803 = vrot.lane.b32.xlu0 %v756, 32
      %v804 = vpop.permute.xlu0 %803
      %805 = vrot.lane.b32.xlu0 %v759, 32
      %v806 = vpop.permute.xlu0 %805
      %807 = vrot.lane.b32.xlu0 %v762, 32
      %v808 = vpop.permute.xlu0 %807
      %809 = vrot.lane.b32.xlu0 %v765, 32
      %v810 = vpop.permute.xlu0 %809
      %811 = vrot.lane.b32.xlu0 %v768, 32
      %v812 = vpop.permute.xlu0 %811
      %813 = vrot.lane.b32.xlu0 %v771, 32
      %v814 = vpop.permute.xlu0 %813
      %815 = vrot.lane.b32.xlu0 %v774, 32
      %v816 = vpop.permute.xlu0 %815
      %817 = vrot.lane.b32.xlu0 %v777, 32
      %v818 = vpop.permute.xlu0 %817
      %819 = vrot.lane.b32.xlu0 %v780, 32
      %v820 = vpop.permute.xlu0 %819
      %821 = vrot.lane.b32.xlu0 %v783, 32
      %v822 = vpop.permute.xlu0 %821
      %823 = vrot.lane.b32.xlu0 %v786, 32
      %v824 = vpop.permute.xlu0 %823
      %825 = vrot.lane.b32.xlu0 %v789, 32
      %v826 = vpop.permute.xlu0 %825
      %827 = vrot.lane.b32.xlu0 %v792, 32
      %v828 = vpop.permute.xlu0 %827
      %829 = vrot.lane.b32.xlu0 %v795, 32
      %v830 = vpop.permute.xlu0 %829
      %831 = vrot.lane.b32.xlu0 %v798, 32
      %v832 = vpop.permute.xlu0 %831
      %vm833 = vcmask 130048
      %v835 = vsel %vm833, %v440, %v680
      %v837 = vsel %vm833, %v441, %v682
      %v839 = vsel %vm833, %v442, %v684
      %v841 = vsel %vm833, %v443, %v686
      %v843 = vsel %vm833, %v444, %v688
      %v845 = vsel %vm833, %v445, %v690
      %v847 = vsel %vm833, %v446, %v692
      %v849 = vsel %vm833, %v447, %v694
      %v851 = vsel %vm833, %v448, %v696
      %v853 = vsel %vm833, %v449, %v698
      %v855 = vsel %vm833, %v450, %v700
      %v857 = vsel %vm833, %v451, %v702
      %v859 = vsel %vm833, %v452, %v704
      %v861 = vsel %vm833, %v453, %v706
      %v863 = vsel %vm833, %v454, %v708
      %v865 = vsel %vm833, %v455, %v710
      %v867 = vsel %vm833, %v456, %v712
      %vm868 = vcmask 261120
      %v870 = vsel %vm868, %v835, %v800
      %v872 = vsel %vm868, %v837, %v802
      %v874 = vsel %vm868, %v839, %v804
      %v876 = vsel %vm868, %v841, %v806
      %v878 = vsel %vm868, %v843, %v808
      %v880 = vsel %vm868, %v845, %v810
      %v882 = vsel %vm868, %v847, %v812
      %v884 = vsel %vm868, %v849, %v814
      %v886 = vsel %vm868, %v851, %v816
      %v888 = vsel %vm868, %v853, %v818
      %v890 = vsel %vm868, %v855, %v820
      %v892 = vsel %vm868, %v857, %v822
      %v894 = vsel %vm868, %v859, %v824
      %v896 = vsel %vm868, %v861, %v826
      %v898 = vsel %vm868, %v863, %v828
      %v900 = vsel %vm868, %v865, %v830
      %v902 = vsel %vm868, %v867, %v832
      %v903 = vld [vmem:[%s1] sm:$0xf]
      %v904 = vld [vmem:[%s1 + $0x4] sm:$0xf]
      %v905 = vld [vmem:[%s1 + $0x8] sm:$0xf]
      %v906 = vld [vmem:[%s1 + $0xc] sm:$0xf]
      %v907 = vld [vmem:[%s1 + $0x10] sm:$0xf]
      %v908 = vld [vmem:[%s1 + $0x14] sm:$0xf]
      %s909 = scalar_lea.vmem %s1, 24
      %v910 = vld [vmem:[%s909] sm:$0xf]
      %v911 = vld [vmem:[%s909 + $0x4] sm:$0xf]
      %v912 = vld [vmem:[%s909 + $0x8] sm:$0xf]
      %v913 = vld [vmem:[%s909 + $0xc] sm:$0xf]
      %v914 = vld [vmem:[%s909 + $0x10] sm:$0xf]
      %v915 = vld [vmem:[%s909 + $0x14] sm:$0xf]
      %v922 = vunpack.c.l.b16 %v910
      %v923 = vunpack.c.l.b16 %v911
      %v924 = vunpack.c.l.b16 %v912
      %v925 = vunpack.c.l.b16 %v913
      %v926 = vunpack.c.l.b16 %v914
      %v927 = vunpack.c.l.b16 %v915
      %v928 = vpack.c.b16 %v923, %v922
      %v929 = vpack.c.b16 %v925, %v924
      %v930 = vpack.c.b16 %v927, %v926
      %vm934 = vcmask 392192
      %v935 = vsel %vm934, %v872, 0
      %v937 = vsel %vm934, %v874, 0
      %v939 = vsel %vm934, %v876, 0
      %v941 = vsel %vm934, %v878, 0
      %v943 = vsel %vm934, %v880, 0
      %v945 = vsel %vm934, %v882, 0
      %v947 = vsel %vm934, %v884, 0
      %v949 = vsel %vm934, %v886, 0
      %v951 = vsel %vm934, %v888, 0
      %v953 = vsel %vm934, %v890, 0
      %v955 = vsel %vm934, %v892, 0
      %v957 = vsel %vm934, %v894, 0
      %v959 = vsel %vm934, %v896, 0
      %v961 = vsel %vm934, %v898, 0
      %v963 = vsel %vm934, %v900, 0
      %v965 = vsel %vm934, %v902, 0
      %967 = vmatprep.subr.bf16.mxu0 0
      %968 = vmatpush1.bf16.msra.mxu0 %v928
      %969 = vmatprep.subr.bf16.mxu0 0
      %970 = vmatpush1.bf16.msra.mxu0 %v929
      %971 = vmatprep.subr.bf16.mxu0 0
      %972 = vmatpush1.bf16.msra.mxu0 %v930
      %973 = vmatprep.subr.bf16.mxu0 0
      %974 = vmatpush1.bf16.msra.mxu0 0
      %975 = vmatprep.subr.bf16.mxu0 0
      %976 = vmatpush1.bf16.msra.mxu0 0
      %977 = vmatprep.subr.bf16.mxu0 0
      %978 = vmatpush1.bf16.msra.mxu0 0
      %979 = vmatprep.subr.bf16.mxu0 0
      %980 = vmatpush1.bf16.msra.mxu0 0
      %981 = vmatprep.subr.bf16.mxu0 0
      %982 = vmatpush1.bf16.msra.mxu0 0
      %983 = vmatprep.subr.bf16.mxu0 0
      %984 = vmatpush1.bf16.msra.mxu0 0
      %985 = vmatprep.subr.bf16.mxu0 0
      %986 = vmatpush1.bf16.msra.mxu0 0
      %987 = vmatprep.subr.bf16.mxu0 0
      %988 = vmatpush1.bf16.msra.mxu0 0
      %989 = vmatprep.subr.bf16.mxu0 0
      %990 = vmatpush1.bf16.msra.mxu0 0
      %991 = vmatprep.subr.bf16.mxu0 0
      %992 = vmatpush1.bf16.msra.mxu0 0
      %993 = vmatprep.subr.bf16.mxu0 0
      %994 = vmatpush1.bf16.msra.mxu0 0
      %995 = vmatprep.subr.bf16.mxu0 0
      %996 = vmatpush1.bf16.msra.mxu0 0
      %997 = vmatprep.subr.bf16.mxu0 0
      %998 = vmatpush1.bf16.msra.mxu0 0
      %999 = vmatprep.mubr.bf16.mxu0 0
      %1000 = vmatmul.mubr.bf16.gmra.mrb[0].mxu0 %v935
      %v1001 = vpop.f32.mrb[0].mxu0
      %v1002 = vadd.f32 0.0, %v1001
      %v1003 = vpop.f32.mrb[0].mxu0
      %v1004 = vpop.f32.mrb[0].mxu0
      %v1005 = vadd.f32 0.0, %v1004
      %v1006 = vpop.f32.mrb[0].mxu0
      %1007 = vmatprep.mubr.bf16.mxu0 0
      %1008 = vmatmul.mubr.bf16.gmra.mrb[0].mxu0 %v937
      %v1009 = vpop.f32.mrb[0].mxu0
      %v1010 = vadd.f32 0.0, %v1009
      %v1011 = vpop.f32.mrb[0].mxu0
      %v1012 = vpop.f32.mrb[0].mxu0
      %v1013 = vadd.f32 0.0, %v1012
      %v1014 = vpop.f32.mrb[0].mxu0
      %1015 = vmatprep.mubr.bf16.mxu0 0
      %1016 = vmatmul.mubr.bf16.gmra.mrb[0].mxu0 %v939
      %v1017 = vpop.f32.mrb[0].mxu0
      %v1018 = vadd.f32 0.0, %v1017
      %v1019 = vpop.f32.mrb[0].mxu0
      %v1020 = vpop.f32.mrb[0].mxu0
      %v1021 = vadd.f32 0.0, %v1020
      %v1022 = vpop.f32.mrb[0].mxu0
      %1023 = vmatprep.mubr.bf16.mxu0 0
      %1024 = vmatmul.mubr.bf16.gmra.mrb[0].mxu0 %v941
      %v1025 = vpop.f32.mrb[0].mxu0
      %v1026 = vadd.f32 0.0, %v1025
      %v1027 = vpop.f32.mrb[0].mxu0
      %v1028 = vpop.f32.mrb[0].mxu0
      %v1029 = vadd.f32 0.0, %v1028
      %v1030 = vpop.f32.mrb[0].mxu0
      %1031 = vmatprep.mubr.bf16.mxu0 0
      %1032 = vmatmul.mubr.bf16.gmra.mrb[0].mxu0 %v943
      %v1033 = vpop.f32.mrb[0].mxu0
      %v1034 = vadd.f32 0.0, %v1033
      %v1035 = vpop.f32.mrb[0].mxu0
      %v1036 = vpop.f32.mrb[0].mxu0
      %v1037 = vadd.f32 0.0, %v1036
      %v1038 = vpop.f32.mrb[0].mxu0
      %1039 = vmatprep.mubr.bf16.mxu0 0
      %1040 = vmatmul.mubr.bf16.gmra.mrb[0].mxu0 %v945
      %v1041 = vpop.f32.mrb[0].mxu0
      %v1042 = vadd.f32 0.0, %v1041
      %v1043 = vpop.f32.mrb[0].mxu0
      %v1044 = vpop.f32.mrb[0].mxu0
      %v1045 = vadd.f32 0.0, %v1044
      %v1046 = vpop.f32.mrb[0].mxu0
      %1047 = vmatprep.mubr.bf16.mxu0 0
      %1048 = vmatmul.mubr.bf16.gmra.mrb[0].mxu0 %v947
      %v1049 = vpop.f32.mrb[0].mxu0
      %v1050 = vadd.f32 0.0, %v1049
      %v1051 = vpop.f32.mrb[0].mxu0
      %v1052 = vpop.f32.mrb[0].mxu0
      %v1053 = vadd.f32 0.0, %v1052
      %v1054 = vpop.f32.mrb[0].mxu0
      %1055 = vmatprep.mubr.bf16.mxu0 0
      %1056 = vmatmul.mubr.bf16.gmra.mrb[0].mxu0 %v949
      %v1057 = vpop.f32.mrb[0].mxu0
      %v1058 = vadd.f32 0.0, %v1057
      %v1059 = vpop.f32.mrb[0].mxu0
      %v1060 = vpop.f32.mrb[0].mxu0
      %v1061 = vadd.f32 0.0, %v1060
      %v1062 = vpop.f32.mrb[0].mxu0
      %1063 = vmatprep.mubr.bf16.mxu0 0
      %1064 = vmatmul.mubr.bf16.gmra.mrb[0].mxu0 %v951
      %v1065 = vpop.f32.mrb[0].mxu0
      %v1066 = vadd.f32 0.0, %v1065
      %v1067 = vpop.f32.mrb[0].mxu0
      %v1068 = vpop.f32.mrb[0].mxu0
      %v1069 = vadd.f32 0.0, %v1068
      %v1070 = vpop.f32.mrb[0].mxu0
      %1071 = vmatprep.mubr.bf16.mxu0 0
      %1072 = vmatmul.mubr.bf16.gmra.mrb[0].mxu0 %v953
      %v1073 = vpop.f32.mrb[0].mxu0
      %v1074 = vadd.f32 0.0, %v1073
      %v1075 = vpop.f32.mrb[0].mxu0
      %v1076 = vpop.f32.mrb[0].mxu0
      %v1077 = vadd.f32 0.0, %v1076
      %v1078 = vpop.f32.mrb[0].mxu0
      %1079 = vmatprep.mubr.bf16.mxu0 0
      %1080 = vmatmul.mubr.bf16.gmra.mrb[0].mxu0 %v955
      %v1081 = vpop.f32.mrb[0].mxu0
      %v1082 = vadd.f32 0.0, %v1081
      %v1083 = vpop.f32.mrb[0].mxu0
      %v1084 = vpop.f32.mrb[0].mxu0
      %v1085 = vadd.f32 0.0, %v1084
      %v1086 = vpop.f32.mrb[0].mxu0
      %1087 = vmatprep.mubr.bf16.mxu0 0
      %1088 = vmatmul.mubr.bf16.gmra.mrb[0].mxu0 %v957
      %v1089 = vpop.f32.mrb[0].mxu0
      %v1090 = vadd.f32 0.0, %v1089
      %v1091 = vpop.f32.mrb[0].mxu0
      %v1092 = vpop.f32.mrb[0].mxu0
      %v1093 = vadd.f32 0.0, %v1092
      %v1094 = vpop.f32.mrb[0].mxu0
      %1095 = vmatprep.mubr.bf16.mxu0 0
      %1096 = vmatmul.mubr.bf16.gmra.mrb[0].mxu0 %v959
      %v1097 = vpop.f32.mrb[0].mxu0
      %v1098 = vadd.f32 0.0, %v1097
      %v1099 = vpop.f32.mrb[0].mxu0
      %v1100 = vpop.f32.mrb[0].mxu0
      %v1101 = vadd.f32 0.0, %v1100
      %v1102 = vpop.f32.mrb[0].mxu0
      %1103 = vmatprep.mubr.bf16.mxu0 0
      %1104 = vmatmul.mubr.bf16.gmra.mrb[0].mxu0 %v961
      %v1105 = vpop.f32.mrb[0].mxu0
      %v1106 = vadd.f32 0.0, %v1105
      %v1107 = vpop.f32.mrb[0].mxu0
      %v1108 = vpop.f32.mrb[0].mxu0
      %v1109 = vadd.f32 0.0, %v1108
      %v1110 = vpop.f32.mrb[0].mxu0
      %1111 = vmatprep.mubr.bf16.mxu0 0
      %1112 = vmatmul.mubr.bf16.gmra.mrb[0].mxu0 %v963
      %v1113 = vpop.f32.mrb[0].mxu0
      %v1114 = vadd.f32 0.0, %v1113
      %v1115 = vpop.f32.mrb[0].mxu0
      %v1116 = vpop.f32.mrb[0].mxu0
      %v1117 = vadd.f32 0.0, %v1116
      %v1118 = vpop.f32.mrb[0].mxu0
      %1119 = vmatprep.mubr.bf16.mxu0 0
      %1120 = vmatmul.mubr.bf16.gmra.mrb[0].mxu0 %v965
      %v1121 = vpop.f32.mrb[0].mxu0
      %v1122 = vadd.f32 0.0, %v1121
      %v1123 = vpop.f32.mrb[0].mxu0
      %v1124 = vpop.f32.mrb[0].mxu0
      %v1125 = vadd.f32 0.0, %v1124
      %v1126 = vpop.f32.mrb[0].mxu0
      %1127 = vdwg.mxu0
      %v1134 = vunpack.c.l.b16 %v903
      %v1135 = vunpack.c.l.b16 %v904
      %v1136 = vunpack.c.l.b16 %v905
      %v1137 = vunpack.c.l.b16 %v906
      %v1138 = vunpack.c.l.b16 %v907
      %v1139 = vunpack.c.l.b16 %v908
      %v1140 = vpack.c.b16 %v1135, %v1134
      %v1141 = vpack.c.b16 %v1137, %v1136
      %v1142 = vpack.c.b16 %v1139, %v1138
      %v1146 = vsel %vm934, %v870, 0
      %1148 = vmatprep.subr.bf16.mxu0 0
      %1149 = vmatpush1.bf16.msra.mxu0 %v1140
      %1150 = vmatprep.subr.bf16.mxu0 0
      %1151 = vmatpush1.bf16.msra.mxu0 %v1141
      %1152 = vmatprep.subr.bf16.mxu0 0
      %1153 = vmatpush1.bf16.msra.mxu0 %v1142
      %1154 = vmatprep.subr.bf16.mxu0 0
      %1155 = vmatpush1.bf16.msra.mxu0 0
      %1156 = vmatprep.subr.bf16.mxu0 0
      %1157 = vmatpush1.bf16.msra.mxu0 0
      %1158 = vmatprep.subr.bf16.mxu0 0
      %1159 = vmatpush1.bf16.msra.mxu0 0
      %1160 = vmatprep.subr.bf16.mxu0 0
      %1161 = vmatpush1.bf16.msra.mxu0 0
      %1162 = vmatprep.subr.bf16.mxu0 0
      %1163 = vmatpush1.bf16.msra.mxu0 0
      %1164 = vmatprep.subr.bf16.mxu0 0
      %1165 = vmatpush1.bf16.msra.mxu0 0
      %1166 = vmatprep.subr.bf16.mxu0 0
      %1167 = vmatpush1.bf16.msra.mxu0 0
      %1168 = vmatprep.subr.bf16.mxu0 0
      %1169 = vmatpush1.bf16.msra.mxu0 0
      %1170 = vmatprep.subr.bf16.mxu0 0
      %1171 = vmatpush1.bf16.msra.mxu0 0
      %1172 = vmatprep.subr.bf16.mxu0 0
      %1173 = vmatpush1.bf16.msra.mxu0 0
      %1174 = vmatprep.subr.bf16.mxu0 0
      %1175 = vmatpush1.bf16.msra.mxu0 0
      %1176 = vmatprep.subr.bf16.mxu0 0
      %1177 = vmatpush1.bf16.msra.mxu0 0
      %1178 = vmatprep.subr.bf16.mxu0 0
      %1179 = vmatpush1.bf16.msra.mxu0 0
      %1180 = vmatprep.mubr.bf16.mxu0 0
      %1181 = vmatmul.mubr.bf16.gmra.mrb[0].mxu0 %v1146
      %v1182 = vpop.f32.mrb[0].mxu0
      %v1183 = vadd.f32 %v1002, %v1182
      %v1184 = vpop.f32.mrb[0].mxu0
      %v1185 = vpop.f32.mrb[0].mxu0
      %v1186 = vadd.f32 %v1005, %v1185
      %v1187 = vpop.f32.mrb[0].mxu0
      %1188 = vmatprep.mubr.bf16.mxu0 0
      %1189 = vmatmul.mubr.bf16.gmra.mrb[0].mxu0 %v935
      %v1190 = vpop.f32.mrb[0].mxu0
      %v1191 = vadd.f32 %v1010, %v1190
      %v1192 = vpop.f32.mrb[0].mxu0
      %v1193 = vpop.f32.mrb[0].mxu0
      %v1194 = vadd.f32 %v1013, %v1193
      %v1195 = vpop.f32.mrb[0].mxu0
      %1196 = vmatprep.mubr.bf16.mxu0 0
      %1197 = vmatmul.mubr.bf16.gmra.mrb[0].mxu0 %v937
      %v1198 = vpop.f32.mrb[0].mxu0
      %v1199 = vadd.f32 %v1018, %v1198
      %v1200 = vpop.f32.mrb[0].mxu0
      %v1201 = vpop.f32.mrb[0].mxu0
      %v1202 = vadd.f32 %v1021, %v1201
      %v1203 = vpop.f32.mrb[0].mxu0
      %1204 = vmatprep.mubr.bf16.mxu0 0
      %1205 = vmatmul.mubr.bf16.gmra.mrb[0].mxu0 %v939
      %v1206 = vpop.f32.mrb[0].mxu0
      %v1207 = vadd.f32 %v1026, %v1206
      %v1208 = vpop.f32.mrb[0].mxu0
      %v1209 = vpop.f32.mrb[0].mxu0
      %v1210 = vadd.f32 %v1029, %v1209
      %v1211 = vpop.f32.mrb[0].mxu0
      %1212 = vmatprep.mubr.bf16.mxu0 0
      %1213 = vmatmul.mubr.bf16.gmra.mrb[0].mxu0 %v941
      %v1214 = vpop.f32.mrb[0].mxu0
      %v1215 = vadd.f32 %v1034, %v1214
      %v1216 = vpop.f32.mrb[0].mxu0
      %v1217 = vpop.f32.mrb[0].mxu0
      %v1218 = vadd.f32 %v1037, %v1217
      %v1219 = vpop.f32.mrb[0].mxu0
      %1220 = vmatprep.mubr.bf16.mxu0 0
      %1221 = vmatmul.mubr.bf16.gmra.mrb[0].mxu0 %v943
      %v1222 = vpop.f32.mrb[0].mxu0
      %v1223 = vadd.f32 %v1042, %v1222
      %v1224 = vpop.f32.mrb[0].mxu0
      %v1225 = vpop.f32.mrb[0].mxu0
      %v1226 = vadd.f32 %v1045, %v1225
      %v1227 = vpop.f32.mrb[0].mxu0
      %1228 = vmatprep.mubr.bf16.mxu0 0
      %1229 = vmatmul.mubr.bf16.gmra.mrb[0].mxu0 %v945
      %v1230 = vpop.f32.mrb[0].mxu0
      %v1231 = vadd.f32 %v1050, %v1230
      %v1232 = vpop.f32.mrb[0].mxu0
      %v1233 = vpop.f32.mrb[0].mxu0
      %v1234 = vadd.f32 %v1053, %v1233
      %v1235 = vpop.f32.mrb[0].mxu0
      %1236 = vmatprep.mubr.bf16.mxu0 0
      %1237 = vmatmul.mubr.bf16.gmra.mrb[0].mxu0 %v947
      %v1238 = vpop.f32.mrb[0].mxu0
      %v1239 = vadd.f32 %v1058, %v1238
      %v1240 = vpop.f32.mrb[0].mxu0
      %v1241 = vpop.f32.mrb[0].mxu0
      %v1242 = vadd.f32 %v1061, %v1241
      %v1243 = vpop.f32.mrb[0].mxu0
      %1244 = vmatprep.mubr.bf16.mxu0 0
      %1245 = vmatmul.mubr.bf16.gmra.mrb[0].mxu0 %v949
      %v1246 = vpop.f32.mrb[0].mxu0
      %v1247 = vadd.f32 %v1066, %v1246
      %v1248 = vpop.f32.mrb[0].mxu0
      %v1249 = vpop.f32.mrb[0].mxu0
      %v1250 = vadd.f32 %v1069, %v1249
      %v1251 = vpop.f32.mrb[0].mxu0
      %1252 = vmatprep.mubr.bf16.mxu0 0
      %1253 = vmatmul.mubr.bf16.gmra.mrb[0].mxu0 %v951
      %v1254 = vpop.f32.mrb[0].mxu0
      %v1255 = vadd.f32 %v1074, %v1254
      %v1256 = vpop.f32.mrb[0].mxu0
      %v1257 = vpop.f32.mrb[0].mxu0
      %v1258 = vadd.f32 %v1077, %v1257
      %v1259 = vpop.f32.mrb[0].mxu0
      %1260 = vmatprep.mubr.bf16.mxu0 0
      %1261 = vmatmul.mubr.bf16.gmra.mrb[0].mxu0 %v953
      %v1262 = vpop.f32.mrb[0].mxu0
      %v1263 = vadd.f32 %v1082, %v1262
      %v1264 = vpop.f32.mrb[0].mxu0
      %v1265 = vpop.f32.mrb[0].mxu0
      %v1266 = vadd.f32 %v1085, %v1265
      %v1267 = vpop.f32.mrb[0].mxu0
      %1268 = vmatprep.mubr.bf16.mxu0 0
      %1269 = vmatmul.mubr.bf16.gmra.mrb[0].mxu0 %v955
      %v1270 = vpop.f32.mrb[0].mxu0
      %v1271 = vadd.f32 %v1090, %v1270
      %v1272 = vpop.f32.mrb[0].mxu0
      %v1273 = vpop.f32.mrb[0].mxu0
      %v1274 = vadd.f32 %v1093, %v1273
      %v1275 = vpop.f32.mrb[0].mxu0
      %1276 = vmatprep.mubr.bf16.mxu0 0
      %1277 = vmatmul.mubr.bf16.gmra.mrb[0].mxu0 %v957
      %v1278 = vpop.f32.mrb[0].mxu0
      %v1279 = vadd.f32 %v1098, %v1278
      %v1280 = vpop.f32.mrb[0].mxu0
      %v1281 = vpop.f32.mrb[0].mxu0
      %v1282 = vadd.f32 %v1101, %v1281
      %v1283 = vpop.f32.mrb[0].mxu0
      %1284 = vmatprep.mubr.bf16.mxu0 0
      %1285 = vmatmul.mubr.bf16.gmra.mrb[0].mxu0 %v959
      %v1286 = vpop.f32.mrb[0].mxu0
      %v1287 = vadd.f32 %v1106, %v1286
      %v1288 = vpop.f32.mrb[0].mxu0
      %v1289 = vpop.f32.mrb[0].mxu0
      %v1290 = vadd.f32 %v1109, %v1289
      %v1291 = vpop.f32.mrb[0].mxu0
      %1292 = vmatprep.mubr.bf16.mxu0 0
      %1293 = vmatmul.mubr.bf16.gmra.mrb[0].mxu0 %v961
      %v1294 = vpop.f32.mrb[0].mxu0
      %v1295 = vadd.f32 %v1114, %v1294
      %v1296 = vpop.f32.mrb[0].mxu0
      %v1297 = vpop.f32.mrb[0].mxu0
      %v1298 = vadd.f32 %v1117, %v1297
      %v1299 = vpop.f32.mrb[0].mxu0
      %1300 = vmatprep.mubr.bf16.mxu0 0
      %1301 = vmatmul.mubr.bf16.gmra.mrb[0].mxu0 %v963
      %v1302 = vpop.f32.mrb[0].mxu0
      %v1303 = vadd.f32 %v1122, %v1302
      %v1304 = vpop.f32.mrb[0].mxu0
      %v1305 = vpop.f32.mrb[0].mxu0
      %v1306 = vadd.f32 %v1125, %v1305
      %v1307 = vpop.f32.mrb[0].mxu0
      %1308 = vdwg.mxu0
      %s1309 = scalar_lea.vmem %s1, 48
      %v1310 = vld [vmem:[%s1309] sm:$0xf]
      %v1311 = vld [vmem:[%s1309 + $0x4] sm:$0xf]
      %v1312 = vld [vmem:[%s1309 + $0x8] sm:$0xf]
      %v1313 = vld [vmem:[%s1309 + $0xc] sm:$0xf]
      %v1314 = vld [vmem:[%s1309 + $0x10] sm:$0xf]
      %v1315 = vld [vmem:[%s1309 + $0x14] sm:$0xf]
      %v1322 = vunpack.c.l.b16 %v1310
      %v1323 = vunpack.c.l.b16 %v1311
      %v1324 = vunpack.c.l.b16 %v1312
      %v1325 = vunpack.c.l.b16 %v1313
      %v1326 = vunpack.c.l.b16 %v1314
      %v1327 = vunpack.c.l.b16 %v1315
      %v1328 = vpack.c.b16 %v1323, %v1322
      %v1329 = vpack.c.b16 %v1325, %v1324
      %v1330 = vpack.c.b16 %v1327, %v1326
      %1334 = vmatprep.subr.bf16.mxu0 0
      %1335 = vmatpush1.bf16.msra.mxu0 %v1328
      %1336 = vmatprep.subr.bf16.mxu0 0
      %1337 = vmatpush1.bf16.msra.mxu0 %v1329
      %1338 = vmatprep.subr.bf16.mxu0 0
      %1339 = vmatpush1.bf16.msra.mxu0 %v1330
      %1340 = vmatprep.subr.bf16.mxu0 0
      %1341 = vmatpush1.bf16.msra.mxu0 0
      %1342 = vmatprep.subr.bf16.mxu0 0
      %1343 = vmatpush1.bf16.msra.mxu0 0
      %1344 = vmatprep.subr.bf16.mxu0 0
      %1345 = vmatpush1.bf16.msra.mxu0 0
      %1346 = vmatprep.subr.bf16.mxu0 0
      %1347 = vmatpush1.bf16.msra.mxu0 0
      %1348 = vmatprep.subr.bf16.mxu0 0
      %1349 = vmatpush1.bf16.msra.mxu0 0
      %1350 = vmatprep.subr.bf16.mxu0 0
      %1351 = vmatpush1.bf16.msra.mxu0 0
      %1352 = vmatprep.subr.bf16.mxu0 0
      %1353 = vmatpush1.bf16.msra.mxu0 0
      %1354 = vmatprep.subr.bf16.mxu0 0
      %1355 = vmatpush1.bf16.msra.mxu0 0
      %1356 = vmatprep.subr.bf16.mxu0 0
      %1357 = vmatpush1.bf16.msra.mxu0 0
      %1358 = vmatprep.subr.bf16.mxu0 0
      %1359 = vmatpush1.bf16.msra.mxu0 0
      %1360 = vmatprep.subr.bf16.mxu0 0
      %1361 = vmatpush1.bf16.msra.mxu0 0
      %1362 = vmatprep.subr.bf16.mxu0 0
      %1363 = vmatpush1.bf16.msra.mxu0 0
      %1364 = vmatprep.subr.bf16.mxu0 0
      %1365 = vmatpush1.bf16.msra.mxu0 0
      %1366 = vmatprep.mubr.bf16.mxu0 0
      %1367 = vmatmul.mubr.bf16.gmra.mrb[0].mxu0 %v937
      %v1368 = vpop.f32.mrb[0].mxu0
      %v1369 = vadd.f32 0.0, %v1368
      %v1370 = vpop.f32.mrb[0].mxu0
      %v1371 = vpop.f32.mrb[0].mxu0
      %v1372 = vadd.f32 0.0, %v1371
      %v1373 = vpop.f32.mrb[0].mxu0
      %1374 = vmatprep.mubr.bf16.mxu0 0
      %1375 = vmatmul.mubr.bf16.gmra.mrb[0].mxu0 %v939
      %v1376 = vpop.f32.mrb[0].mxu0
      %v1377 = vadd.f32 0.0, %v1376
      %v1378 = vpop.f32.mrb[0].mxu0
      %v1379 = vpop.f32.mrb[0].mxu0
      %v1380 = vadd.f32 0.0, %v1379
      %v1381 = vpop.f32.mrb[0].mxu0
      %1382 = vmatprep.mubr.bf16.mxu0 0
      %1383 = vmatmul.mubr.bf16.gmra.mrb[0].mxu0 %v941
      %v1384 = vpop.f32.mrb[0].mxu0
      %v1385 = vadd.f32 0.0, %v1384
      %v1386 = vpop.f32.mrb[0].mxu0
      %v1387 = vpop.f32.mrb[0].mxu0
      %v1388 = vadd.f32 0.0, %v1387
      %v1389 = vpop.f32.mrb[0].mxu0
      %1390 = vmatprep.mubr.bf16.mxu0 0
      %1391 = vmatmul.mubr.bf16.gmra.mrb[0].mxu0 %v943
      %v1392 = vpop.f32.mrb[0].mxu0
      %v1393 = vadd.f32 0.0, %v1392
      %v1394 = vpop.f32.mrb[0].mxu0
      %v1395 = vpop.f32.mrb[0].mxu0
      %v1396 = vadd.f32 0.0, %v1395
      %v1397 = vpop.f32.mrb[0].mxu0
      %1398 = vmatprep.mubr.bf16.mxu0 0
      %1399 = vmatmul.mubr.bf16.gmra.mrb[0].mxu0 %v945
      %v1400 = vpop.f32.mrb[0].mxu0
      %v1401 = vadd.f32 0.0, %v1400
      %v1402 = vpop.f32.mrb[0].mxu0
      %v1403 = vpop.f32.mrb[0].mxu0
      %v1404 = vadd.f32 0.0, %v1403
      %v1405 = vpop.f32.mrb[0].mxu0
      %1406 = vmatprep.mubr.bf16.mxu0 0
      %1407 = vmatmul.mubr.bf16.gmra.mrb[0].mxu0 %v947
      %v1408 = vpop.f32.mrb[0].mxu0
      %v1409 = vadd.f32 0.0, %v1408
      %v1410 = vpop.f32.mrb[0].mxu0
      %v1411 = vpop.f32.mrb[0].mxu0
      %v1412 = vadd.f32 0.0, %v1411
      %v1413 = vpop.f32.mrb[0].mxu0
      %1414 = vmatprep.mubr.bf16.mxu0 0
      %1415 = vmatmul.mubr.bf16.gmra.mrb[0].mxu0 %v949
      %v1416 = vpop.f32.mrb[0].mxu0
      %v1417 = vadd.f32 0.0, %v1416
      %v1418 = vpop.f32.mrb[0].mxu0
      %v1419 = vpop.f32.mrb[0].mxu0
      %v1420 = vadd.f32 0.0, %v1419
      %v1421 = vpop.f32.mrb[0].mxu0
      %1422 = vmatprep.mubr.bf16.mxu0 0
      %1423 = vmatmul.mubr.bf16.gmra.mrb[0].mxu0 %v951
      %v1424 = vpop.f32.mrb[0].mxu0
      %v1425 = vadd.f32 0.0, %v1424
      %v1426 = vpop.f32.mrb[0].mxu0
      %v1427 = vpop.f32.mrb[0].mxu0
      %v1428 = vadd.f32 0.0, %v1427
      %v1429 = vpop.f32.mrb[0].mxu0
      %1430 = vmatprep.mubr.bf16.mxu0 0
      %1431 = vmatmul.mubr.bf16.gmra.mrb[0].mxu0 %v953
      %v1432 = vpop.f32.mrb[0].mxu0
      %v1433 = vadd.f32 0.0, %v1432
      %v1434 = vpop.f32.mrb[0].mxu0
      %v1435 = vpop.f32.mrb[0].mxu0
      %v1436 = vadd.f32 0.0, %v1435
      %v1437 = vpop.f32.mrb[0].mxu0
      %1438 = vmatprep.mubr.bf16.mxu0 0
      %1439 = vmatmul.mubr.bf16.gmra.mrb[0].mxu0 %v955
      %v1440 = vpop.f32.mrb[0].mxu0
      %v1441 = vadd.f32 0.0, %v1440
      %v1442 = vpop.f32.mrb[0].mxu0
      %v1443 = vpop.f32.mrb[0].mxu0
      %v1444 = vadd.f32 0.0, %v1443
      %v1445 = vpop.f32.mrb[0].mxu0
      %1446 = vmatprep.mubr.bf16.mxu0 0
      %1447 = vmatmul.mubr.bf16.gmra.mrb[0].mxu0 %v957
      %v1448 = vpop.f32.mrb[0].mxu0
      %v1449 = vadd.f32 0.0, %v1448
      %v1450 = vpop.f32.mrb[0].mxu0
      %v1451 = vpop.f32.mrb[0].mxu0
      %v1452 = vadd.f32 0.0, %v1451
      %v1453 = vpop.f32.mrb[0].mxu0
      %1454 = vmatprep.mubr.bf16.mxu0 0
      %1455 = vmatmul.mubr.bf16.gmra.mrb[0].mxu0 %v959
      %v1456 = vpop.f32.mrb[0].mxu0
      %v1457 = vadd.f32 0.0, %v1456
      %v1458 = vpop.f32.mrb[0].mxu0
      %v1459 = vpop.f32.mrb[0].mxu0
      %v1460 = vadd.f32 0.0, %v1459
      %v1461 = vpop.f32.mrb[0].mxu0
      %1462 = vmatprep.mubr.bf16.mxu0 0
      %1463 = vmatmul.mubr.bf16.gmra.mrb[0].mxu0 %v961
      %v1464 = vpop.f32.mrb[0].mxu0
      %v1465 = vadd.f32 0.0, %v1464
      %v1466 = vpop.f32.mrb[0].mxu0
      %v1467 = vpop.f32.mrb[0].mxu0
      %v1468 = vadd.f32 0.0, %v1467
      %v1469 = vpop.f32.mrb[0].mxu0
      %1470 = vmatprep.mubr.bf16.mxu0 0
      %1471 = vmatmul.mubr.bf16.gmra.mrb[0].mxu0 %v963
      %v1472 = vpop.f32.mrb[0].mxu0
      %v1473 = vadd.f32 0.0, %v1472
      %v1474 = vpop.f32.mrb[0].mxu0
      %v1475 = vpop.f32.mrb[0].mxu0
      %v1476 = vadd.f32 0.0, %v1475
      %v1477 = vpop.f32.mrb[0].mxu0
      %1478 = vmatprep.mubr.bf16.mxu0 0
      %1479 = vmatmul.mubr.bf16.gmra.mrb[0].mxu0 %v965
      %v1480 = vpop.f32.mrb[0].mxu0
      %v1481 = vadd.f32 0.0, %v1480
      %v1482 = vpop.f32.mrb[0].mxu0
      %v1483 = vpop.f32.mrb[0].mxu0
      %v1484 = vadd.f32 0.0, %v1483
      %v1485 = vpop.f32.mrb[0].mxu0
      %1486 = vmatprep.mubr.bf16.mxu0 0
      %1487 = vmatmul.mubr.bf16.gmra.mrb[0].mxu0 %v1146
      %v1488 = vpop.f32.mrb[0].mxu0
      %v1489 = vadd.f32 0.0, %v1488
      %v1490 = vpop.f32.mrb[0].mxu0
      %v1491 = vpop.f32.mrb[0].mxu0
      %v1492 = vadd.f32 0.0, %v1491
      %v1493 = vpop.f32.mrb[0].mxu0
      %1494 = vdwg.mxu0
      %v1495 = vadd.f32 %v1183, %v1369
      %v1496 = vadd.f32 %v1186, %v1372
      %v1497 = vadd.f32 %v1191, %v1377
      %v1498 = vadd.f32 %v1194, %v1380
      %v1499 = vadd.f32 %v1199, %v1385
      %v1500 = vadd.f32 %v1202, %v1388
      %v1501 = vadd.f32 %v1207, %v1393
      %v1502 = vadd.f32 %v1210, %v1396
      %v1503 = vadd.f32 %v1215, %v1401
      %v1504 = vadd.f32 %v1218, %v1404
      %v1505 = vadd.f32 %v1223, %v1409
      %v1506 = vadd.f32 %v1226, %v1412
      %v1507 = vadd.f32 %v1231, %v1417
      %v1508 = vadd.f32 %v1234, %v1420
      %v1509 = vadd.f32 %v1239, %v1425
      %v1510 = vadd.f32 %v1242, %v1428
      %v1511 = vadd.f32 %v1247, %v1433
      %v1512 = vadd.f32 %v1250, %v1436
      %v1513 = vadd.f32 %v1255, %v1441
      %v1514 = vadd.f32 %v1258, %v1444
      %v1515 = vadd.f32 %v1263, %v1449
      %v1516 = vadd.f32 %v1266, %v1452
      %v1517 = vadd.f32 %v1271, %v1457
      %v1518 = vadd.f32 %v1274, %v1460
      %v1519 = vadd.f32 %v1279, %v1465
      %v1520 = vadd.f32 %v1282, %v1468
      %v1521 = vadd.f32 %v1287, %v1473
      %v1522 = vadd.f32 %v1290, %v1476
      %v1523 = vadd.f32 %v1295, %v1481
      %v1524 = vadd.f32 %v1298, %v1484
      %v1525 = vadd.f32 %v1303, %v1489
      %v1526 = vadd.f32 %v1306, %v1492
      %v1527 = vsel %vm833, %v1495, 0.0
      %v1528 = vsel %vm833, %v1496, 0.0
      %v1529 = vadd.f32 %v1527, %v1528
      %v1530 = vsel %vm833, %v1497, 0.0
      %v1531 = vadd.f32 %v1529, %v1530
      %v1532 = vsel %vm833, %v1498, 0.0
      %v1533 = vadd.f32 %v1531, %v1532
      %v1534 = vsel %vm833, %v1499, 0.0
      %v1535 = vadd.f32 %v1533, %v1534
      %v1536 = vsel %vm833, %v1500, 0.0
      %v1537 = vadd.f32 %v1535, %v1536
      %v1538 = vsel %vm833, %v1501, 0.0
      %v1539 = vadd.f32 %v1537, %v1538
      %v1540 = vsel %vm833, %v1502, 0.0
      %v1541 = vadd.f32 %v1539, %v1540
      %v1542 = vsel %vm833, %v1503, 0.0
      %v1543 = vadd.f32 %v1541, %v1542
      %v1544 = vsel %vm833, %v1504, 0.0
      %v1545 = vadd.f32 %v1543, %v1544
      %v1546 = vsel %vm833, %v1505, 0.0
      %v1547 = vadd.f32 %v1545, %v1546
      %v1548 = vsel %vm833, %v1506, 0.0
      %v1549 = vadd.f32 %v1547, %v1548
      %v1550 = vsel %vm833, %v1507, 0.0
      %v1551 = vadd.f32 %v1549, %v1550
      %v1552 = vsel %vm833, %v1508, 0.0
      %v1553 = vadd.f32 %v1551, %v1552
      %v1554 = vsel %vm833, %v1509, 0.0
      %v1555 = vadd.f32 %v1553, %v1554
      %v1556 = vsel %vm833, %v1510, 0.0
      %v1557 = vadd.f32 %v1555, %v1556
      %v1558 = vsel %vm833, %v1511, 0.0
      %v1559 = vadd.f32 %v1557, %v1558
      %v1560 = vsel %vm833, %v1512, 0.0
      %v1561 = vadd.f32 %v1559, %v1560
      %v1562 = vsel %vm833, %v1513, 0.0
      %v1563 = vadd.f32 %v1561, %v1562
      %v1564 = vsel %vm833, %v1514, 0.0
      %v1565 = vadd.f32 %v1563, %v1564
      %v1566 = vsel %vm833, %v1515, 0.0
      %v1567 = vadd.f32 %v1565, %v1566
      %v1568 = vsel %vm833, %v1516, 0.0
      %v1569 = vadd.f32 %v1567, %v1568
      %v1570 = vsel %vm833, %v1517, 0.0
      %v1571 = vadd.f32 %v1569, %v1570
      %v1572 = vsel %vm833, %v1518, 0.0
      %v1573 = vadd.f32 %v1571, %v1572
      %v1574 = vsel %vm833, %v1519, 0.0
      %v1575 = vadd.f32 %v1573, %v1574
      %v1576 = vsel %vm833, %v1520, 0.0
      %v1577 = vadd.f32 %v1575, %v1576
      %v1578 = vsel %vm833, %v1521, 0.0
      %v1579 = vadd.f32 %v1577, %v1578
      %v1580 = vsel %vm833, %v1522, 0.0
      %v1581 = vadd.f32 %v1579, %v1580
      %v1582 = vsel %vm833, %v1523, 0.0
      %v1583 = vadd.f32 %v1581, %v1582
      %v1584 = vsel %vm833, %v1524, 0.0
      %v1585 = vadd.f32 %v1583, %v1584
      %v1586 = vsel %vm833, %v1525, 0.0
      %v1587 = vadd.f32 %v1585, %v1586
      %v1588 = vsel %vm833, %v1526, 0.0
      %v1589 = vadd.f32 %v1587, %v1588
      %v1590 = vrot.slane %v1589, 4
      %v1591 = vadd.f32 %v1589, %v1590
      %v1592 = vrot.slane %v1591, 2
      %v1593 = vadd.f32 %v1591, %v1592
      %v1594 = vrot.slane %v1593, 1
      %v1595 = vadd.f32 %v1593, %v1594
      %v1596 = vrcp.pop 256.0
      %v1597 = vmul.f32 %v1595, %v1596
      %v1598 = vmul.f32 %v1495, %v1495
      %v1599 = vmul.f32 %v1496, %v1496
      %v1600 = vmul.f32 %v1497, %v1497
      %v1601 = vmul.f32 %v1498, %v1498
      %v1602 = vmul.f32 %v1499, %v1499
      %v1603 = vmul.f32 %v1500, %v1500
      %v1604 = vmul.f32 %v1501, %v1501
      %v1605 = vmul.f32 %v1502, %v1502
      %v1606 = vmul.f32 %v1503, %v1503
      %v1607 = vmul.f32 %v1504, %v1504
      %v1608 = vmul.f32 %v1505, %v1505
      %v1609 = vmul.f32 %v1506, %v1506
      %v1610 = vmul.f32 %v1507, %v1507
      %v1611 = vmul.f32 %v1508, %v1508
      %v1612 = vmul.f32 %v1509, %v1509
      %v1613 = vmul.f32 %v1510, %v1510
      %v1614 = vmul.f32 %v1511, %v1511
      %v1615 = vmul.f32 %v1512, %v1512
      %v1616 = vmul.f32 %v1513, %v1513
      %v1617 = vmul.f32 %v1514, %v1514
      %v1618 = vmul.f32 %v1515, %v1515
      %v1619 = vmul.f32 %v1516, %v1516
      %v1620 = vmul.f32 %v1517, %v1517
      %v1621 = vmul.f32 %v1518, %v1518
      %v1622 = vmul.f32 %v1519, %v1519
      %v1623 = vmul.f32 %v1520, %v1520
      %v1624 = vmul.f32 %v1521, %v1521
      %v1625 = vmul.f32 %v1522, %v1522
      %v1626 = vmul.f32 %v1523, %v1523
      %v1627 = vmul.f32 %v1524, %v1524
      %v1628 = vmul.f32 %v1525, %v1525
      %v1629 = vmul.f32 %v1526, %v1526
      %v1630 = vsel %vm833, %v1598, 0.0
      %v1631 = vsel %vm833, %v1599, 0.0
      %v1632 = vadd.f32 %v1630, %v1631
      %v1633 = vsel %vm833, %v1600, 0.0
      %v1634 = vadd.f32 %v1632, %v1633
      %v1635 = vsel %vm833, %v1601, 0.0
      %v1636 = vadd.f32 %v1634, %v1635
      %v1637 = vsel %vm833, %v1602, 0.0
      %v1638 = vadd.f32 %v1636, %v1637
      %v1639 = vsel %vm833, %v1603, 0.0
      %v1640 = vadd.f32 %v1638, %v1639
      %v1641 = vsel %vm833, %v1604, 0.0
      %v1642 = vadd.f32 %v1640, %v1641
      %v1643 = vsel %vm833, %v1605, 0.0
      %v1644 = vadd.f32 %v1642, %v1643
      %v1645 = vsel %vm833, %v1606, 0.0
      %v1646 = vadd.f32 %v1644, %v1645
      %v1647 = vsel %vm833, %v1607, 0.0
      %v1648 = vadd.f32 %v1646, %v1647
      %v1649 = vsel %vm833, %v1608, 0.0
      %v1650 = vadd.f32 %v1648, %v1649
      %v1651 = vsel %vm833, %v1609, 0.0
      %v1652 = vadd.f32 %v1650, %v1651
      %v1653 = vsel %vm833, %v1610, 0.0
      %v1654 = vadd.f32 %v1652, %v1653
      %v1655 = vsel %vm833, %v1611, 0.0
      %v1656 = vadd.f32 %v1654, %v1655
      %v1657 = vsel %vm833, %v1612, 0.0
      %v1658 = vadd.f32 %v1656, %v1657
      %v1659 = vsel %vm833, %v1613, 0.0
      %v1660 = vadd.f32 %v1658, %v1659
      %v1661 = vsel %vm833, %v1614, 0.0
      %v1662 = vadd.f32 %v1660, %v1661
      %v1663 = vsel %vm833, %v1615, 0.0
      %v1664 = vadd.f32 %v1662, %v1663
      %v1665 = vsel %vm833, %v1616, 0.0
      %v1666 = vadd.f32 %v1664, %v1665
      %v1667 = vsel %vm833, %v1617, 0.0
      %v1668 = vadd.f32 %v1666, %v1667
      %v1669 = vsel %vm833, %v1618, 0.0
      %v1670 = vadd.f32 %v1668, %v1669
      %v1671 = vsel %vm833, %v1619, 0.0
      %v1672 = vadd.f32 %v1670, %v1671
      %v1673 = vsel %vm833, %v1620, 0.0
      %v1674 = vadd.f32 %v1672, %v1673
      %v1675 = vsel %vm833, %v1621, 0.0
      %v1676 = vadd.f32 %v1674, %v1675
      %v1677 = vsel %vm833, %v1622, 0.0
      %v1678 = vadd.f32 %v1676, %v1677
      %v1679 = vsel %vm833, %v1623, 0.0
      %v1680 = vadd.f32 %v1678, %v1679
      %v1681 = vsel %vm833, %v1624, 0.0
      %v1682 = vadd.f32 %v1680, %v1681
      %v1683 = vsel %vm833, %v1625, 0.0
      %v1684 = vadd.f32 %v1682, %v1683
      %v1685 = vsel %vm833, %v1626, 0.0
      %v1686 = vadd.f32 %v1684, %v1685
      %v1687 = vsel %vm833, %v1627, 0.0
      %v1688 = vadd.f32 %v1686, %v1687
      %v1689 = vsel %vm833, %v1628, 0.0
      %v1690 = vadd.f32 %v1688, %v1689
      %v1691 = vsel %vm833, %v1629, 0.0
      %v1692 = vadd.f32 %v1690, %v1691
      %v1693 = vrot.slane %v1692, 4
      %v1694 = vadd.f32 %v1692, %v1693
      %v1695 = vrot.slane %v1694, 2
      %v1696 = vadd.f32 %v1694, %v1695
      %v1697 = vrot.slane %v1696, 1
      %v1698 = vadd.f32 %v1696, %v1697
      %v1699 = vmul.f32 %v1698, %v1596
      %v1700 = vmul.f32 %v1597, %v1597
      %v1701 = vsub.f32 %v1699, %v1700
      %v1702 = vmax.f32 %v1701, 0.0
      %v1703 = vsub.f32 %v1495, %v1597
      %v1704 = vsub.f32 %v1496, %v1597
      %v1705 = vsub.f32 %v1497, %v1597
      %v1706 = vsub.f32 %v1498, %v1597
      %v1707 = vsub.f32 %v1499, %v1597
      %v1708 = vsub.f32 %v1500, %v1597
      %v1709 = vsub.f32 %v1501, %v1597
      %v1710 = vsub.f32 %v1502, %v1597
      %v1711 = vsub.f32 %v1503, %v1597
      %v1712 = vsub.f32 %v1504, %v1597
      %v1713 = vsub.f32 %v1505, %v1597
      %v1714 = vsub.f32 %v1506, %v1597
      %v1715 = vsub.f32 %v1507, %v1597
      %v1716 = vsub.f32 %v1508, %v1597
      %v1717 = vsub.f32 %v1509, %v1597
      %v1718 = vsub.f32 %v1510, %v1597
      %v1719 = vsub.f32 %v1511, %v1597
      %v1720 = vsub.f32 %v1512, %v1597
      %v1721 = vsub.f32 %v1513, %v1597
      %v1722 = vsub.f32 %v1514, %v1597
      %v1723 = vsub.f32 %v1515, %v1597
      %v1724 = vsub.f32 %v1516, %v1597
      %v1725 = vsub.f32 %v1517, %v1597
      %v1726 = vsub.f32 %v1518, %v1597
      %v1727 = vsub.f32 %v1519, %v1597
      %v1728 = vsub.f32 %v1520, %v1597
      %v1729 = vsub.f32 %v1521, %v1597
      %v1730 = vsub.f32 %v1522, %v1597
      %v1731 = vsub.f32 %v1523, %v1597
      %v1732 = vsub.f32 %v1524, %v1597
      %v1733 = vsub.f32 %v1525, %v1597
      %v1734 = vsub.f32 %v1526, %v1597
      %v1735 = vadd.f32 %v1702, 1e-05
      %v1736 = vrsqrt.pop %v1735
      %v1737 = vmul.f32 %v1703, %v1736
      %v1738 = vmul.f32 %v1704, %v1736
      %v1739 = vmul.f32 %v1705, %v1736
      %v1740 = vmul.f32 %v1706, %v1736
      %v1741 = vmul.f32 %v1707, %v1736
      %v1742 = vmul.f32 %v1708, %v1736
      %v1743 = vmul.f32 %v1709, %v1736
      %v1744 = vmul.f32 %v1710, %v1736
      %v1745 = vmul.f32 %v1711, %v1736
      %v1746 = vmul.f32 %v1712, %v1736
      %v1747 = vmul.f32 %v1713, %v1736
      %v1748 = vmul.f32 %v1714, %v1736
      %v1749 = vmul.f32 %v1715, %v1736
      %v1750 = vmul.f32 %v1716, %v1736
      %v1751 = vmul.f32 %v1717, %v1736
      %v1752 = vmul.f32 %v1718, %v1736
      %v1753 = vmul.f32 %v1719, %v1736
      %v1754 = vmul.f32 %v1720, %v1736
      %v1755 = vmul.f32 %v1721, %v1736
      %v1756 = vmul.f32 %v1722, %v1736
      %v1757 = vmul.f32 %v1723, %v1736
      %v1758 = vmul.f32 %v1724, %v1736
      %v1759 = vmul.f32 %v1725, %v1736
      %v1760 = vmul.f32 %v1726, %v1736
      %v1761 = vmul.f32 %v1727, %v1736
      %v1762 = vmul.f32 %v1728, %v1736
      %v1763 = vmul.f32 %v1729, %v1736
      %v1764 = vmul.f32 %v1730, %v1736
      %v1765 = vmul.f32 %v1731, %v1736
      %v1766 = vmul.f32 %v1732, %v1736
      %v1767 = vmul.f32 %v1733, %v1736
      %v1768 = vmul.f32 %v1734, %v1736
      %vm1769 = vcmp.ge.f32.partialorder %v1737, 0.0
      %vm1770 = vcmp.ge.f32.partialorder %v1738, 0.0
      %vm1771 = vcmp.ge.f32.partialorder %v1739, 0.0
      %vm1772 = vcmp.ge.f32.partialorder %v1740, 0.0
      %vm1773 = vcmp.ge.f32.partialorder %v1741, 0.0
      %vm1774 = vcmp.ge.f32.partialorder %v1742, 0.0
      %vm1775 = vcmp.ge.f32.partialorder %v1743, 0.0
      %vm1776 = vcmp.ge.f32.partialorder %v1744, 0.0
      %vm1777 = vcmp.ge.f32.partialorder %v1745, 0.0
      %vm1778 = vcmp.ge.f32.partialorder %v1746, 0.0
      %vm1779 = vcmp.ge.f32.partialorder %v1747, 0.0
      %vm1780 = vcmp.ge.f32.partialorder %v1748, 0.0
      %vm1781 = vcmp.ge.f32.partialorder %v1749, 0.0
      %vm1782 = vcmp.ge.f32.partialorder %v1750, 0.0
      %vm1783 = vcmp.ge.f32.partialorder %v1751, 0.0
      %vm1784 = vcmp.ge.f32.partialorder %v1752, 0.0
      %vm1785 = vcmp.ge.f32.partialorder %v1753, 0.0
      %vm1786 = vcmp.ge.f32.partialorder %v1754, 0.0
      %vm1787 = vcmp.ge.f32.partialorder %v1755, 0.0
      %vm1788 = vcmp.ge.f32.partialorder %v1756, 0.0
      %vm1789 = vcmp.ge.f32.partialorder %v1757, 0.0
      %vm1790 = vcmp.ge.f32.partialorder %v1758, 0.0
      %vm1791 = vcmp.ge.f32.partialorder %v1759, 0.0
      %vm1792 = vcmp.ge.f32.partialorder %v1760, 0.0
      %vm1793 = vcmp.ge.f32.partialorder %v1761, 0.0
      %vm1794 = vcmp.ge.f32.partialorder %v1762, 0.0
      %vm1795 = vcmp.ge.f32.partialorder %v1763, 0.0
      %vm1796 = vcmp.ge.f32.partialorder %v1764, 0.0
      %vm1797 = vcmp.ge.f32.partialorder %v1765, 0.0
      %vm1798 = vcmp.ge.f32.partialorder %v1766, 0.0
      %vm1799 = vcmp.ge.f32.partialorder %v1767, 0.0
      %vm1800 = vcmp.ge.f32.partialorder %v1768, 0.0
      %v1801 = vmul.f32 %v1737, 0.1
      %v1802 = vmul.f32 %v1738, 0.1
      %v1803 = vmul.f32 %v1739, 0.1
      %v1804 = vmul.f32 %v1740, 0.1
      %v1805 = vmul.f32 %v1741, 0.1
      %v1806 = vmul.f32 %v1742, 0.1
      %v1807 = vmul.f32 %v1743, 0.1
      %v1808 = vmul.f32 %v1744, 0.1
      %v1809 = vmul.f32 %v1745, 0.1
      %v1810 = vmul.f32 %v1746, 0.1
      %v1811 = vmul.f32 %v1747, 0.1
      %v1812 = vmul.f32 %v1748, 0.1
      %v1813 = vmul.f32 %v1749, 0.1
      %v1814 = vmul.f32 %v1750, 0.1
      %v1815 = vmul.f32 %v1751, 0.1
      %v1816 = vmul.f32 %v1752, 0.1
      %v1817 = vmul.f32 %v1753, 0.1
      %v1818 = vmul.f32 %v1754, 0.1
      %v1819 = vmul.f32 %v1755, 0.1
      %v1820 = vmul.f32 %v1756, 0.1
      %v1821 = vmul.f32 %v1757, 0.1
      %v1822 = vmul.f32 %v1758, 0.1
      %v1823 = vmul.f32 %v1759, 0.1
      %v1824 = vmul.f32 %v1760, 0.1
      %v1825 = vmul.f32 %v1761, 0.1
      %v1826 = vmul.f32 %v1762, 0.1
      %v1827 = vmul.f32 %v1763, 0.1
      %v1828 = vmul.f32 %v1764, 0.1
      %v1829 = vmul.f32 %v1765, 0.1
      %v1830 = vmul.f32 %v1766, 0.1
      %v1831 = vmul.f32 %v1767, 0.1
      %v1832 = vmul.f32 %v1768, 0.1
      %v1833 = vsel %vm1769, %v1737, %v1801
      %v1834 = vsel %vm1770, %v1738, %v1802
      %v1835 = vsel %vm1771, %v1739, %v1803
      %v1836 = vsel %vm1772, %v1740, %v1804
      %v1837 = vsel %vm1773, %v1741, %v1805
      %v1838 = vsel %vm1774, %v1742, %v1806
      %v1839 = vsel %vm1775, %v1743, %v1807
      %v1840 = vsel %vm1776, %v1744, %v1808
      %v1841 = vsel %vm1777, %v1745, %v1809
      %v1842 = vsel %vm1778, %v1746, %v1810
      %v1843 = vsel %vm1779, %v1747, %v1811
      %v1844 = vsel %vm1780, %v1748, %v1812
      %v1845 = vsel %vm1781, %v1749, %v1813
      %v1846 = vsel %vm1782, %v1750, %v1814
      %v1847 = vsel %vm1783, %v1751, %v1815
      %v1848 = vsel %vm1784, %v1752, %v1816
      %v1849 = vsel %vm1785, %v1753, %v1817
      %v1850 = vsel %vm1786, %v1754, %v1818
      %v1851 = vsel %vm1787, %v1755, %v1819
      %v1852 = vsel %vm1788, %v1756, %v1820
      %v1853 = vsel %vm1789, %v1757, %v1821
      %v1854 = vsel %vm1790, %v1758, %v1822
      %v1855 = vsel %vm1791, %v1759, %v1823
      %v1856 = vsel %vm1792, %v1760, %v1824
      %v1857 = vsel %vm1793, %v1761, %v1825
      %v1858 = vsel %vm1794, %v1762, %v1826
      %v1859 = vsel %vm1795, %v1763, %v1827
      %v1860 = vsel %vm1796, %v1764, %v1828
      %v1861 = vsel %vm1797, %v1765, %v1829
      %v1862 = vsel %vm1798, %v1766, %v1830
      %v1863 = vsel %vm1799, %v1767, %v1831
      %v1864 = vsel %vm1800, %v1768, %v1832
      %v1865 = vpack.c.bf16 %v1834, %v1833
      %v1866 = vpack.c.bf16 %v1836, %v1835
      %v1867 = vpack.c.bf16 %v1838, %v1837
      %v1868 = vpack.c.bf16 %v1840, %v1839
      %v1869 = vpack.c.bf16 %v1842, %v1841
      %v1870 = vpack.c.bf16 %v1844, %v1843
      %v1871 = vpack.c.bf16 %v1846, %v1845
      %v1872 = vpack.c.bf16 %v1848, %v1847
      %v1873 = vpack.c.bf16 %v1850, %v1849
      %v1874 = vpack.c.bf16 %v1852, %v1851
      %v1875 = vpack.c.bf16 %v1854, %v1853
      %v1876 = vpack.c.bf16 %v1856, %v1855
      %v1877 = vpack.c.bf16 %v1858, %v1857
      %v1878 = vpack.c.bf16 %v1860, %v1859
      %v1879 = vpack.c.bf16 %v1862, %v1861
      %v1880 = vpack.c.bf16 %v1864, %v1863
      %v1882 = vshrl.u32 %v1865, 16
      %v1884 = vrot.slane %v1882, 7
      %v1885 = vshll.u32 %v1865, 16
      %v1887 = vor.u32 %v1884, %v1885
      %v1889 = vshrl.u32 %v1866, 16
      %v1891 = vrot.slane %v1889, 7
      %v1892 = vshll.u32 %v1866, 16
      %v1894 = vor.u32 %v1891, %v1892
      %v1896 = vshrl.u32 %v1867, 16
      %v1898 = vrot.slane %v1896, 7
      %v1899 = vshll.u32 %v1867, 16
      %v1901 = vor.u32 %v1898, %v1899
      %v1903 = vshrl.u32 %v1868, 16
      %v1905 = vrot.slane %v1903, 7
      %v1906 = vshll.u32 %v1868, 16
      %v1908 = vor.u32 %v1905, %v1906
      %v1910 = vshrl.u32 %v1869, 16
      %v1912 = vrot.slane %v1910, 7
      %v1913 = vshll.u32 %v1869, 16
      %v1915 = vor.u32 %v1912, %v1913
      %v1917 = vshrl.u32 %v1870, 16
      %v1919 = vrot.slane %v1917, 7
      %v1920 = vshll.u32 %v1870, 16
      %v1922 = vor.u32 %v1919, %v1920
      %v1924 = vshrl.u32 %v1871, 16
      %v1926 = vrot.slane %v1924, 7
      %v1927 = vshll.u32 %v1871, 16
      %v1929 = vor.u32 %v1926, %v1927
      %v1931 = vshrl.u32 %v1872, 16
      %v1933 = vrot.slane %v1931, 7
      %v1934 = vshll.u32 %v1872, 16
      %v1936 = vor.u32 %v1933, %v1934
      %v1938 = vshrl.u32 %v1873, 16
      %v1940 = vrot.slane %v1938, 7
      %v1941 = vshll.u32 %v1873, 16
      %v1943 = vor.u32 %v1940, %v1941
      %v1945 = vshrl.u32 %v1874, 16
      %v1947 = vrot.slane %v1945, 7
      %v1948 = vshll.u32 %v1874, 16
      %v1950 = vor.u32 %v1947, %v1948
      %v1952 = vshrl.u32 %v1875, 16
      %v1954 = vrot.slane %v1952, 7
      %v1955 = vshll.u32 %v1875, 16
      %v1957 = vor.u32 %v1954, %v1955
      %v1959 = vshrl.u32 %v1876, 16
      %v1961 = vrot.slane %v1959, 7
      %v1962 = vshll.u32 %v1876, 16
      %v1964 = vor.u32 %v1961, %v1962
      %v1966 = vshrl.u32 %v1877, 16
      %v1968 = vrot.slane %v1966, 7
      %v1969 = vshll.u32 %v1877, 16
      %v1971 = vor.u32 %v1968, %v1969
      %v1973 = vshrl.u32 %v1878, 16
      %v1975 = vrot.slane %v1973, 7
      %v1976 = vshll.u32 %v1878, 16
      %v1978 = vor.u32 %v1975, %v1976
      %v1980 = vshrl.u32 %v1879, 16
      %v1982 = vrot.slane %v1980, 7
      %v1983 = vshll.u32 %v1879, 16
      %v1985 = vor.u32 %v1982, %v1983
      %v1987 = vshrl.u32 %v1880, 16
      %v1989 = vrot.slane %v1987, 7
      %v1990 = vshll.u32 %v1880, 16
      %v1992 = vor.u32 %v1989, %v1990
      %v2025 = vsel %vm439, 0, %v1887
      %v2026 = vsel %vm439, 0, %v1894
      %v2027 = vsel %vm439, 0, %v1901
      %v2028 = vsel %vm439, 0, %v1908
      %v2029 = vsel %vm439, 0, %v1915
      %v2030 = vsel %vm439, 0, %v1922
      %v2031 = vsel %vm439, 0, %v1929
      %v2032 = vsel %vm439, 0, %v1936
      %v2033 = vsel %vm439, 0, %v1943
      %v2034 = vsel %vm439, 0, %v1950
      %v2035 = vsel %vm439, 0, %v1957
      %v2036 = vsel %vm439, 0, %v1964
      %v2037 = vsel %vm439, 0, %v1971
      %v2038 = vsel %vm439, 0, %v1978
      %v2039 = vsel %vm439, 0, %v1985
      %v2040 = vsel %vm439, 0, %v1992
      %v2041 = vsel %vm439, %v1884, 0
      %v2042 = vsel %vm439, %v1891, 0
      %v2043 = vsel %vm439, %v1898, 0
      %v2044 = vsel %vm439, %v1905, 0
      %v2045 = vsel %vm439, %v1912, 0
      %v2046 = vsel %vm439, %v1919, 0
      %v2047 = vsel %vm439, %v1926, 0
      %v2048 = vsel %vm439, %v1933, 0
      %v2049 = vsel %vm439, %v1940, 0
      %v2050 = vsel %vm439, %v1947, 0
      %v2051 = vsel %vm439, %v1954, 0
      %v2052 = vsel %vm439, %v1961, 0
      %v2053 = vsel %vm439, %v1968, 0
      %v2054 = vsel %vm439, %v1975, 0
      %v2055 = vsel %vm439, %v1982, 0
      %v2056 = vsel %vm439, %v1989, 0
      %v2058 = vshrl.u32 %v2025, 16
      %v2060 = vshll.u32 %v2025, 16
      %v2062 = vrot.slane %v2060, 1
      %v2063 = vor.u32 %v2058, %v2062
      %v2065 = vshll.u32 %v2041, 16
      %v2067 = vrot.slane %v2065, 1
      %v2068 = vsel %vm474, %v2063, %v2067
      %v2070 = vshrl.u32 %v2026, 16
      %v2072 = vshll.u32 %v2026, 16
      %v2074 = vrot.slane %v2072, 1
      %v2075 = vor.u32 %v2070, %v2074
      %v2077 = vshll.u32 %v2042, 16
      %v2079 = vrot.slane %v2077, 1
      %v2080 = vsel %vm474, %v2075, %v2079
      %v2082 = vshrl.u32 %v2027, 16
      %v2084 = vshll.u32 %v2027, 16
      %v2086 = vrot.slane %v2084, 1
      %v2087 = vor.u32 %v2082, %v2086
      %v2089 = vshll.u32 %v2043, 16
      %v2091 = vrot.slane %v2089, 1
      %v2092 = vsel %vm474, %v2087, %v2091
      %v2094 = vshrl.u32 %v2028, 16
      %v2096 = vshll.u32 %v2028, 16
      %v2098 = vrot.slane %v2096, 1
      %v2099 = vor.u32 %v2094, %v2098
      %v2101 = vshll.u32 %v2044, 16
      %v2103 = vrot.slane %v2101, 1
      %v2104 = vsel %vm474, %v2099, %v2103
      %v2106 = vshrl.u32 %v2029, 16
      %v2108 = vshll.u32 %v2029, 16
      %v2110 = vrot.slane %v2108, 1
      %v2111 = vor.u32 %v2106, %v2110
      %v2113 = vshll.u32 %v2045, 16
      %v2115 = vrot.slane %v2113, 1
      %v2116 = vsel %vm474, %v2111, %v2115
      %v2118 = vshrl.u32 %v2030, 16
      %v2120 = vshll.u32 %v2030, 16
      %v2122 = vrot.slane %v2120, 1
      %v2123 = vor.u32 %v2118, %v2122
      %v2125 = vshll.u32 %v2046, 16
      %v2127 = vrot.slane %v2125, 1
      %v2128 = vsel %vm474, %v2123, %v2127
      %v2130 = vshrl.u32 %v2031, 16
      %v2132 = vshll.u32 %v2031, 16
      %v2134 = vrot.slane %v2132, 1
      %v2135 = vor.u32 %v2130, %v2134
      %v2137 = vshll.u32 %v2047, 16
      %v2139 = vrot.slane %v2137, 1
      %v2140 = vsel %vm474, %v2135, %v2139
      %v2142 = vshrl.u32 %v2032, 16
      %v2144 = vshll.u32 %v2032, 16
      %v2146 = vrot.slane %v2144, 1
      %v2147 = vor.u32 %v2142, %v2146
      %v2149 = vshll.u32 %v2048, 16
      %v2151 = vrot.slane %v2149, 1
      %v2152 = vsel %vm474, %v2147, %v2151
      %v2154 = vshrl.u32 %v2033, 16
      %v2156 = vshll.u32 %v2033, 16
      %v2158 = vrot.slane %v2156, 1
      %v2159 = vor.u32 %v2154, %v2158
      %v2161 = vshll.u32 %v2049, 16
      %v2163 = vrot.slane %v2161, 1
      %v2164 = vsel %vm474, %v2159, %v2163
      %v2166 = vshrl.u32 %v2034, 16
      %v2168 = vshll.u32 %v2034, 16
      %v2170 = vrot.slane %v2168, 1
      %v2171 = vor.u32 %v2166, %v2170
      %v2173 = vshll.u32 %v2050, 16
      %v2175 = vrot.slane %v2173, 1
      %v2176 = vsel %vm474, %v2171, %v2175
      %v2178 = vshrl.u32 %v2035, 16
      %v2180 = vshll.u32 %v2035, 16
      %v2182 = vrot.slane %v2180, 1
      %v2183 = vor.u32 %v2178, %v2182
      %v2185 = vshll.u32 %v2051, 16
      %v2187 = vrot.slane %v2185, 1
      %v2188 = vsel %vm474, %v2183, %v2187
      %v2190 = vshrl.u32 %v2036, 16
      %v2192 = vshll.u32 %v2036, 16
      %v2194 = vrot.slane %v2192, 1
      %v2195 = vor.u32 %v2190, %v2194
      %v2197 = vshll.u32 %v2052, 16
      %v2199 = vrot.slane %v2197, 1
      %v2200 = vsel %vm474, %v2195, %v2199
      %v2202 = vshrl.u32 %v2037, 16
      %v2204 = vshll.u32 %v2037, 16
      %v2206 = vrot.slane %v2204, 1
      %v2207 = vor.u32 %v2202, %v2206
      %v2209 = vshll.u32 %v2053, 16
      %v2211 = vrot.slane %v2209, 1
      %v2212 = vsel %vm474, %v2207, %v2211
      %v2214 = vshrl.u32 %v2038, 16
      %v2216 = vshll.u32 %v2038, 16
      %v2218 = vrot.slane %v2216, 1
      %v2219 = vor.u32 %v2214, %v2218
      %v2221 = vshll.u32 %v2054, 16
      %v2223 = vrot.slane %v2221, 1
      %v2224 = vsel %vm474, %v2219, %v2223
      %v2226 = vshrl.u32 %v2039, 16
      %v2228 = vshll.u32 %v2039, 16
      %v2230 = vrot.slane %v2228, 1
      %v2231 = vor.u32 %v2226, %v2230
      %v2233 = vshll.u32 %v2055, 16
      %v2235 = vrot.slane %v2233, 1
      %v2236 = vsel %vm474, %v2231, %v2235
      %v2238 = vshrl.u32 %v2040, 16
      %v2240 = vshll.u32 %v2040, 16
      %v2242 = vrot.slane %v2240, 1
      %v2243 = vor.u32 %v2238, %v2242
      %v2245 = vshll.u32 %v2056, 16
      %v2247 = vrot.slane %v2245, 1
      %v2248 = vsel %vm474, %v2243, %v2247
      %2249 = vrot.lane.b32.xlu0 %v2068, 16
      %v2250 = vpop.permute.xlu0 %2249
      %2251 = vrot.lane.b32.xlu0 %v2080, 16
      %v2252 = vpop.permute.xlu0 %2251
      %2253 = vrot.lane.b32.xlu0 %v2092, 16
      %v2254 = vpop.permute.xlu0 %2253
      %2255 = vrot.lane.b32.xlu0 %v2104, 16
      %v2256 = vpop.permute.xlu0 %2255
      %2257 = vrot.lane.b32.xlu0 %v2116, 16
      %v2258 = vpop.permute.xlu0 %2257
      %2259 = vrot.lane.b32.xlu0 %v2128, 16
      %v2260 = vpop.permute.xlu0 %2259
      %2261 = vrot.lane.b32.xlu0 %v2140, 16
      %v2262 = vpop.permute.xlu0 %2261
      %2263 = vrot.lane.b32.xlu0 %v2152, 16
      %v2264 = vpop.permute.xlu0 %2263
      %2265 = vrot.lane.b32.xlu0 %v2164, 16
      %v2266 = vpop.permute.xlu0 %2265
      %2267 = vrot.lane.b32.xlu0 %v2176, 16
      %v2268 = vpop.permute.xlu0 %2267
      %2269 = vrot.lane.b32.xlu0 %v2188, 16
      %v2270 = vpop.permute.xlu0 %2269
      %2271 = vrot.lane.b32.xlu0 %v2200, 16
      %v2272 = vpop.permute.xlu0 %2271
      %2273 = vrot.lane.b32.xlu0 %v2212, 16
      %v2274 = vpop.permute.xlu0 %2273
      %2275 = vrot.lane.b32.xlu0 %v2224, 16
      %v2276 = vpop.permute.xlu0 %2275
      %2277 = vrot.lane.b32.xlu0 %v2236, 16
      %v2278 = vpop.permute.xlu0 %2277
      %2279 = vrot.lane.b32.xlu0 %v2248, 16
      %v2280 = vpop.permute.xlu0 %2279
      %v2313 = vrot.slane %v2025, 1
      %v2314 = vrot.slane %v2041, 1
      %v2315 = vsel %vm747, %v2313, %v2314
      %v2316 = vrot.slane %v2026, 1
      %v2317 = vrot.slane %v2042, 1
      %v2318 = vsel %vm747, %v2316, %v2317
      %v2319 = vrot.slane %v2027, 1
      %v2320 = vrot.slane %v2043, 1
      %v2321 = vsel %vm747, %v2319, %v2320
      %v2322 = vrot.slane %v2028, 1
      %v2323 = vrot.slane %v2044, 1
      %v2324 = vsel %vm747, %v2322, %v2323
      %v2325 = vrot.slane %v2029, 1
      %v2326 = vrot.slane %v2045, 1
      %v2327 = vsel %vm747, %v2325, %v2326
      %v2328 = vrot.slane %v2030, 1
      %v2329 = vrot.slane %v2046, 1
      %v2330 = vsel %vm747, %v2328, %v2329
      %v2331 = vrot.slane %v2031, 1
      %v2332 = vrot.slane %v2047, 1
      %v2333 = vsel %vm747, %v2331, %v2332
      %v2334 = vrot.slane %v2032, 1
      %v2335 = vrot.slane %v2048, 1
      %v2336 = vsel %vm747, %v2334, %v2335
      %v2337 = vrot.slane %v2033, 1
      %v2338 = vrot.slane %v2049, 1
      %v2339 = vsel %vm747, %v2337, %v2338
      %v2340 = vrot.slane %v2034, 1
      %v2341 = vrot.slane %v2050, 1
      %v2342 = vsel %vm747, %v2340, %v2341
      %v2343 = vrot.slane %v2035, 1
      %v2344 = vrot.slane %v2051, 1
      %v2345 = vsel %vm747, %v2343, %v2344
      %v2346 = vrot.slane %v2036, 1
      %v2347 = vrot.slane %v2052, 1
      %v2348 = vsel %vm747, %v2346, %v2347
      %v2349 = vrot.slane %v2037, 1
      %v2350 = vrot.slane %v2053, 1
      %v2351 = vsel %vm747, %v2349, %v2350
      %v2352 = vrot.slane %v2038, 1
      %v2353 = vrot.slane %v2054, 1
      %v2354 = vsel %vm747, %v2352, %v2353
      %v2355 = vrot.slane %v2039, 1
      %v2356 = vrot.slane %v2055, 1
      %v2357 = vsel %vm747, %v2355, %v2356
      %v2358 = vrot.slane %v2040, 1
      %v2359 = vrot.slane %v2056, 1
      %v2360 = vsel %vm747, %v2358, %v2359
      %2361 = vrot.lane.b32.xlu0 %v2315, 32
      %v2362 = vpop.permute.xlu0 %2361
      %2363 = vrot.lane.b32.xlu0 %v2318, 32
      %v2364 = vpop.permute.xlu0 %2363
      %2365 = vrot.lane.b32.xlu0 %v2321, 32
      %v2366 = vpop.permute.xlu0 %2365
      %2367 = vrot.lane.b32.xlu0 %v2324, 32
      %v2368 = vpop.permute.xlu0 %2367
      %2369 = vrot.lane.b32.xlu0 %v2327, 32
      %v2370 = vpop.permute.xlu0 %2369
      %2371 = vrot.lane.b32.xlu0 %v2330, 32
      %v2372 = vpop.permute.xlu0 %2371
      %2373 = vrot.lane.b32.xlu0 %v2333, 32
      %v2374 = vpop.permute.xlu0 %2373
      %2375 = vrot.lane.b32.xlu0 %v2336, 32
      %v2376 = vpop.permute.xlu0 %2375
      %2377 = vrot.lane.b32.xlu0 %v2339, 32
      %v2378 = vpop.permute.xlu0 %2377
      %2379 = vrot.lane.b32.xlu0 %v2342, 32
      %v2380 = vpop.permute.xlu0 %2379
      %2381 = vrot.lane.b32.xlu0 %v2345, 32
      %v2382 = vpop.permute.xlu0 %2381
      %2383 = vrot.lane.b32.xlu0 %v2348, 32
      %v2384 = vpop.permute.xlu0 %2383
      %2385 = vrot.lane.b32.xlu0 %v2351, 32
      %v2386 = vpop.permute.xlu0 %2385
      %2387 = vrot.lane.b32.xlu0 %v2354, 32
      %v2388 = vpop.permute.xlu0 %2387
      %2389 = vrot.lane.b32.xlu0 %v2357, 32
      %v2390 = vpop.permute.xlu0 %2389
      %2391 = vrot.lane.b32.xlu0 %v2360, 32
      %v2392 = vpop.permute.xlu0 %2391
      %v2394 = vsel %vm833, %v2025, %v2250
      %v2396 = vsel %vm833, %v2026, %v2252
      %v2398 = vsel %vm833, %v2027, %v2254
      %v2400 = vsel %vm833, %v2028, %v2256
      %v2402 = vsel %vm833, %v2029, %v2258
      %v2404 = vsel %vm833, %v2030, %v2260
      %v2406 = vsel %vm833, %v2031, %v2262
      %v2408 = vsel %vm833, %v2032, %v2264
      %v2410 = vsel %vm833, %v2033, %v2266
      %v2412 = vsel %vm833, %v2034, %v2268
      %v2414 = vsel %vm833, %v2035, %v2270
      %v2416 = vsel %vm833, %v2036, %v2272
      %v2418 = vsel %vm833, %v2037, %v2274
      %v2420 = vsel %vm833, %v2038, %v2276
      %v2422 = vsel %vm833, %v2039, %v2278
      %v2424 = vsel %vm833, %v2040, %v2280
      %v2426 = vsel %vm868, %v2394, %v2362
      %v2428 = vsel %vm868, %v2396, %v2364
      %v2430 = vsel %vm868, %v2398, %v2366
      %v2432 = vsel %vm868, %v2400, %v2368
      %v2434 = vsel %vm868, %v2402, %v2370
      %v2436 = vsel %vm868, %v2404, %v2372
      %v2438 = vsel %vm868, %v2406, %v2374
      %v2440 = vsel %vm868, %v2408, %v2376
      %v2442 = vsel %vm868, %v2410, %v2378
      %v2444 = vsel %vm868, %v2412, %v2380
      %v2446 = vsel %vm868, %v2414, %v2382
      %v2448 = vsel %vm868, %v2416, %v2384
      %v2450 = vsel %vm868, %v2418, %v2386
      %v2452 = vsel %vm868, %v2420, %v2388
      %v2454 = vsel %vm868, %v2422, %v2390
      %v2456 = vsel %vm868, %v2424, %v2392
      %v2457 = vld [vmem:[%s2] sm:$0xf]
      %v2458 = vld [vmem:[%s2 + $0x4] sm:$0xf]
      %v2459 = vld [vmem:[%s2 + $0x8] sm:$0xf]
      %v2460 = vld [vmem:[%s2 + $0xc] sm:$0xf]
      %v2461 = vld [vmem:[%s2 + $0x10] sm:$0xf]
      %v2462 = vld [vmem:[%s2 + $0x14] sm:$0xf]
      %s2463 = scalar_lea.vmem %s2, 24
      %v2464 = vld [vmem:[%s2463] sm:$0xf]
      %v2465 = vld [vmem:[%s2463 + $0x4] sm:$0xf]
      %v2466 = vld [vmem:[%s2463 + $0x8] sm:$0xf]
      %v2467 = vld [vmem:[%s2463 + $0xc] sm:$0xf]
      %v2468 = vld [vmem:[%s2463 + $0x10] sm:$0xf]
      %v2469 = vld [vmem:[%s2463 + $0x14] sm:$0xf]
      %v2476 = vunpack.c.l.b16 %v2464
      %v2477 = vunpack.c.l.b16 %v2465
      %v2478 = vunpack.c.l.b16 %v2466
      %v2479 = vunpack.c.l.b16 %v2467
      %v2480 = vunpack.c.l.b16 %v2468
      %v2481 = vunpack.c.l.b16 %v2469
      %v2482 = vpack.c.b16 %v2477, %v2476
      %v2483 = vpack.c.b16 %v2479, %v2478
      %v2484 = vpack.c.b16 %v2481, %v2480
      %v2488 = vsel %vm934, %v2426, 0
      %v2490 = vsel %vm934, %v2428, 0
      %v2492 = vsel %vm934, %v2430, 0
      %v2494 = vsel %vm934, %v2432, 0
      %v2496 = vsel %vm934, %v2434, 0
      %v2498 = vsel %vm934, %v2436, 0
      %v2500 = vsel %vm934, %v2438, 0
      %v2502 = vsel %vm934, %v2440, 0
      %v2504 = vsel %vm934, %v2442, 0
      %v2506 = vsel %vm934, %v2444, 0
      %v2508 = vsel %vm934, %v2446, 0
      %v2510 = vsel %vm934, %v2448, 0
      %v2512 = vsel %vm934, %v2450, 0
      %v2514 = vsel %vm934, %v2452, 0
      %v2516 = vsel %vm934, %v2454, 0
      %v2518 = vsel %vm934, %v2456, 0
      %2520 = vmatprep.subr.bf16.mxu0 0
      %2521 = vmatpush1.bf16.msra.mxu0 %v2482
      %2522 = vmatprep.subr.bf16.mxu0 0
      %2523 = vmatpush1.bf16.msra.mxu0 %v2483
      %2524 = vmatprep.subr.bf16.mxu0 0
      %2525 = vmatpush1.bf16.msra.mxu0 %v2484
      %2526 = vmatprep.subr.bf16.mxu0 0
      %2527 = vmatpush1.bf16.msra.mxu0 0
      %2528 = vmatprep.subr.bf16.mxu0 0
      %2529 = vmatpush1.bf16.msra.mxu0 0
      %2530 = vmatprep.subr.bf16.mxu0 0
      %2531 = vmatpush1.bf16.msra.mxu0 0
      %2532 = vmatprep.subr.bf16.mxu0 0
      %2533 = vmatpush1.bf16.msra.mxu0 0
      %2534 = vmatprep.subr.bf16.mxu0 0
      %2535 = vmatpush1.bf16.msra.mxu0 0
      %2536 = vmatprep.subr.bf16.mxu0 0
      %2537 = vmatpush1.bf16.msra.mxu0 0
      %2538 = vmatprep.subr.bf16.mxu0 0
      %2539 = vmatpush1.bf16.msra.mxu0 0
      %2540 = vmatprep.subr.bf16.mxu0 0
      %2541 = vmatpush1.bf16.msra.mxu0 0
      %2542 = vmatprep.subr.bf16.mxu0 0
      %2543 = vmatpush1.bf16.msra.mxu0 0
      %2544 = vmatprep.subr.bf16.mxu0 0
      %2545 = vmatpush1.bf16.msra.mxu0 0
      %2546 = vmatprep.subr.bf16.mxu0 0
      %2547 = vmatpush1.bf16.msra.mxu0 0
      %2548 = vmatprep.subr.bf16.mxu0 0
      %2549 = vmatpush1.bf16.msra.mxu0 0
      %2550 = vmatprep.subr.bf16.mxu0 0
      %2551 = vmatpush1.bf16.msra.mxu0 0
      %2552 = vmatprep.mubr.bf16.mxu0 0
      %2553 = vmatmul.mubr.bf16.gmra.mrb[0].mxu0 %v2488
      %v2554 = vpop.f32.mrb[0].mxu0
      %v2555 = vadd.f32 0.0, %v2554
      %v2556 = vpop.f32.mrb[0].mxu0
      %v2557 = vpop.f32.mrb[0].mxu0
      %v2558 = vadd.f32 0.0, %v2557
      %v2559 = vpop.f32.mrb[0].mxu0
      %2560 = vmatprep.mubr.bf16.mxu0 0
      %2561 = vmatmul.mubr.bf16.gmra.mrb[0].mxu0 %v2490
      %v2562 = vpop.f32.mrb[0].mxu0
      %v2563 = vadd.f32 0.0, %v2562
      %v2564 = vpop.f32.mrb[0].mxu0
      %v2565 = vpop.f32.mrb[0].mxu0
      %v2566 = vadd.f32 0.0, %v2565
      %v2567 = vpop.f32.mrb[0].mxu0
      %2568 = vmatprep.mubr.bf16.mxu0 0
      %2569 = vmatmul.mubr.bf16.gmra.mrb[0].mxu0 %v2492
      %v2570 = vpop.f32.mrb[0].mxu0
      %v2571 = vadd.f32 0.0, %v2570
      %v2572 = vpop.f32.mrb[0].mxu0
      %v2573 = vpop.f32.mrb[0].mxu0
      %v2574 = vadd.f32 0.0, %v2573
      %v2575 = vpop.f32.mrb[0].mxu0
      %2576 = vmatprep.mubr.bf16.mxu0 0
      %2577 = vmatmul.mubr.bf16.gmra.mrb[0].mxu0 %v2494
      %v2578 = vpop.f32.mrb[0].mxu0
      %v2579 = vadd.f32 0.0, %v2578
      %v2580 = vpop.f32.mrb[0].mxu0
      %v2581 = vpop.f32.mrb[0].mxu0
      %v2582 = vadd.f32 0.0, %v2581
      %v2583 = vpop.f32.mrb[0].mxu0
      %2584 = vmatprep.mubr.bf16.mxu0 0
      %2585 = vmatmul.mubr.bf16.gmra.mrb[0].mxu0 %v2496
      %v2586 = vpop.f32.mrb[0].mxu0
      %v2587 = vadd.f32 0.0, %v2586
      %v2588 = vpop.f32.mrb[0].mxu0
      %v2589 = vpop.f32.mrb[0].mxu0
      %v2590 = vadd.f32 0.0, %v2589
      %v2591 = vpop.f32.mrb[0].mxu0
      %2592 = vmatprep.mubr.bf16.mxu0 0
      %2593 = vmatmul.mubr.bf16.gmra.mrb[0].mxu0 %v2498
      %v2594 = vpop.f32.mrb[0].mxu0
      %v2595 = vadd.f32 0.0, %v2594
      %v2596 = vpop.f32.mrb[0].mxu0
      %v2597 = vpop.f32.mrb[0].mxu0
      %v2598 = vadd.f32 0.0, %v2597
      %v2599 = vpop.f32.mrb[0].mxu0
      %2600 = vmatprep.mubr.bf16.mxu0 0
      %2601 = vmatmul.mubr.bf16.gmra.mrb[0].mxu0 %v2500
      %v2602 = vpop.f32.mrb[0].mxu0
      %v2603 = vadd.f32 0.0, %v2602
      %v2604 = vpop.f32.mrb[0].mxu0
      %v2605 = vpop.f32.mrb[0].mxu0
      %v2606 = vadd.f32 0.0, %v2605
      %v2607 = vpop.f32.mrb[0].mxu0
      %2608 = vmatprep.mubr.bf16.mxu0 0
      %2609 = vmatmul.mubr.bf16.gmra.mrb[0].mxu0 %v2502
      %v2610 = vpop.f32.mrb[0].mxu0
      %v2611 = vadd.f32 0.0, %v2610
      %v2612 = vpop.f32.mrb[0].mxu0
      %v2613 = vpop.f32.mrb[0].mxu0
      %v2614 = vadd.f32 0.0, %v2613
      %v2615 = vpop.f32.mrb[0].mxu0
      %2616 = vmatprep.mubr.bf16.mxu0 0
      %2617 = vmatmul.mubr.bf16.gmra.mrb[0].mxu0 %v2504
      %v2618 = vpop.f32.mrb[0].mxu0
      %v2619 = vadd.f32 0.0, %v2618
      %v2620 = vpop.f32.mrb[0].mxu0
      %v2621 = vpop.f32.mrb[0].mxu0
      %v2622 = vadd.f32 0.0, %v2621
      %v2623 = vpop.f32.mrb[0].mxu0
      %2624 = vmatprep.mubr.bf16.mxu0 0
      %2625 = vmatmul.mubr.bf16.gmra.mrb[0].mxu0 %v2506
      %v2626 = vpop.f32.mrb[0].mxu0
      %v2627 = vadd.f32 0.0, %v2626
      %v2628 = vpop.f32.mrb[0].mxu0
      %v2629 = vpop.f32.mrb[0].mxu0
      %v2630 = vadd.f32 0.0, %v2629
      %v2631 = vpop.f32.mrb[0].mxu0
      %2632 = vmatprep.mubr.bf16.mxu0 0
      %2633 = vmatmul.mubr.bf16.gmra.mrb[0].mxu0 %v2508
      %v2634 = vpop.f32.mrb[0].mxu0
      %v2635 = vadd.f32 0.0, %v2634
      %v2636 = vpop.f32.mrb[0].mxu0
      %v2637 = vpop.f32.mrb[0].mxu0
      %v2638 = vadd.f32 0.0, %v2637
      %v2639 = vpop.f32.mrb[0].mxu0
      %2640 = vmatprep.mubr.bf16.mxu0 0
      %2641 = vmatmul.mubr.bf16.gmra.mrb[0].mxu0 %v2510
      %v2642 = vpop.f32.mrb[0].mxu0
      %v2643 = vadd.f32 0.0, %v2642
      %v2644 = vpop.f32.mrb[0].mxu0
      %v2645 = vpop.f32.mrb[0].mxu0
      %v2646 = vadd.f32 0.0, %v2645
      %v2647 = vpop.f32.mrb[0].mxu0
      %2648 = vmatprep.mubr.bf16.mxu0 0
      %2649 = vmatmul.mubr.bf16.gmra.mrb[0].mxu0 %v2512
      %v2650 = vpop.f32.mrb[0].mxu0
      %v2651 = vadd.f32 0.0, %v2650
      %v2652 = vpop.f32.mrb[0].mxu0
      %v2653 = vpop.f32.mrb[0].mxu0
      %v2654 = vadd.f32 0.0, %v2653
      %v2655 = vpop.f32.mrb[0].mxu0
      %2656 = vmatprep.mubr.bf16.mxu0 0
      %2657 = vmatmul.mubr.bf16.gmra.mrb[0].mxu0 %v2514
      %v2658 = vpop.f32.mrb[0].mxu0
      %v2659 = vadd.f32 0.0, %v2658
      %v2660 = vpop.f32.mrb[0].mxu0
      %v2661 = vpop.f32.mrb[0].mxu0
      %v2662 = vadd.f32 0.0, %v2661
      %v2663 = vpop.f32.mrb[0].mxu0
      %2664 = vmatprep.mubr.bf16.mxu0 0
      %2665 = vmatmul.mubr.bf16.gmra.mrb[0].mxu0 %v2516
      %v2666 = vpop.f32.mrb[0].mxu0
      %v2667 = vadd.f32 0.0, %v2666
      %v2668 = vpop.f32.mrb[0].mxu0
      %v2669 = vpop.f32.mrb[0].mxu0
      %v2670 = vadd.f32 0.0, %v2669
      %v2671 = vpop.f32.mrb[0].mxu0
      %2672 = vmatprep.mubr.bf16.mxu0 0
      %2673 = vmatmul.mubr.bf16.gmra.mrb[0].mxu0 %v2518
      %v2674 = vpop.f32.mrb[0].mxu0
      %v2675 = vadd.f32 0.0, %v2674
      %v2676 = vpop.f32.mrb[0].mxu0
      %v2677 = vpop.f32.mrb[0].mxu0
      %v2678 = vadd.f32 0.0, %v2677
      %v2679 = vpop.f32.mrb[0].mxu0
      %2680 = vdwg.mxu0
      %v2687 = vunpack.c.l.b16 %v2457
      %v2688 = vunpack.c.l.b16 %v2458
      %v2689 = vunpack.c.l.b16 %v2459
      %v2690 = vunpack.c.l.b16 %v2460
      %v2691 = vunpack.c.l.b16 %v2461
      %v2692 = vunpack.c.l.b16 %v2462
      %v2693 = vpack.c.b16 %v2688, %v2687
      %v2694 = vpack.c.b16 %v2690, %v2689
      %v2695 = vpack.c.b16 %v2692, %v2691
      %2699 = vmatprep.subr.bf16.mxu0 0
      %2700 = vmatpush1.bf16.msra.mxu0 %v2693
      %2701 = vmatprep.subr.bf16.mxu0 0
      %2702 = vmatpush1.bf16.msra.mxu0 %v2694
      %2703 = vmatprep.subr.bf16.mxu0 0
      %2704 = vmatpush1.bf16.msra.mxu0 %v2695
      %2705 = vmatprep.subr.bf16.mxu0 0
      %2706 = vmatpush1.bf16.msra.mxu0 0
      %2707 = vmatprep.subr.bf16.mxu0 0
      %2708 = vmatpush1.bf16.msra.mxu0 0
      %2709 = vmatprep.subr.bf16.mxu0 0
      %2710 = vmatpush1.bf16.msra.mxu0 0
      %2711 = vmatprep.subr.bf16.mxu0 0
      %2712 = vmatpush1.bf16.msra.mxu0 0
      %2713 = vmatprep.subr.bf16.mxu0 0
      %2714 = vmatpush1.bf16.msra.mxu0 0
      %2715 = vmatprep.subr.bf16.mxu0 0
      %2716 = vmatpush1.bf16.msra.mxu0 0
      %2717 = vmatprep.subr.bf16.mxu0 0
      %2718 = vmatpush1.bf16.msra.mxu0 0
      %2719 = vmatprep.subr.bf16.mxu0 0
      %2720 = vmatpush1.bf16.msra.mxu0 0
      %2721 = vmatprep.subr.bf16.mxu0 0
      %2722 = vmatpush1.bf16.msra.mxu0 0
      %2723 = vmatprep.subr.bf16.mxu0 0
      %2724 = vmatpush1.bf16.msra.mxu0 0
      %2725 = vmatprep.subr.bf16.mxu0 0
      %2726 = vmatpush1.bf16.msra.mxu0 0
      %2727 = vmatprep.subr.bf16.mxu0 0
      %2728 = vmatpush1.bf16.msra.mxu0 0
      %2729 = vmatprep.subr.bf16.mxu0 0
      %2730 = vmatpush1.bf16.msra.mxu0 0
      %2731 = vmatprep.mubr.bf16.mxu0 0
      %2732 = vmatmul.mubr.bf16.gmra.mrb[0].mxu0 %v1146
      %v2733 = vpop.f32.mrb[0].mxu0
      %v2734 = vadd.f32 %v2555, %v2733
      %v2735 = vpop.f32.mrb[0].mxu0
      %v2736 = vpop.f32.mrb[0].mxu0
      %v2737 = vadd.f32 %v2558, %v2736
      %v2738 = vpop.f32.mrb[0].mxu0
      %2739 = vmatprep.mubr.bf16.mxu0 0
      %2740 = vmatmul.mubr.bf16.gmra.mrb[0].mxu0 %v2488
      %v2741 = vpop.f32.mrb[0].mxu0
      %v2742 = vadd.f32 %v2563, %v2741
      %v2743 = vpop.f32.mrb[0].mxu0
      %v2744 = vpop.f32.mrb[0].mxu0
      %v2745 = vadd.f32 %v2566, %v2744
      %v2746 = vpop.f32.mrb[0].mxu0
      %2747 = vmatprep.mubr.bf16.mxu0 0
      %2748 = vmatmul.mubr.bf16.gmra.mrb[0].mxu0 %v2490
      %v2749 = vpop.f32.mrb[0].mxu0
      %v2750 = vadd.f32 %v2571, %v2749
      %v2751 = vpop.f32.mrb[0].mxu0
      %v2752 = vpop.f32.mrb[0].mxu0
      %v2753 = vadd.f32 %v2574, %v2752
      %v2754 = vpop.f32.mrb[0].mxu0
      %2755 = vmatprep.mubr.bf16.mxu0 0
      %2756 = vmatmul.mubr.bf16.gmra.mrb[0].mxu0 %v2492
      %v2757 = vpop.f32.mrb[0].mxu0
      %v2758 = vadd.f32 %v2579, %v2757
      %v2759 = vpop.f32.mrb[0].mxu0
      %v2760 = vpop.f32.mrb[0].mxu0
      %v2761 = vadd.f32 %v2582, %v2760
      %v2762 = vpop.f32.mrb[0].mxu0
      %2763 = vmatprep.mubr.bf16.mxu0 0
      %2764 = vmatmul.mubr.bf16.gmra.mrb[0].mxu0 %v2494
      %v2765 = vpop.f32.mrb[0].mxu0
      %v2766 = vadd.f32 %v2587, %v2765
      %v2767 = vpop.f32.mrb[0].mxu0
      %v2768 = vpop.f32.mrb[0].mxu0
      %v2769 = vadd.f32 %v2590, %v2768
      %v2770 = vpop.f32.mrb[0].mxu0
      %2771 = vmatprep.mubr.bf16.mxu0 0
      %2772 = vmatmul.mubr.bf16.gmra.mrb[0].mxu0 %v2496
      %v2773 = vpop.f32.mrb[0].mxu0
      %v2774 = vadd.f32 %v2595, %v2773
      %v2775 = vpop.f32.mrb[0].mxu0
      %v2776 = vpop.f32.mrb[0].mxu0
      %v2777 = vadd.f32 %v2598, %v2776
      %v2778 = vpop.f32.mrb[0].mxu0
      %2779 = vmatprep.mubr.bf16.mxu0 0
      %2780 = vmatmul.mubr.bf16.gmra.mrb[0].mxu0 %v2498
      %v2781 = vpop.f32.mrb[0].mxu0
      %v2782 = vadd.f32 %v2603, %v2781
      %v2783 = vpop.f32.mrb[0].mxu0
      %v2784 = vpop.f32.mrb[0].mxu0
      %v2785 = vadd.f32 %v2606, %v2784
      %v2786 = vpop.f32.mrb[0].mxu0
      %2787 = vmatprep.mubr.bf16.mxu0 0
      %2788 = vmatmul.mubr.bf16.gmra.mrb[0].mxu0 %v2500
      %v2789 = vpop.f32.mrb[0].mxu0
      %v2790 = vadd.f32 %v2611, %v2789
      %v2791 = vpop.f32.mrb[0].mxu0
      %v2792 = vpop.f32.mrb[0].mxu0
      %v2793 = vadd.f32 %v2614, %v2792
      %v2794 = vpop.f32.mrb[0].mxu0
      %2795 = vmatprep.mubr.bf16.mxu0 0
      %2796 = vmatmul.mubr.bf16.gmra.mrb[0].mxu0 %v2502
      %v2797 = vpop.f32.mrb[0].mxu0
      %v2798 = vadd.f32 %v2619, %v2797
      %v2799 = vpop.f32.mrb[0].mxu0
      %v2800 = vpop.f32.mrb[0].mxu0
      %v2801 = vadd.f32 %v2622, %v2800
      %v2802 = vpop.f32.mrb[0].mxu0
      %2803 = vmatprep.mubr.bf16.mxu0 0
      %2804 = vmatmul.mubr.bf16.gmra.mrb[0].mxu0 %v2504
      %v2805 = vpop.f32.mrb[0].mxu0
      %v2806 = vadd.f32 %v2627, %v2805
      %v2807 = vpop.f32.mrb[0].mxu0
      %v2808 = vpop.f32.mrb[0].mxu0
      %v2809 = vadd.f32 %v2630, %v2808
      %v2810 = vpop.f32.mrb[0].mxu0
      %2811 = vmatprep.mubr.bf16.mxu0 0
      %2812 = vmatmul.mubr.bf16.gmra.mrb[0].mxu0 %v2506
      %v2813 = vpop.f32.mrb[0].mxu0
      %v2814 = vadd.f32 %v2635, %v2813
      %v2815 = vpop.f32.mrb[0].mxu0
      %v2816 = vpop.f32.mrb[0].mxu0
      %v2817 = vadd.f32 %v2638, %v2816
      %v2818 = vpop.f32.mrb[0].mxu0
      %2819 = vmatprep.mubr.bf16.mxu0 0
      %2820 = vmatmul.mubr.bf16.gmra.mrb[0].mxu0 %v2508
      %v2821 = vpop.f32.mrb[0].mxu0
      %v2822 = vadd.f32 %v2643, %v2821
      %v2823 = vpop.f32.mrb[0].mxu0
      %v2824 = vpop.f32.mrb[0].mxu0
      %v2825 = vadd.f32 %v2646, %v2824
      %v2826 = vpop.f32.mrb[0].mxu0
      %2827 = vmatprep.mubr.bf16.mxu0 0
      %2828 = vmatmul.mubr.bf16.gmra.mrb[0].mxu0 %v2510
      %v2829 = vpop.f32.mrb[0].mxu0
      %v2830 = vadd.f32 %v2651, %v2829
      %v2831 = vpop.f32.mrb[0].mxu0
      %v2832 = vpop.f32.mrb[0].mxu0
      %v2833 = vadd.f32 %v2654, %v2832
      %v2834 = vpop.f32.mrb[0].mxu0
      %2835 = vmatprep.mubr.bf16.mxu0 0
      %2836 = vmatmul.mubr.bf16.gmra.mrb[0].mxu0 %v2512
      %v2837 = vpop.f32.mrb[0].mxu0
      %v2838 = vadd.f32 %v2659, %v2837
      %v2839 = vpop.f32.mrb[0].mxu0
      %v2840 = vpop.f32.mrb[0].mxu0
      %v2841 = vadd.f32 %v2662, %v2840
      %v2842 = vpop.f32.mrb[0].mxu0
      %2843 = vmatprep.mubr.bf16.mxu0 0
      %2844 = vmatmul.mubr.bf16.gmra.mrb[0].mxu0 %v2514
      %v2845 = vpop.f32.mrb[0].mxu0
      %v2846 = vadd.f32 %v2667, %v2845
      %v2847 = vpop.f32.mrb[0].mxu0
      %v2848 = vpop.f32.mrb[0].mxu0
      %v2849 = vadd.f32 %v2670, %v2848
      %v2850 = vpop.f32.mrb[0].mxu0
      %2851 = vmatprep.mubr.bf16.mxu0 0
      %2852 = vmatmul.mubr.bf16.gmra.mrb[0].mxu0 %v2516
      %v2853 = vpop.f32.mrb[0].mxu0
      %v2854 = vadd.f32 %v2675, %v2853
      %v2855 = vpop.f32.mrb[0].mxu0
      %v2856 = vpop.f32.mrb[0].mxu0
      %v2857 = vadd.f32 %v2678, %v2856
      %v2858 = vpop.f32.mrb[0].mxu0
      %2859 = vdwg.mxu0
      %s2860 = scalar_lea.vmem %s2, 48
      %v2861 = vld [vmem:[%s2860] sm:$0xf]
      %v2862 = vld [vmem:[%s2860 + $0x4] sm:$0xf]
      %v2863 = vld [vmem:[%s2860 + $0x8] sm:$0xf]
      %v2864 = vld [vmem:[%s2860 + $0xc] sm:$0xf]
      %v2865 = vld [vmem:[%s2860 + $0x10] sm:$0xf]
      %v2866 = vld [vmem:[%s2860 + $0x14] sm:$0xf]
      %v2873 = vunpack.c.l.b16 %v2861
      %v2874 = vunpack.c.l.b16 %v2862
      %v2875 = vunpack.c.l.b16 %v2863
      %v2876 = vunpack.c.l.b16 %v2864
      %v2877 = vunpack.c.l.b16 %v2865
      %v2878 = vunpack.c.l.b16 %v2866
      %v2879 = vpack.c.b16 %v2874, %v2873
      %v2880 = vpack.c.b16 %v2876, %v2875
      %v2881 = vpack.c.b16 %v2878, %v2877
      %2885 = vmatprep.subr.bf16.mxu0 0
      %2886 = vmatpush1.bf16.msra.mxu0 %v2879
      %2887 = vmatprep.subr.bf16.mxu0 0
      %2888 = vmatpush1.bf16.msra.mxu0 %v2880
      %2889 = vmatprep.subr.bf16.mxu0 0
      %2890 = vmatpush1.bf16.msra.mxu0 %v2881
      %2891 = vmatprep.subr.bf16.mxu0 0
      %2892 = vmatpush1.bf16.msra.mxu0 0
      %2893 = vmatprep.subr.bf16.mxu0 0
      %2894 = vmatpush1.bf16.msra.mxu0 0
      %2895 = vmatprep.subr.bf16.mxu0 0
      %2896 = vmatpush1.bf16.msra.mxu0 0
      %2897 = vmatprep.subr.bf16.mxu0 0
      %2898 = vmatpush1.bf16.msra.mxu0 0
      %2899 = vmatprep.subr.bf16.mxu0 0
      %2900 = vmatpush1.bf16.msra.mxu0 0
      %2901 = vmatprep.subr.bf16.mxu0 0
      %2902 = vmatpush1.bf16.msra.mxu0 0
      %2903 = vmatprep.subr.bf16.mxu0 0
      %2904 = vmatpush1.bf16.msra.mxu0 0
      %2905 = vmatprep.subr.bf16.mxu0 0
      %2906 = vmatpush1.bf16.msra.mxu0 0
      %2907 = vmatprep.subr.bf16.mxu0 0
      %2908 = vmatpush1.bf16.msra.mxu0 0
      %2909 = vmatprep.subr.bf16.mxu0 0
      %2910 = vmatpush1.bf16.msra.mxu0 0
      %2911 = vmatprep.subr.bf16.mxu0 0
      %2912 = vmatpush1.bf16.msra.mxu0 0
      %2913 = vmatprep.subr.bf16.mxu0 0
      %2914 = vmatpush1.bf16.msra.mxu0 0
      %2915 = vmatprep.subr.bf16.mxu0 0
      %2916 = vmatpush1.bf16.msra.mxu0 0
      %2917 = vmatprep.mubr.bf16.mxu0 0
      %2918 = vmatmul.mubr.bf16.gmra.mrb[0].mxu0 %v2490
      %v2919 = vpop.f32.mrb[0].mxu0
      %v2920 = vadd.f32 0.0, %v2919
      %v2921 = vpop.f32.mrb[0].mxu0
      %v2922 = vpop.f32.mrb[0].mxu0
      %v2923 = vadd.f32 0.0, %v2922
      %v2924 = vpop.f32.mrb[0].mxu0
      %2925 = vmatprep.mubr.bf16.mxu0 0
      %2926 = vmatmul.mubr.bf16.gmra.mrb[0].mxu0 %v2492
      %v2927 = vpop.f32.mrb[0].mxu0
      %v2928 = vadd.f32 0.0, %v2927
      %v2929 = vpop.f32.mrb[0].mxu0
      %v2930 = vpop.f32.mrb[0].mxu0
      %v2931 = vadd.f32 0.0, %v2930
      %v2932 = vpop.f32.mrb[0].mxu0
      %2933 = vmatprep.mubr.bf16.mxu0 0
      %2934 = vmatmul.mubr.bf16.gmra.mrb[0].mxu0 %v2494
      %v2935 = vpop.f32.mrb[0].mxu0
      %v2936 = vadd.f32 0.0, %v2935
      %v2937 = vpop.f32.mrb[0].mxu0
      %v2938 = vpop.f32.mrb[0].mxu0
      %v2939 = vadd.f32 0.0, %v2938
      %v2940 = vpop.f32.mrb[0].mxu0
      %2941 = vmatprep.mubr.bf16.mxu0 0
      %2942 = vmatmul.mubr.bf16.gmra.mrb[0].mxu0 %v2496
      %v2943 = vpop.f32.mrb[0].mxu0
      %v2944 = vadd.f32 0.0, %v2943
      %v2945 = vpop.f32.mrb[0].mxu0
      %v2946 = vpop.f32.mrb[0].mxu0
      %v2947 = vadd.f32 0.0, %v2946
      %v2948 = vpop.f32.mrb[0].mxu0
      %2949 = vmatprep.mubr.bf16.mxu0 0
      %2950 = vmatmul.mubr.bf16.gmra.mrb[0].mxu0 %v2498
      %v2951 = vpop.f32.mrb[0].mxu0
      %v2952 = vadd.f32 0.0, %v2951
      %v2953 = vpop.f32.mrb[0].mxu0
      %v2954 = vpop.f32.mrb[0].mxu0
      %v2955 = vadd.f32 0.0, %v2954
      %v2956 = vpop.f32.mrb[0].mxu0
      %2957 = vmatprep.mubr.bf16.mxu0 0
      %2958 = vmatmul.mubr.bf16.gmra.mrb[0].mxu0 %v2500
      %v2959 = vpop.f32.mrb[0].mxu0
      %v2960 = vadd.f32 0.0, %v2959
      %v2961 = vpop.f32.mrb[0].mxu0
      %v2962 = vpop.f32.mrb[0].mxu0
      %v2963 = vadd.f32 0.0, %v2962
      %v2964 = vpop.f32.mrb[0].mxu0
      %2965 = vmatprep.mubr.bf16.mxu0 0
      %2966 = vmatmul.mubr.bf16.gmra.mrb[0].mxu0 %v2502
      %v2967 = vpop.f32.mrb[0].mxu0
      %v2968 = vadd.f32 0.0, %v2967
      %v2969 = vpop.f32.mrb[0].mxu0
      %v2970 = vpop.f32.mrb[0].mxu0
      %v2971 = vadd.f32 0.0, %v2970
      %v2972 = vpop.f32.mrb[0].mxu0
      %2973 = vmatprep.mubr.bf16.mxu0 0
      %2974 = vmatmul.mubr.bf16.gmra.mrb[0].mxu0 %v2504
      %v2975 = vpop.f32.mrb[0].mxu0
      %v2976 = vadd.f32 0.0, %v2975
      %v2977 = vpop.f32.mrb[0].mxu0
      %v2978 = vpop.f32.mrb[0].mxu0
      %v2979 = vadd.f32 0.0, %v2978
      %v2980 = vpop.f32.mrb[0].mxu0
      %2981 = vmatprep.mubr.bf16.mxu0 0
      %2982 = vmatmul.mubr.bf16.gmra.mrb[0].mxu0 %v2506
      %v2983 = vpop.f32.mrb[0].mxu0
      %v2984 = vadd.f32 0.0, %v2983
      %v2985 = vpop.f32.mrb[0].mxu0
      %v2986 = vpop.f32.mrb[0].mxu0
      %v2987 = vadd.f32 0.0, %v2986
      %v2988 = vpop.f32.mrb[0].mxu0
      %2989 = vmatprep.mubr.bf16.mxu0 0
      %2990 = vmatmul.mubr.bf16.gmra.mrb[0].mxu0 %v2508
      %v2991 = vpop.f32.mrb[0].mxu0
      %v2992 = vadd.f32 0.0, %v2991
      %v2993 = vpop.f32.mrb[0].mxu0
      %v2994 = vpop.f32.mrb[0].mxu0
      %v2995 = vadd.f32 0.0, %v2994
      %v2996 = vpop.f32.mrb[0].mxu0
      %2997 = vmatprep.mubr.bf16.mxu0 0
      %2998 = vmatmul.mubr.bf16.gmra.mrb[0].mxu0 %v2510
      %v2999 = vpop.f32.mrb[0].mxu0
      %v3000 = vadd.f32 0.0, %v2999
      %v3001 = vpop.f32.mrb[0].mxu0
      %v3002 = vpop.f32.mrb[0].mxu0
      %v3003 = vadd.f32 0.0, %v3002
      %v3004 = vpop.f32.mrb[0].mxu0
      %3005 = vmatprep.mubr.bf16.mxu0 0
      %3006 = vmatmul.mubr.bf16.gmra.mrb[0].mxu0 %v2512
      %v3007 = vpop.f32.mrb[0].mxu0
      %v3008 = vadd.f32 0.0, %v3007
      %v3009 = vpop.f32.mrb[0].mxu0
      %v3010 = vpop.f32.mrb[0].mxu0
      %v3011 = vadd.f32 0.0, %v3010
      %v3012 = vpop.f32.mrb[0].mxu0
      %3013 = vmatprep.mubr.bf16.mxu0 0
      %3014 = vmatmul.mubr.bf16.gmra.mrb[0].mxu0 %v2514
      %v3015 = vpop.f32.mrb[0].mxu0
      %v3016 = vadd.f32 0.0, %v3015
      %v3017 = vpop.f32.mrb[0].mxu0
      %v3018 = vpop.f32.mrb[0].mxu0
      %v3019 = vadd.f32 0.0, %v3018
      %v3020 = vpop.f32.mrb[0].mxu0
      %3021 = vmatprep.mubr.bf16.mxu0 0
      %3022 = vmatmul.mubr.bf16.gmra.mrb[0].mxu0 %v2516
      %v3023 = vpop.f32.mrb[0].mxu0
      %v3024 = vadd.f32 0.0, %v3023
      %v3025 = vpop.f32.mrb[0].mxu0
      %v3026 = vpop.f32.mrb[0].mxu0
      %v3027 = vadd.f32 0.0, %v3026
      %v3028 = vpop.f32.mrb[0].mxu0
      %3029 = vmatprep.mubr.bf16.mxu0 0
      %3030 = vmatmul.mubr.bf16.gmra.mrb[0].mxu0 %v2518
      %v3031 = vpop.f32.mrb[0].mxu0
      %v3032 = vadd.f32 0.0, %v3031
      %v3033 = vpop.f32.mrb[0].mxu0
      %v3034 = vpop.f32.mrb[0].mxu0
      %v3035 = vadd.f32 0.0, %v3034
      %v3036 = vpop.f32.mrb[0].mxu0
      %3037 = vmatprep.mubr.bf16.mxu0 0
      %3038 = vmatmul.mubr.bf16.gmra.mrb[0].mxu0 %v1146
      %v3039 = vpop.f32.mrb[0].mxu0
      %v3040 = vadd.f32 0.0, %v3039
      %v3041 = vpop.f32.mrb[0].mxu0
      %v3042 = vpop.f32.mrb[0].mxu0
      %v3043 = vadd.f32 0.0, %v3042
      %v3044 = vpop.f32.mrb[0].mxu0
      %3045 = vdwg.mxu0
      %v3046 = vadd.f32 %v2734, %v2920
      %v3047 = vadd.f32 %v2737, %v2923
      %v3048 = vadd.f32 %v2742, %v2928
      %v3049 = vadd.f32 %v2745, %v2931
      %v3050 = vadd.f32 %v2750, %v2936
      %v3051 = vadd.f32 %v2753, %v2939
      %v3052 = vadd.f32 %v2758, %v2944
      %v3053 = vadd.f32 %v2761, %v2947
      %v3054 = vadd.f32 %v2766, %v2952
      %v3055 = vadd.f32 %v2769, %v2955
      %v3056 = vadd.f32 %v2774, %v2960
      %v3057 = vadd.f32 %v2777, %v2963
      %v3058 = vadd.f32 %v2782, %v2968
      %v3059 = vadd.f32 %v2785, %v2971
      %v3060 = vadd.f32 %v2790, %v2976
      %v3061 = vadd.f32 %v2793, %v2979
      %v3062 = vadd.f32 %v2798, %v2984
      %v3063 = vadd.f32 %v2801, %v2987
      %v3064 = vadd.f32 %v2806, %v2992
      %v3065 = vadd.f32 %v2809, %v2995
      %v3066 = vadd.f32 %v2814, %v3000
      %v3067 = vadd.f32 %v2817, %v3003
      %v3068 = vadd.f32 %v2822, %v3008
      %v3069 = vadd.f32 %v2825, %v3011
      %v3070 = vadd.f32 %v2830, %v3016
      %v3071 = vadd.f32 %v2833, %v3019
      %v3072 = vadd.f32 %v2838, %v3024
      %v3073 = vadd.f32 %v2841, %v3027
      %v3074 = vadd.f32 %v2846, %v3032
      %v3075 = vadd.f32 %v2849, %v3035
      %v3076 = vadd.f32 %v2854, %v3040
      %v3077 = vadd.f32 %v2857, %v3043
      %v3078 = vsel %vm833, %v3046, 0.0
      %v3079 = vsel %vm833, %v3047, 0.0
      %v3080 = vadd.f32 %v3078, %v3079
      %v3081 = vsel %vm833, %v3048, 0.0
      %v3082 = vadd.f32 %v3080, %v3081
      %v3083 = vsel %vm833, %v3049, 0.0
      %v3084 = vadd.f32 %v3082, %v3083
      %v3085 = vsel %vm833, %v3050, 0.0
      %v3086 = vadd.f32 %v3084, %v3085
      %v3087 = vsel %vm833, %v3051, 0.0
      %v3088 = vadd.f32 %v3086, %v3087
      %v3089 = vsel %vm833, %v3052, 0.0
      %v3090 = vadd.f32 %v3088, %v3089
      %v3091 = vsel %vm833, %v3053, 0.0
      %v3092 = vadd.f32 %v3090, %v3091
      %v3093 = vsel %vm833, %v3054, 0.0
      %v3094 = vadd.f32 %v3092, %v3093
      %v3095 = vsel %vm833, %v3055, 0.0
      %v3096 = vadd.f32 %v3094, %v3095
      %v3097 = vsel %vm833, %v3056, 0.0
      %v3098 = vadd.f32 %v3096, %v3097
      %v3099 = vsel %vm833, %v3057, 0.0
      %v3100 = vadd.f32 %v3098, %v3099
      %v3101 = vsel %vm833, %v3058, 0.0
      %v3102 = vadd.f32 %v3100, %v3101
      %v3103 = vsel %vm833, %v3059, 0.0
      %v3104 = vadd.f32 %v3102, %v3103
      %v3105 = vsel %vm833, %v3060, 0.0
      %v3106 = vadd.f32 %v3104, %v3105
      %v3107 = vsel %vm833, %v3061, 0.0
      %v3108 = vadd.f32 %v3106, %v3107
      %v3109 = vsel %vm833, %v3062, 0.0
      %v3110 = vadd.f32 %v3108, %v3109
      %v3111 = vsel %vm833, %v3063, 0.0
      %v3112 = vadd.f32 %v3110, %v3111
      %v3113 = vsel %vm833, %v3064, 0.0
      %v3114 = vadd.f32 %v3112, %v3113
      %v3115 = vsel %vm833, %v3065, 0.0
      %v3116 = vadd.f32 %v3114, %v3115
      %v3117 = vsel %vm833, %v3066, 0.0
      %v3118 = vadd.f32 %v3116, %v3117
      %v3119 = vsel %vm833, %v3067, 0.0
      %v3120 = vadd.f32 %v3118, %v3119
      %v3121 = vsel %vm833, %v3068, 0.0
      %v3122 = vadd.f32 %v3120, %v3121
      %v3123 = vsel %vm833, %v3069, 0.0
      %v3124 = vadd.f32 %v3122, %v3123
      %v3125 = vsel %vm833, %v3070, 0.0
      %v3126 = vadd.f32 %v3124, %v3125
      %v3127 = vsel %vm833, %v3071, 0.0
      %v3128 = vadd.f32 %v3126, %v3127
      %v3129 = vsel %vm833, %v3072, 0.0
      %v3130 = vadd.f32 %v3128, %v3129
      %v3131 = vsel %vm833, %v3073, 0.0
      %v3132 = vadd.f32 %v3130, %v3131
      %v3133 = vsel %vm833, %v3074, 0.0
      %v3134 = vadd.f32 %v3132, %v3133
      %v3135 = vsel %vm833, %v3075, 0.0
      %v3136 = vadd.f32 %v3134, %v3135
      %v3137 = vsel %vm833, %v3076, 0.0
      %v3138 = vadd.f32 %v3136, %v3137
      %v3139 = vsel %vm833, %v3077, 0.0
      %v3140 = vadd.f32 %v3138, %v3139
      %v3141 = vrot.slane %v3140, 4
      %v3142 = vadd.f32 %v3140, %v3141
      %v3143 = vrot.slane %v3142, 2
      %v3144 = vadd.f32 %v3142, %v3143
      %v3145 = vrot.slane %v3144, 1
      %v3146 = vadd.f32 %v3144, %v3145
      %v3147 = vmul.f32 %v3146, %v1596
      %v3148 = vmul.f32 %v3046, %v3046
      %v3149 = vmul.f32 %v3047, %v3047
      %v3150 = vmul.f32 %v3048, %v3048
      %v3151 = vmul.f32 %v3049, %v3049
      %v3152 = vmul.f32 %v3050, %v3050
      %v3153 = vmul.f32 %v3051, %v3051
      %v3154 = vmul.f32 %v3052, %v3052
      %v3155 = vmul.f32 %v3053, %v3053
      %v3156 = vmul.f32 %v3054, %v3054
      %v3157 = vmul.f32 %v3055, %v3055
      %v3158 = vmul.f32 %v3056, %v3056
      %v3159 = vmul.f32 %v3057, %v3057
      %v3160 = vmul.f32 %v3058, %v3058
      %v3161 = vmul.f32 %v3059, %v3059
      %v3162 = vmul.f32 %v3060, %v3060
      %v3163 = vmul.f32 %v3061, %v3061
      %v3164 = vmul.f32 %v3062, %v3062
      %v3165 = vmul.f32 %v3063, %v3063
      %v3166 = vmul.f32 %v3064, %v3064
      %v3167 = vmul.f32 %v3065, %v3065
      %v3168 = vmul.f32 %v3066, %v3066
      %v3169 = vmul.f32 %v3067, %v3067
      %v3170 = vmul.f32 %v3068, %v3068
      %v3171 = vmul.f32 %v3069, %v3069
      %v3172 = vmul.f32 %v3070, %v3070
      %v3173 = vmul.f32 %v3071, %v3071
      %v3174 = vmul.f32 %v3072, %v3072
      %v3175 = vmul.f32 %v3073, %v3073
      %v3176 = vmul.f32 %v3074, %v3074
      %v3177 = vmul.f32 %v3075, %v3075
      %v3178 = vmul.f32 %v3076, %v3076
      %v3179 = vmul.f32 %v3077, %v3077
      %v3180 = vsel %vm833, %v3148, 0.0
      %v3181 = vsel %vm833, %v3149, 0.0
      %v3182 = vadd.f32 %v3180, %v3181
      %v3183 = vsel %vm833, %v3150, 0.0
      %v3184 = vadd.f32 %v3182, %v3183
      %v3185 = vsel %vm833, %v3151, 0.0
      %v3186 = vadd.f32 %v3184, %v3185
      %v3187 = vsel %vm833, %v3152, 0.0
      %v3188 = vadd.f32 %v3186, %v3187
      %v3189 = vsel %vm833, %v3153, 0.0
      %v3190 = vadd.f32 %v3188, %v3189
      %v3191 = vsel %vm833, %v3154, 0.0
      %v3192 = vadd.f32 %v3190, %v3191
      %v3193 = vsel %vm833, %v3155, 0.0
      %v3194 = vadd.f32 %v3192, %v3193
      %v3195 = vsel %vm833, %v3156, 0.0
      %v3196 = vadd.f32 %v3194, %v3195
      %v3197 = vsel %vm833, %v3157, 0.0
      %v3198 = vadd.f32 %v3196, %v3197
      %v3199 = vsel %vm833, %v3158, 0.0
      %v3200 = vadd.f32 %v3198, %v3199
      %v3201 = vsel %vm833, %v3159, 0.0
      %v3202 = vadd.f32 %v3200, %v3201
      %v3203 = vsel %vm833, %v3160, 0.0
      %v3204 = vadd.f32 %v3202, %v3203
      %v3205 = vsel %vm833, %v3161, 0.0
      %v3206 = vadd.f32 %v3204, %v3205
      %v3207 = vsel %vm833, %v3162, 0.0
      %v3208 = vadd.f32 %v3206, %v3207
      %v3209 = vsel %vm833, %v3163, 0.0
      %v3210 = vadd.f32 %v3208, %v3209
      %v3211 = vsel %vm833, %v3164, 0.0
      %v3212 = vadd.f32 %v3210, %v3211
      %v3213 = vsel %vm833, %v3165, 0.0
      %v3214 = vadd.f32 %v3212, %v3213
      %v3215 = vsel %vm833, %v3166, 0.0
      %v3216 = vadd.f32 %v3214, %v3215
      %v3217 = vsel %vm833, %v3167, 0.0
      %v3218 = vadd.f32 %v3216, %v3217
      %v3219 = vsel %vm833, %v3168, 0.0
      %v3220 = vadd.f32 %v3218, %v3219
      %v3221 = vsel %vm833, %v3169, 0.0
      %v3222 = vadd.f32 %v3220, %v3221
      %v3223 = vsel %vm833, %v3170, 0.0
      %v3224 = vadd.f32 %v3222, %v3223
      %v3225 = vsel %vm833, %v3171, 0.0
      %v3226 = vadd.f32 %v3224, %v3225
      %v3227 = vsel %vm833, %v3172, 0.0
      %v3228 = vadd.f32 %v3226, %v3227
      %v3229 = vsel %vm833, %v3173, 0.0
      %v3230 = vadd.f32 %v3228, %v3229
      %v3231 = vsel %vm833, %v3174, 0.0
      %v3232 = vadd.f32 %v3230, %v3231
      %v3233 = vsel %vm833, %v3175, 0.0
      %v3234 = vadd.f32 %v3232, %v3233
      %v3235 = vsel %vm833, %v3176, 0.0
      %v3236 = vadd.f32 %v3234, %v3235
      %v3237 = vsel %vm833, %v3177, 0.0
      %v3238 = vadd.f32 %v3236, %v3237
      %v3239 = vsel %vm833, %v3178, 0.0
      %v3240 = vadd.f32 %v3238, %v3239
      %v3241 = vsel %vm833, %v3179, 0.0
      %v3242 = vadd.f32 %v3240, %v3241
      %v3243 = vrot.slane %v3242, 4
      %v3244 = vadd.f32 %v3242, %v3243
      %v3245 = vrot.slane %v3244, 2
      %v3246 = vadd.f32 %v3244, %v3245
      %v3247 = vrot.slane %v3246, 1
      %v3248 = vadd.f32 %v3246, %v3247
      %v3249 = vmul.f32 %v3248, %v1596
      %v3250 = vmul.f32 %v3147, %v3147
      %v3251 = vsub.f32 %v3249, %v3250
      %v3252 = vmax.f32 %v3251, 0.0
      %v3253 = vsub.f32 %v3046, %v3147
      %v3254 = vsub.f32 %v3047, %v3147
      %v3255 = vsub.f32 %v3048, %v3147
      %v3256 = vsub.f32 %v3049, %v3147
      %v3257 = vsub.f32 %v3050, %v3147
      %v3258 = vsub.f32 %v3051, %v3147
      %v3259 = vsub.f32 %v3052, %v3147
      %v3260 = vsub.f32 %v3053, %v3147
      %v3261 = vsub.f32 %v3054, %v3147
      %v3262 = vsub.f32 %v3055, %v3147
      %v3263 = vsub.f32 %v3056, %v3147
      %v3264 = vsub.f32 %v3057, %v3147
      %v3265 = vsub.f32 %v3058, %v3147
      %v3266 = vsub.f32 %v3059, %v3147
      %v3267 = vsub.f32 %v3060, %v3147
      %v3268 = vsub.f32 %v3061, %v3147
      %v3269 = vsub.f32 %v3062, %v3147
      %v3270 = vsub.f32 %v3063, %v3147
      %v3271 = vsub.f32 %v3064, %v3147
      %v3272 = vsub.f32 %v3065, %v3147
      %v3273 = vsub.f32 %v3066, %v3147
      %v3274 = vsub.f32 %v3067, %v3147
      %v3275 = vsub.f32 %v3068, %v3147
      %v3276 = vsub.f32 %v3069, %v3147
      %v3277 = vsub.f32 %v3070, %v3147
      %v3278 = vsub.f32 %v3071, %v3147
      %v3279 = vsub.f32 %v3072, %v3147
      %v3280 = vsub.f32 %v3073, %v3147
      %v3281 = vsub.f32 %v3074, %v3147
      %v3282 = vsub.f32 %v3075, %v3147
      %v3283 = vsub.f32 %v3076, %v3147
      %v3284 = vsub.f32 %v3077, %v3147
      %v3285 = vadd.f32 %v3252, 1e-05
      %v3286 = vrsqrt.pop %v3285
      %v3287 = vmul.f32 %v3253, %v3286
      %v3288 = vmul.f32 %v3254, %v3286
      %v3289 = vmul.f32 %v3255, %v3286
      %v3290 = vmul.f32 %v3256, %v3286
      %v3291 = vmul.f32 %v3257, %v3286
      %v3292 = vmul.f32 %v3258, %v3286
      %v3293 = vmul.f32 %v3259, %v3286
      %v3294 = vmul.f32 %v3260, %v3286
      %v3295 = vmul.f32 %v3261, %v3286
      %v3296 = vmul.f32 %v3262, %v3286
      %v3297 = vmul.f32 %v3263, %v3286
      %v3298 = vmul.f32 %v3264, %v3286
      %v3299 = vmul.f32 %v3265, %v3286
      %v3300 = vmul.f32 %v3266, %v3286
      %v3301 = vmul.f32 %v3267, %v3286
      %v3302 = vmul.f32 %v3268, %v3286
      %v3303 = vmul.f32 %v3269, %v3286
      %v3304 = vmul.f32 %v3270, %v3286
      %v3305 = vmul.f32 %v3271, %v3286
      %v3306 = vmul.f32 %v3272, %v3286
      %v3307 = vmul.f32 %v3273, %v3286
      %v3308 = vmul.f32 %v3274, %v3286
      %v3309 = vmul.f32 %v3275, %v3286
      %v3310 = vmul.f32 %v3276, %v3286
      %v3311 = vmul.f32 %v3277, %v3286
      %v3312 = vmul.f32 %v3278, %v3286
      %v3313 = vmul.f32 %v3279, %v3286
      %v3314 = vmul.f32 %v3280, %v3286
      %v3315 = vmul.f32 %v3281, %v3286
      %v3316 = vmul.f32 %v3282, %v3286
      %v3317 = vmul.f32 %v3283, %v3286
      %v3318 = vmul.f32 %v3284, %v3286
      %vm3319 = vcmp.ge.f32.partialorder %v3287, 0.0
      %vm3320 = vcmp.ge.f32.partialorder %v3288, 0.0
      %vm3321 = vcmp.ge.f32.partialorder %v3289, 0.0
      %vm3322 = vcmp.ge.f32.partialorder %v3290, 0.0
      %vm3323 = vcmp.ge.f32.partialorder %v3291, 0.0
      %vm3324 = vcmp.ge.f32.partialorder %v3292, 0.0
      %vm3325 = vcmp.ge.f32.partialorder %v3293, 0.0
      %vm3326 = vcmp.ge.f32.partialorder %v3294, 0.0
      %vm3327 = vcmp.ge.f32.partialorder %v3295, 0.0
      %vm3328 = vcmp.ge.f32.partialorder %v3296, 0.0
      %vm3329 = vcmp.ge.f32.partialorder %v3297, 0.0
      %vm3330 = vcmp.ge.f32.partialorder %v3298, 0.0
      %vm3331 = vcmp.ge.f32.partialorder %v3299, 0.0
      %vm3332 = vcmp.ge.f32.partialorder %v3300, 0.0
      %vm3333 = vcmp.ge.f32.partialorder %v3301, 0.0
      %vm3334 = vcmp.ge.f32.partialorder %v3302, 0.0
      %vm3335 = vcmp.ge.f32.partialorder %v3303, 0.0
      %vm3336 = vcmp.ge.f32.partialorder %v3304, 0.0
      %vm3337 = vcmp.ge.f32.partialorder %v3305, 0.0
      %vm3338 = vcmp.ge.f32.partialorder %v3306, 0.0
      %vm3339 = vcmp.ge.f32.partialorder %v3307, 0.0
      %vm3340 = vcmp.ge.f32.partialorder %v3308, 0.0
      %vm3341 = vcmp.ge.f32.partialorder %v3309, 0.0
      %vm3342 = vcmp.ge.f32.partialorder %v3310, 0.0
      %vm3343 = vcmp.ge.f32.partialorder %v3311, 0.0
      %vm3344 = vcmp.ge.f32.partialorder %v3312, 0.0
      %vm3345 = vcmp.ge.f32.partialorder %v3313, 0.0
      %vm3346 = vcmp.ge.f32.partialorder %v3314, 0.0
      %vm3347 = vcmp.ge.f32.partialorder %v3315, 0.0
      %vm3348 = vcmp.ge.f32.partialorder %v3316, 0.0
      %vm3349 = vcmp.ge.f32.partialorder %v3317, 0.0
      %vm3350 = vcmp.ge.f32.partialorder %v3318, 0.0
      %v3351 = vmul.f32 %v3287, 0.1
      %v3352 = vmul.f32 %v3288, 0.1
      %v3353 = vmul.f32 %v3289, 0.1
      %v3354 = vmul.f32 %v3290, 0.1
      %v3355 = vmul.f32 %v3291, 0.1
      %v3356 = vmul.f32 %v3292, 0.1
      %v3357 = vmul.f32 %v3293, 0.1
      %v3358 = vmul.f32 %v3294, 0.1
      %v3359 = vmul.f32 %v3295, 0.1
      %v3360 = vmul.f32 %v3296, 0.1
      %v3361 = vmul.f32 %v3297, 0.1
      %v3362 = vmul.f32 %v3298, 0.1
      %v3363 = vmul.f32 %v3299, 0.1
      %v3364 = vmul.f32 %v3300, 0.1
      %v3365 = vmul.f32 %v3301, 0.1
      %v3366 = vmul.f32 %v3302, 0.1
      %v3367 = vmul.f32 %v3303, 0.1
      %v3368 = vmul.f32 %v3304, 0.1
      %v3369 = vmul.f32 %v3305, 0.1
      %v3370 = vmul.f32 %v3306, 0.1
      %v3371 = vmul.f32 %v3307, 0.1
      %v3372 = vmul.f32 %v3308, 0.1
      %v3373 = vmul.f32 %v3309, 0.1
      %v3374 = vmul.f32 %v3310, 0.1
      %v3375 = vmul.f32 %v3311, 0.1
      %v3376 = vmul.f32 %v3312, 0.1
      %v3377 = vmul.f32 %v3313, 0.1
      %v3378 = vmul.f32 %v3314, 0.1
      %v3379 = vmul.f32 %v3315, 0.1
      %v3380 = vmul.f32 %v3316, 0.1
      %v3381 = vmul.f32 %v3317, 0.1
      %v3382 = vmul.f32 %v3318, 0.1
      %v3383 = vsel %vm3319, %v3287, %v3351
      %v3384 = vsel %vm3320, %v3288, %v3352
      %v3385 = vsel %vm3321, %v3289, %v3353
      %v3386 = vsel %vm3322, %v3290, %v3354
      %v3387 = vsel %vm3323, %v3291, %v3355
      %v3388 = vsel %vm3324, %v3292, %v3356
      %v3389 = vsel %vm3325, %v3293, %v3357
      %v3390 = vsel %vm3326, %v3294, %v3358
      %v3391 = vsel %vm3327, %v3295, %v3359
      %v3392 = vsel %vm3328, %v3296, %v3360
      %v3393 = vsel %vm3329, %v3297, %v3361
      %v3394 = vsel %vm3330, %v3298, %v3362
      %v3395 = vsel %vm3331, %v3299, %v3363
      %v3396 = vsel %vm3332, %v3300, %v3364
      %v3397 = vsel %vm3333, %v3301, %v3365
      %v3398 = vsel %vm3334, %v3302, %v3366
      %v3399 = vsel %vm3335, %v3303, %v3367
      %v3400 = vsel %vm3336, %v3304, %v3368
      %v3401 = vsel %vm3337, %v3305, %v3369
      %v3402 = vsel %vm3338, %v3306, %v3370
      %v3403 = vsel %vm3339, %v3307, %v3371
      %v3404 = vsel %vm3340, %v3308, %v3372
      %v3405 = vsel %vm3341, %v3309, %v3373
      %v3406 = vsel %vm3342, %v3310, %v3374
      %v3407 = vsel %vm3343, %v3311, %v3375
      %v3408 = vsel %vm3344, %v3312, %v3376
      %v3409 = vsel %vm3345, %v3313, %v3377
      %v3410 = vsel %vm3346, %v3314, %v3378
      %v3411 = vsel %vm3347, %v3315, %v3379
      %v3412 = vsel %vm3348, %v3316, %v3380
      %v3413 = vsel %vm3349, %v3317, %v3381
      %v3414 = vsel %vm3350, %v3318, %v3382
      %3415 = vst.msk [vmem:[%s170] sm:$0xff] %vm833, %v3383
      %3416 = vst.msk [vmem:[%s170 + $0x8] sm:$0xff] %vm833, %v3384
      %3417 = vst.msk [vmem:[%s170 + $0x10] sm:$0xff] %vm833, %v3385
      %3418 = vst.msk [vmem:[%s170 + $0x18] sm:$0xff] %vm833, %v3386
      %3419 = vst.msk [vmem:[%s170 + $0x20] sm:$0xff] %vm833, %v3387
      %3420 = vst.msk [vmem:[%s170 + $0x28] sm:$0xff] %vm833, %v3388
      %3421 = vst.msk [vmem:[%s170 + $0x30] sm:$0xff] %vm833, %v3389
      %3422 = vst.msk [vmem:[%s170 + $0x38] sm:$0xff] %vm833, %v3390
      %3423 = vst.msk [vmem:[%s170 + $0x40] sm:$0xff] %vm833, %v3391
      %3424 = vst.msk [vmem:[%s170 + $0x48] sm:$0xff] %vm833, %v3392
      %3425 = vst.msk [vmem:[%s170 + $0x50] sm:$0xff] %vm833, %v3393
      %3426 = vst.msk [vmem:[%s170 + $0x58] sm:$0xff] %vm833, %v3394
      %3427 = vst.msk [vmem:[%s170 + $0x60] sm:$0xff] %vm833, %v3395
      %3428 = vst.msk [vmem:[%s170 + $0x68] sm:$0xff] %vm833, %v3396
      %3429 = vst.msk [vmem:[%s170 + $0x70] sm:$0xff] %vm833, %v3397
      %3430 = vst.msk [vmem:[%s170 + $0x78] sm:$0xff] %vm833, %v3398
      %3431 = vst.msk [vmem:[%s170 + $0x80] sm:$0xff] %vm833, %v3399
      %3432 = vst.msk [vmem:[%s170 + $0x88] sm:$0xff] %vm833, %v3400
      %3433 = vst.msk [vmem:[%s170 + $0x90] sm:$0xff] %vm833, %v3401
      %3434 = vst.msk [vmem:[%s170 + $0x98] sm:$0xff] %vm833, %v3402
      %3435 = vst.msk [vmem:[%s170 + $0xa0] sm:$0xff] %vm833, %v3403
      %3436 = vst.msk [vmem:[%s170 + $0xa8] sm:$0xff] %vm833, %v3404
      %3437 = vst.msk [vmem:[%s170 + $0xb0] sm:$0xff] %vm833, %v3405
      %3438 = vst.msk [vmem:[%s170 + $0xb8] sm:$0xff] %vm833, %v3406
      %3439 = vst.msk [vmem:[%s170 + $0xc0] sm:$0xff] %vm833, %v3407
      %3440 = vst.msk [vmem:[%s170 + $0xc8] sm:$0xff] %vm833, %v3408
      %3441 = vst.msk [vmem:[%s170 + $0xd0] sm:$0xff] %vm833, %v3409
      %3442 = vst.msk [vmem:[%s170 + $0xd8] sm:$0xff] %vm833, %v3410
      %3443 = vst.msk [vmem:[%s170 + $0xe0] sm:$0xff] %vm833, %v3411
      %3444 = vst.msk [vmem:[%s170 + $0xe8] sm:$0xff] %vm833, %v3412
      %3445 = vst.msk [vmem:[%s170 + $0xf0] sm:$0xff] %vm833, %v3413
      %3446 = vst.msk [vmem:[%s170 + $0xf8] sm:$0xff] %vm833, %v3414
      %p3447 = scmp.lt.s32.totalorder %s14, 1
      %s3448 = scalar_select %p3447, %s14, 1
      %s3449 = smul.addr %s3448, 32
      %s3450 = smul.addr %s3449, 8
      %s3451 = scalar_lea.vmem %s3, %s3450
      // Predicated region
      $region33: #{upsum_pallas.3} parent=31 // pred_check
        %p3452 = pneg %p100
      $region34: #{upsum_pallas.3} parent=31 // pred_check_branch
        %3454 = sbr.rel (%p3452) target = $region36
      $region35: #{upsum_pallas.3} parent=31 // pred_region
        _
      $region36: #{upsum_pallas.3} parent=31 // pred_fallthru
        _
    $region32: #{upsum_pallas.3} parent=5 // pred_fallthru
      _
    %p3455 = scmp.le.s32.totalorder 2, %s9
    // Predicated region
    $region37: #{upsum_pallas.3} parent=5 // pred_check
      %p3456 = pneg %p3455
    $region38: #{upsum_pallas.3} parent=5 // pred_check_branch
      %3458 = sbr.rel (%p3456) target = $region40
    $region39: #{upsum_pallas.3} parent=5 // pred_region
      %s3459 = ssub.s32 %s9, 2
      // Predicated region
      $region41: #{upsum_pallas.3} parent=39 // pred_check
        %p3460 = pneg %p106
      $region42: #{upsum_pallas.3} parent=39 // pred_check_branch
        %3462 = sbr.rel (%p3460) target = $region44
      $region43: #{upsum_pallas.3} parent=39 // pred_region
        %p3463 = scmp.lt.s32.totalorder %s15, 1
        %s3464 = scalar_select %p3463, %s15, 1
        %s3465 = smul.addr %s3464, 32
        %s3466 = smul.addr %s3465, 8
        %s3467 = scalar_lea.vmem %s3, %s3466
      $region44: #{upsum_pallas.3} parent=39 // pred_fallthru
        _
    $region40: #{upsum_pallas.3} parent=5 // pred_fallthru
      _
  $region6: #{upsum_pallas.3} parent=0 // loop_footer
    %s13 = sadd.s32 1, %s9
  $region7: #{upsum_pallas.3} parent=0 // loop_footer_branch
    %8 = sbr.rel target = $region3
  $region8: #{upsum_pallas.3} parent=0 // loop_exit
    _

</llo_original>
